<compile_context>
chip_gen: v7x
topology: tpu7x:2x2x1
jax: 0.10.0
libtpu: 0.0.40
codegen_flags: <defaults>
</compile_context>

<pallas_src>
import jax
import jax.numpy as jnp
from jax import lax
from jax.experimental import pallas as pl
from jax.experimental.pallas import tpu as pltpu


# ----------------------------------------------------------------------------- kernel
def _discriminator_kernel(
    y0_ref, dyt_ref, tbias_ref,                   # Y0, channel-major-tiled dY, t*fW1t+fb1 table
    iW1, ib1, iW2, ib2, iW3, ib3,                 # initial MLP
    fW1h, fW2, fb2, fW3, fb3,                     # func MLP (hidden rows of layer 1; layer 3 channel-major)
    rWt_ref, rb_ref,                              # readout (W transposed to (1,H)), bias (1,1)
    out_ref,                                      # (1, 1) per-block readout SUM
):
    def lipswish(x):
        return 0.909 * x * jax.nn.sigmoid(x)

    def dot(a, b):
        return jnp.dot(a, b, preferred_element_type=jnp.float32)

    # ---- hoist all loop-invariant weights into locals (loaded exactly once) ----
    iW1_v, ib1_v = iW1[...], ib1[...]
    iW2_v, ib2_v = iW2[...], ib2[...]
    iW3_v, ib3_v = iW3[...], ib3[...]
    fW1h_v = fW1h[...]
    fW2_v, fb2_v = fW2[...], fb2[...]
    fW3_v, fb3_v = fW3[...], fb3[...]

    block_b = y0_ref.shape[0]
    H = iW3_v.shape[1]
    HC = fW3_v.shape[1]
    C = HC // H

    # ---- h0 = initial MLP(Y(0)) ----
    x = y0_ref[...]                                           # (B, C)
    z = lipswish(dot(x, iW1_v) + ib1_v)
    z = lipswish(dot(z, iW2_v) + ib2_v)
    h0 = dot(z, iW3_v) + ib3_v                                # (B, H)

    def vector_field(tb, h):
        # DiscriminatorFunc: MLP([t, h]) with tanh; flat (B, H*C), CHANNEL-major (c*H+h).
        # tb = t * fW1[time row] + fb1, precomputed per step.
        z = lipswish(dot(h, fW1h_v) + tb)
        z = lipswish(dot(z, fW2_v) + fb2_v)
        z = dot(z, fW3_v) + fb3_v
        return jnp.tanh(z)                                    # (B, H*C)

    def group_sum(x):
        # sum over the C channel slices of the channel-major flat layout: (B, C*H) -> (B, H)
        g = x[:, 0:H]
        for c in range(1, C):
            g = g + x[:, c * H:(c + 1) * H]
        return g

    n_steps = dyt_ref.shape[0]

    # vector field at (t=0, yhat_0 = h0); reused/carried across steps
    vf0 = vector_field(tbias_ref[0], h0)                      # (B, H*C)

    def step(n, carry):
        h, hh, vf_prev = carry
        dyt = dyt_ref[n]                                      # (B, H*C): dy channel-major tiled
        # reversible Heun step (drift = 0); vf_prev == f(t_n, yhat_n)
        g0 = group_sum(vf_prev * dyt)                         # (B, H)
        hh_new = 2.0 * h - hh + g0
        vf_new = vector_field(tbias_ref[n + 1], hh_new)       # f(t_{n+1}, yhat_{n+1})
        g1 = group_sum(vf_new * dyt)                          # (B, H)
        h_new = h + 0.5 * (g0 + g1)
        return (h_new, hh_new, vf_new)

    unroll = n_steps if n_steps <= 8 else 8
    h, _, _ = lax.fori_loop(0, n_steps, step, (h0, h0, vf0), unroll=unroll)

    # ---- readout: per-block SUM of scores (batch mean finished in the wrapper) ----
    hsum = jnp.sum(h, axis=0, keepdims=True)                  # (1, H) sublane reduce
    out_ref[...] = (jnp.sum(hsum * rWt_ref[...], axis=1, keepdims=True)
                    + float(block_b) * rb_ref[...])


# ----------------------------------------------------------------------------- wrapper
def _pick_block_b(B, max_block=256):
    if B <= max_block:
        return B
    for blk in range(max_block, 7, -8):
        if B % blk == 0:
            return blk
    return B  # fallback: single block


def discriminator_forward(ys_coeffs, p):
    B, T, C = ys_coeffs.shape
    H = p["iW3"].shape[1]
    M = p["iW1"].shape[1]
    HC = H * C

    y0 = ys_coeffs[:, 0, :]                                              # (B, C)
    dy = jnp.transpose(ys_coeffs[:, 1:, :] - ys_coeffs[:, :-1, :],
                       (1, 0, 2))                                        # (T-1, B, C)
    # channel-major lane tiling: dyt[n, b, c*H + h] = dy[n, b, c]
    dyt = jnp.repeat(dy, H, axis=2)                                      # (T-1, B, H*C)

    # per-step time bias of the func MLP's first layer: t * fW1[time row] + fb1
    fW1t = p["fW1"][0:1, :]                                              # (1, M)
    fW1h = p["fW1"][1:, :]                                               # (H, M)
    ts = jnp.arange(T, dtype=jnp.float32)[:, None, None]                 # (T, 1, 1)
    tbias = ts * fW1t[None, :, :] + p["fb1"][None, :, :]                 # (T, 1, M)

    # permute func-MLP output layer from (h*C + c) to channel-major (c*H + h)
    fW3_cm = p["fW3"].reshape(M, H, C).transpose(0, 2, 1).reshape(M, HC)
    fb3_cm = p["fb3"].reshape(1, H, C).transpose(0, 2, 1).reshape(1, HC)

    rWt = jnp.transpose(p["rW"])                                         # (1, H)

    block_b = _pick_block_b(B)
    nb = B // block_b
    assert nb * block_b == B, "batch must tile evenly into blocks"

    vmem_full = pl.BlockSpec(memory_space=pltpu.MemorySpace.VMEM)        # whole-array weights
    weight_specs = [vmem_full] * 13

    out = pl.pallas_call(
        _discriminator_kernel,
        out_shape=jax.ShapeDtypeStruct((nb, 1), jnp.float32),
        grid=(nb,),
        in_specs=[
            pl.BlockSpec((block_b, C), lambda i: (i, 0)),                # Y0 batch block
            pl.BlockSpec((T - 1, block_b, HC), lambda i: (0, i, 0)),     # dyt batch block
            pl.BlockSpec((T, 1, M), lambda i: (0, 0, 0)),                # time-bias table
        ] + weight_specs,
        out_specs=pl.BlockSpec((1, 1), lambda i: (i, 0)),
        compiler_params=pltpu.CompilerParams(
            dimension_semantics=("parallel",)),                          # 2 TCs on v7x
    )(y0, dyt, tbias,
      p["iW1"], p["ib1"], p["iW2"], p["ib2"], p["iW3"], p["ib3"],
      fW1h, p["fW2"], p["fb2"], fW3_cm, fb3_cm,
      rWt, p["rb"])
    return jnp.sum(out) / B


# ----------------------------------------------------------------------------- params
def init_params(key, data_size, hidden_size, mlp_size):
    C, H, M = 1 + data_size, hidden_size, mlp_size

    def linear(k, fan_in, fan_out):
        k1, k2 = jax.random.split(k)
        bound = 1.0 / float(fan_in) ** 0.5
        W = jax.random.uniform(k1, (fan_in, fan_out), jnp.float32, -bound, bound)
        b = jax.random.uniform(k2, (1, fan_out), jnp.float32, -bound, bound)
        return W, b

    ks = jax.random.split(key, 7)
    p = {}
    p["iW1"], p["ib1"] = linear(ks[0], C, M)
    p["iW2"], p["ib2"] = linear(ks[1], M, M)
    p["iW3"], p["ib3"] = linear(ks[2], M, H)
    p["fW1"], p["fb1"] = linear(ks[3], 1 + H, M)
    p["fW2"], p["fb2"] = linear(ks[4], M, M)
    p["fW3"], p["fb3"] = linear(ks[5], M, H * C)
    p["rW"], p["rb"] = linear(ks[6], H, 1)
    return p


# ----------------------------------------------------------------------------- reference
def reference_forward(ys, p):
    B, T, C = ys.shape
    H = p["iW3"].shape[1]

    def lips(x):
        return 0.909 * x * jax.nn.sigmoid(x)

    def mlp_init(x):
        z = lips(x @ p["iW1"] + p["ib1"])
        z = lips(z @ p["iW2"] + p["ib2"])
        return z @ p["iW3"] + p["ib3"]

    def func(t, h):
        th = jnp.concatenate([jnp.full((B, 1), t, jnp.float32), h], axis=1)
        z = lips(th @ p["fW1"] + p["fb1"])
        z = lips(z @ p["fW2"] + p["fb2"])
        z = jnp.tanh(z @ p["fW3"] + p["fb3"])
        return z.reshape(B, H, C)

    h = mlp_init(ys[:, 0, :])
    hh = h
    for n in range(T - 1):
        dy = ys[:, n + 1, :] - ys[:, n, :]
        g0 = jnp.einsum("bhc,bc->bh", func(float(n), hh), dy)
        hh_new = 2.0 * h - hh + g0
        g1 = jnp.einsum("bhc,bc->bh", func(float(n + 1), hh_new), dy)
        h = h + 0.5 * (g0 + g1)
        hh = hh_new
    score = h @ p["rW"] + p["rb"]
    return jnp.mean(score)


# ----------------------------------------------------------------------------- main
if __name__ == "__main__":
    data_size, hidden_size, mlp_size = 3, 16, 32   # num_layers = 2 (3 linears per MLP)
    B, T = 8, 9
    C = 1 + data_size

    key = jax.random.PRNGKey(0)
    k_data, k_params = jax.random.split(key)

    # ys_coeffs: first channel is time (as in the GBM GAN example), rest is the path.
    ts = jnp.broadcast_to(jnp.arange(T, dtype=jnp.float32)[None, :, None], (B, T, 1))
    path = 0.3 * jax.random.normal(k_data, (B, T, data_size), jnp.float32)
    ys_coeffs = jnp.concatenate([ts, path], axis=2)            # (B, T, C)

    params = init_params(k_params, data_size, hidden_size, mlp_size)

    score = jax.jit(discriminator_forward)(ys_coeffs, params)
    score = jax.block_until_ready(score)

    ref = reference_forward(ys_coeffs, params)
    assert jnp.allclose(score, ref, atol=1e-4, rtol=1e-4), (score, ref)

    print("KERNEL_OK")
</pallas_src>

<mosaic_0001>
module attributes {stable_mosaic.version = 11 : i64} {
  func.func @_discriminator_kernel(%arg0: i32, %arg1: memref<8x4xf32, #tpu.memory_space<vmem>>, %arg2: memref<8x8x64xf32, #tpu.memory_space<vmem>>, %arg3: memref<9x1x32xf32, #tpu.memory_space<vmem>>, %arg4: memref<4x32xf32, #tpu.memory_space<vmem>>, %arg5: memref<1x32xf32, #tpu.memory_space<vmem>>, %arg6: memref<32x32xf32, #tpu.memory_space<vmem>>, %arg7: memref<1x32xf32, #tpu.memory_space<vmem>>, %arg8: memref<32x16xf32, #tpu.memory_space<vmem>>, %arg9: memref<1x16xf32, #tpu.memory_space<vmem>>, %arg10: memref<16x32xf32, #tpu.memory_space<vmem>>, %arg11: memref<32x32xf32, #tpu.memory_space<vmem>>, %arg12: memref<1x32xf32, #tpu.memory_space<vmem>>, %arg13: memref<32x64xf32, #tpu.memory_space<vmem>>, %arg14: memref<1x64xf32, #tpu.memory_space<vmem>>, %arg15: memref<1x16xf32, #tpu.memory_space<vmem>>, %arg16: memref<1x1xf32, #tpu.memory_space<vmem>>, %arg17: memref<1x1xf32, #tpu.memory_space<vmem>>) attributes {dimension_semantics = [#tpu.dimension_semantics<parallel>], iteration_bounds = array<i64: 1>, scalar_prefetch = 0 : i64, scratch_operands = 0 : i64, tpu.core_type = #tpu.core_type<tc>, window_params = [{transform_indices = @transform_0, window_bounds = array<i64: 8, 4>}, {transform_indices = @transform_1, window_bounds = array<i64: 8, 8, 64>}, {pipeline_mode = #tpu.pipeline_mode<synchronous>, transform_indices = @transform_2, window_bounds = array<i64: 9, 1, 32>}, {pipeline_mode = #tpu.pipeline_mode<synchronous>, transform_indices = @transform_3, window_bounds = array<i64: 4, 32>}, {pipeline_mode = #tpu.pipeline_mode<synchronous>, transform_indices = @transform_4, window_bounds = array<i64: 1, 32>}, {pipeline_mode = #tpu.pipeline_mode<synchronous>, transform_indices = @transform_5, window_bounds = array<i64: 32, 32>}, {pipeline_mode = #tpu.pipeline_mode<synchronous>, transform_indices = @transform_6, window_bounds = array<i64: 1, 32>}, {pipeline_mode = #tpu.pipeline_mode<synchronous>, transform_indices = @transform_7, window_bounds = array<i64: 32, 16>}, {pipeline_mode = #tpu.pipeline_mode<synchronous>, transform_indices = @transform_8, window_bounds = array<i64: 1, 16>}, {pipeline_mode = #tpu.pipeline_mode<synchronous>, transform_indices = @transform_9, window_bounds = array<i64: 16, 32>}, {pipeline_mode = #tpu.pipeline_mode<synchronous>, transform_indices = @transform_10, window_bounds = array<i64: 32, 32>}, {pipeline_mode = #tpu.pipeline_mode<synchronous>, transform_indices = @transform_11, window_bounds = array<i64: 1, 32>}, {pipeline_mode = #tpu.pipeline_mode<synchronous>, transform_indices = @transform_12, window_bounds = array<i64: 32, 64>}, {pipeline_mode = #tpu.pipeline_mode<synchronous>, transform_indices = @transform_13, window_bounds = array<i64: 1, 64>}, {pipeline_mode = #tpu.pipeline_mode<synchronous>, transform_indices = @transform_14, window_bounds = array<i64: 1, 16>}, {pipeline_mode = #tpu.pipeline_mode<synchronous>, transform_indices = @transform_15, window_bounds = array<i64: 1, 1>}, {transform_indices = @transform_16, window_bounds = array<i64: 1, 1>}]} {
    %c0 = arith.constant 0 : index
    %c0_0 = arith.constant 0 : index
    %0 = vector.load %arg4[%c0, %c0_0] : memref<4x32xf32, #tpu.memory_space<vmem>>, vector<4x32xf32>
    %c0_1 = arith.constant 0 : index
    %c0_2 = arith.constant 0 : index
    %1 = vector.load %arg5[%c0_1, %c0_2] : memref<1x32xf32, #tpu.memory_space<vmem>>, vector<1x32xf32>
    %c0_3 = arith.constant 0 : index
    %c0_4 = arith.constant 0 : index
    %2 = vector.load %arg6[%c0_3, %c0_4] : memref<32x32xf32, #tpu.memory_space<vmem>>, vector<32x32xf32>
    %c0_5 = arith.constant 0 : index
    %c0_6 = arith.constant 0 : index
    %3 = vector.load %arg7[%c0_5, %c0_6] : memref<1x32xf32, #tpu.memory_space<vmem>>, vector<1x32xf32>
    %c0_7 = arith.constant 0 : index
    %c0_8 = arith.constant 0 : index
    %4 = vector.load %arg8[%c0_7, %c0_8] : memref<32x16xf32, #tpu.memory_space<vmem>>, vector<32x16xf32>
    %c0_9 = arith.constant 0 : index
    %c0_10 = arith.constant 0 : index
    %5 = vector.load %arg9[%c0_9, %c0_10] : memref<1x16xf32, #tpu.memory_space<vmem>>, vector<1x16xf32>
    %c0_11 = arith.constant 0 : index
    %c0_12 = arith.constant 0 : index
    %6 = vector.load %arg10[%c0_11, %c0_12] : memref<16x32xf32, #tpu.memory_space<vmem>>, vector<16x32xf32>
    %c0_13 = arith.constant 0 : index
    %c0_14 = arith.constant 0 : index
    %7 = vector.load %arg11[%c0_13, %c0_14] : memref<32x32xf32, #tpu.memory_space<vmem>>, vector<32x32xf32>
    %c0_15 = arith.constant 0 : index
    %c0_16 = arith.constant 0 : index
    %8 = vector.load %arg12[%c0_15, %c0_16] : memref<1x32xf32, #tpu.memory_space<vmem>>, vector<1x32xf32>
    %c0_17 = arith.constant 0 : index
    %c0_18 = arith.constant 0 : index
    %9 = vector.load %arg13[%c0_17, %c0_18] : memref<32x64xf32, #tpu.memory_space<vmem>>, vector<32x64xf32>
    %c0_19 = arith.constant 0 : index
    %c0_20 = arith.constant 0 : index
    %10 = vector.load %arg14[%c0_19, %c0_20] : memref<1x64xf32, #tpu.memory_space<vmem>>, vector<1x64xf32>
    %c0_21 = arith.constant 0 : index
    %c0_22 = arith.constant 0 : index
    %11 = vector.load %arg1[%c0_21, %c0_22] : memref<8x4xf32, #tpu.memory_space<vmem>>, vector<8x4xf32>
    %cst = arith.constant dense<0.000000e+00> : vector<8x32xf32>
    %12 = tpu.matmul %11, %0, %cst {dimension_numbers = #tpu.dot_dimension_numbers<[1], [0], [0], [1], [0, 0, 1, 1], [], []>} : vector<8x4xf32>, vector<4x32xf32>, vector<8x32xf32> -> vector<8x32xf32>
    %13 = vector.broadcast %1 : vector<1x32xf32> to vector<8x32xf32>
    %14 = arith.addf %12, %13 : vector<8x32xf32>
    %cst_23 = arith.constant 0.908999979 : f32
    %15 = vector.broadcast %cst_23 : f32 to vector<8x32xf32>
    %16 = arith.mulf %15, %14 : vector<8x32xf32>
    %17 = arith.negf %14 : vector<8x32xf32>
    %18 = math.exp %17 : vector<8x32xf32>
    %cst_24 = arith.constant 1.000000e+00 : f32
    %19 = vector.broadcast %cst_24 : f32 to vector<8x32xf32>
    %20 = arith.addf %19, %18 : vector<8x32xf32>
    %21 = arith.divf %19, %20 : vector<8x32xf32>
    %22 = arith.mulf %16, %21 : vector<8x32xf32>
    %cst_25 = arith.constant dense<0.000000e+00> : vector<8x32xf32>
    %23 = tpu.matmul %22, %2, %cst_25 {dimension_numbers = #tpu.dot_dimension_numbers<[1], [0], [0], [1], [0, 0, 1, 1], [], []>} : vector<8x32xf32>, vector<32x32xf32>, vector<8x32xf32> -> vector<8x32xf32>
    %24 = vector.broadcast %3 : vector<1x32xf32> to vector<8x32xf32>
    %25 = arith.addf %23, %24 : vector<8x32xf32>
    %cst_26 = arith.constant 0.908999979 : f32
    %26 = vector.broadcast %cst_26 : f32 to vector<8x32xf32>
    %27 = arith.mulf %26, %25 : vector<8x32xf32>
    %28 = arith.negf %25 : vector<8x32xf32>
    %29 = math.exp %28 : vector<8x32xf32>
    %cst_27 = arith.constant 1.000000e+00 : f32
    %30 = vector.broadcast %cst_27 : f32 to vector<8x32xf32>
    %31 = arith.addf %30, %29 : vector<8x32xf32>
    %32 = arith.divf %30, %31 : vector<8x32xf32>
    %33 = arith.mulf %27, %32 : vector<8x32xf32>
    %cst_28 = arith.constant dense<0.000000e+00> : vector<8x16xf32>
    %34 = tpu.matmul %33, %4, %cst_28 {dimension_numbers = #tpu.dot_dimension_numbers<[1], [0], [0], [1], [0, 0, 1, 1], [], []>} : vector<8x32xf32>, vector<32x16xf32>, vector<8x16xf32> -> vector<8x16xf32>
    %35 = vector.broadcast %5 : vector<1x16xf32> to vector<8x16xf32>
    %36 = arith.addf %34, %35 : vector<8x16xf32>
    %c0_29 = arith.constant 0 : index
    %c0_30 = arith.constant 0 : index
    %c0_31 = arith.constant 0 : index
    %37 = vector.load %arg3[%c0_29, %c0_30, %c0_31] : memref<9x1x32xf32, #tpu.memory_space<vmem>>, vector<1x1x32xf32>
    %38 = vector.shape_cast %37 : vector<1x1x32xf32> to vector<1x32xf32>
    %cst_32 = arith.constant dense<0.000000e+00> : vector<8x32xf32>
    %39 = tpu.matmul %36, %6, %cst_32 {dimension_numbers = #tpu.dot_dimension_numbers<[1], [0], [0], [1], [0, 0, 1, 1], [], []>} : vector<8x16xf32>, vector<16x32xf32>, vector<8x32xf32> -> vector<8x32xf32>
    %40 = vector.broadcast %38 : vector<1x32xf32> to vector<8x32xf32>
    %41 = arith.addf %39, %40 : vector<8x32xf32>
    %cst_33 = arith.constant 0.908999979 : f32
    %42 = vector.broadcast %cst_33 : f32 to vector<8x32xf32>
    %43 = arith.mulf %42, %41 : vector<8x32xf32>
    %44 = arith.negf %41 : vector<8x32xf32>
    %45 = math.exp %44 : vector<8x32xf32>
    %cst_34 = arith.constant 1.000000e+00 : f32
    %46 = vector.broadcast %cst_34 : f32 to vector<8x32xf32>
    %47 = arith.addf %46, %45 : vector<8x32xf32>
    %48 = arith.divf %46, %47 : vector<8x32xf32>
    %49 = arith.mulf %43, %48 : vector<8x32xf32>
    %cst_35 = arith.constant dense<0.000000e+00> : vector<8x32xf32>
    %50 = tpu.matmul %49, %7, %cst_35 {dimension_numbers = #tpu.dot_dimension_numbers<[1], [0], [0], [1], [0, 0, 1, 1], [], []>} : vector<8x32xf32>, vector<32x32xf32>, vector<8x32xf32> -> vector<8x32xf32>
    %51 = vector.broadcast %8 : vector<1x32xf32> to vector<8x32xf32>
    %52 = arith.addf %50, %51 : vector<8x32xf32>
    %cst_36 = arith.constant 0.908999979 : f32
    %53 = vector.broadcast %cst_36 : f32 to vector<8x32xf32>
    %54 = arith.mulf %53, %52 : vector<8x32xf32>
    %55 = arith.negf %52 : vector<8x32xf32>
    %56 = math.exp %55 : vector<8x32xf32>
    %cst_37 = arith.constant 1.000000e+00 : f32
    %57 = vector.broadcast %cst_37 : f32 to vector<8x32xf32>
    %58 = arith.addf %57, %56 : vector<8x32xf32>
    %59 = arith.divf %57, %58 : vector<8x32xf32>
    %60 = arith.mulf %54, %59 : vector<8x32xf32>
    %cst_38 = arith.constant dense<0.000000e+00> : vector<8x64xf32>
    %61 = tpu.matmul %60, %9, %cst_38 {dimension_numbers = #tpu.dot_dimension_numbers<[1], [0], [0], [1], [0, 0, 1, 1], [], []>} : vector<8x32xf32>, vector<32x64xf32>, vector<8x64xf32> -> vector<8x64xf32>
    %62 = vector.broadcast %10 : vector<1x64xf32> to vector<8x64xf32>
    %63 = arith.addf %61, %62 : vector<8x64xf32>
    %64 = math.tanh %63 : vector<8x64xf32>
    %c0_i32 = arith.constant 0 : i32
    %65 = arith.index_cast %c0_i32 : i32 to index
    %c0_39 = arith.constant 0 : index
    %c0_40 = arith.constant 0 : index
    %66 = vector.load %arg2[%65, %c0_39, %c0_40] : memref<8x8x64xf32, #tpu.memory_space<vmem>>, vector<1x8x64xf32>
    %67 = vector.shape_cast %66 : vector<1x8x64xf32> to vector<8x64xf32>
    %68 = arith.mulf %64, %67 : vector<8x64xf32>
    %69 = vector.extract_strided_slice %68 {offsets = [0, 0], sizes = [8, 16], strides = [1, 1]} : vector<8x64xf32> to vector<8x16xf32>
    %70 = vector.extract_strided_slice %68 {offsets = [0, 16], sizes = [8, 16], strides = [1, 1]} : vector<8x64xf32> to vector<8x16xf32>
    %71 = arith.addf %69, %70 : vector<8x16xf32>
    %72 = vector.extract_strided_slice %68 {offsets = [0, 32], sizes = [8, 16], strides = [1, 1]} : vector<8x64xf32> to vector<8x16xf32>
    %73 = arith.addf %71, %72 : vector<8x16xf32>
    %74 = vector.extract_strided_slice %68 {offsets = [0, 48], sizes = [8, 16], strides = [1, 1]} : vector<8x64xf32> to vector<8x16xf32>
    %75 = arith.addf %73, %74 : vector<8x16xf32>
    %cst_41 = arith.constant 2.000000e+00 : f32
    %76 = vector.broadcast %cst_41 : f32 to vector<8x16xf32>
    %77 = arith.mulf %76, %36 : vector<8x16xf32>
    %78 = arith.subf %77, %36 : vector<8x16xf32>
    %79 = arith.addf %78, %75 : vector<8x16xf32>
    %c1_i32 = arith.constant 1 : i32
    %80 = arith.addi %c0_i32, %c1_i32 : i32
    %81 = arith.index_cast %80 : i32 to index
    %c0_42 = arith.constant 0 : index
    %c0_43 = arith.constant 0 : index
    %82 = vector.load %arg3[%81, %c0_42, %c0_43] : memref<9x1x32xf32, #tpu.memory_space<vmem>>, vector<1x1x32xf32>
    %83 = vector.shape_cast %82 : vector<1x1x32xf32> to vector<1x32xf32>
    %cst_44 = arith.constant dense<0.000000e+00> : vector<8x32xf32>
    %84 = tpu.matmul %79, %6, %cst_44 {dimension_numbers = #tpu.dot_dimension_numbers<[1], [0], [0], [1], [0, 0, 1, 1], [], []>} : vector<8x16xf32>, vector<16x32xf32>, vector<8x32xf32> -> vector<8x32xf32>
    %85 = vector.broadcast %83 : vector<1x32xf32> to vector<8x32xf32>
    %86 = arith.addf %84, %85 : vector<8x32xf32>
    %cst_45 = arith.constant 0.908999979 : f32
    %87 = vector.broadcast %cst_45 : f32 to vector<8x32xf32>
    %88 = arith.mulf %87, %86 : vector<8x32xf32>
    %89 = arith.negf %86 : vector<8x32xf32>
    %90 = math.exp %89 : vector<8x32xf32>
    %cst_46 = arith.constant 1.000000e+00 : f32
    %91 = vector.broadcast %cst_46 : f32 to vector<8x32xf32>
    %92 = arith.addf %91, %90 : vector<8x32xf32>
    %93 = arith.divf %91, %92 : vector<8x32xf32>
    %94 = arith.mulf %88, %93 : vector<8x32xf32>
    %cst_47 = arith.constant dense<0.000000e+00> : vector<8x32xf32>
    %95 = tpu.matmul %94, %7, %cst_47 {dimension_numbers = #tpu.dot_dimension_numbers<[1], [0], [0], [1], [0, 0, 1, 1], [], []>} : vector<8x32xf32>, vector<32x32xf32>, vector<8x32xf32> -> vector<8x32xf32>
    %96 = vector.broadcast %8 : vector<1x32xf32> to vector<8x32xf32>
    %97 = arith.addf %95, %96 : vector<8x32xf32>
    %cst_48 = arith.constant 0.908999979 : f32
    %98 = vector.broadcast %cst_48 : f32 to vector<8x32xf32>
    %99 = arith.mulf %98, %97 : vector<8x32xf32>
    %100 = arith.negf %97 : vector<8x32xf32>
    %101 = math.exp %100 : vector<8x32xf32>
    %cst_49 = arith.constant 1.000000e+00 : f32
    %102 = vector.broadcast %cst_49 : f32 to vector<8x32xf32>
    %103 = arith.addf %102, %101 : vector<8x32xf32>
    %104 = arith.divf %102, %103 : vector<8x32xf32>
    %105 = arith.mulf %99, %104 : vector<8x32xf32>
    %cst_50 = arith.constant dense<0.000000e+00> : vector<8x64xf32>
    %106 = tpu.matmul %105, %9, %cst_50 {dimension_numbers = #tpu.dot_dimension_numbers<[1], [0], [0], [1], [0, 0, 1, 1], [], []>} : vector<8x32xf32>, vector<32x64xf32>, vector<8x64xf32> -> vector<8x64xf32>
    %107 = vector.broadcast %10 : vector<1x64xf32> to vector<8x64xf32>
    %108 = arith.addf %106, %107 : vector<8x64xf32>
    %109 = math.tanh %108 : vector<8x64xf32>
    %110 = arith.mulf %109, %67 : vector<8x64xf32>
    %111 = vector.extract_strided_slice %110 {offsets = [0, 0], sizes = [8, 16], strides = [1, 1]} : vector<8x64xf32> to vector<8x16xf32>
    %112 = vector.extract_strided_slice %110 {offsets = [0, 16], sizes = [8, 16], strides = [1, 1]} : vector<8x64xf32> to vector<8x16xf32>
    %113 = arith.addf %111, %112 : vector<8x16xf32>
    %114 = vector.extract_strided_slice %110 {offsets = [0, 32], sizes = [8, 16], strides = [1, 1]} : vector<8x64xf32> to vector<8x16xf32>
    %115 = arith.addf %113, %114 : vector<8x16xf32>
    %116 = vector.extract_strided_slice %110 {offsets = [0, 48], sizes = [8, 16], strides = [1, 1]} : vector<8x64xf32> to vector<8x16xf32>
    %117 = arith.addf %115, %116 : vector<8x16xf32>
    %118 = arith.addf %75, %117 : vector<8x16xf32>
    %cst_51 = arith.constant 5.000000e-01 : f32
    %119 = vector.broadcast %cst_51 : f32 to vector<8x16xf32>
    %120 = arith.mulf %119, %118 : vector<8x16xf32>
    %121 = arith.addf %36, %120 : vector<8x16xf32>
    %c1_i32_52 = arith.constant 1 : i32
    %122 = arith.index_cast %c1_i32_52 : i32 to index
    %c0_53 = arith.constant 0 : index
    %c0_54 = arith.constant 0 : index
    %123 = vector.load %arg2[%122, %c0_53, %c0_54] : memref<8x8x64xf32, #tpu.memory_space<vmem>>, vector<1x8x64xf32>
    %124 = vector.shape_cast %123 : vector<1x8x64xf32> to vector<8x64xf32>
    %125 = arith.mulf %109, %124 : vector<8x64xf32>
    %126 = vector.extract_strided_slice %125 {offsets = [0, 0], sizes = [8, 16], strides = [1, 1]} : vector<8x64xf32> to vector<8x16xf32>
    %127 = vector.extract_strided_slice %125 {offsets = [0, 16], sizes = [8, 16], strides = [1, 1]} : vector<8x64xf32> to vector<8x16xf32>
    %128 = arith.addf %126, %127 : vector<8x16xf32>
    %129 = vector.extract_strided_slice %125 {offsets = [0, 32], sizes = [8, 16], strides = [1, 1]} : vector<8x64xf32> to vector<8x16xf32>
    %130 = arith.addf %128, %129 : vector<8x16xf32>
    %131 = vector.extract_strided_slice %125 {offsets = [0, 48], sizes = [8, 16], strides = [1, 1]} : vector<8x64xf32> to vector<8x16xf32>
    %132 = arith.addf %130, %131 : vector<8x16xf32>
    %cst_55 = arith.constant 2.000000e+00 : f32
    %133 = vector.broadcast %cst_55 : f32 to vector<8x16xf32>
    %134 = arith.mulf %133, %121 : vector<8x16xf32>
    %135 = arith.subf %134, %79 : vector<8x16xf32>
    %136 = arith.addf %135, %132 : vector<8x16xf32>
    %c1_i32_56 = arith.constant 1 : i32
    %137 = arith.addi %c1_i32_52, %c1_i32_56 : i32
    %138 = arith.index_cast %137 : i32 to index
    %c0_57 = arith.constant 0 : index
    %c0_58 = arith.constant 0 : index
    %139 = vector.load %arg3[%138, %c0_57, %c0_58] : memref<9x1x32xf32, #tpu.memory_space<vmem>>, vector<1x1x32xf32>
    %140 = vector.shape_cast %139 : vector<1x1x32xf32> to vector<1x32xf32>
    %cst_59 = arith.constant dense<0.000000e+00> : vector<8x32xf32>
    %141 = tpu.matmul %136, %6, %cst_59 {dimension_numbers = #tpu.dot_dimension_numbers<[1], [0], [0], [1], [0, 0, 1, 1], [], []>} : vector<8x16xf32>, vector<16x32xf32>, vector<8x32xf32> -> vector<8x32xf32>
    %142 = vector.broadcast %140 : vector<1x32xf32> to vector<8x32xf32>
    %143 = arith.addf %141, %142 : vector<8x32xf32>
    %cst_60 = arith.constant 0.908999979 : f32
    %144 = vector.broadcast %cst_60 : f32 to vector<8x32xf32>
    %145 = arith.mulf %144, %143 : vector<8x32xf32>
    %146 = arith.negf %143 : vector<8x32xf32>
    %147 = math.exp %146 : vector<8x32xf32>
    %cst_61 = arith.constant 1.000000e+00 : f32
    %148 = vector.broadcast %cst_61 : f32 to vector<8x32xf32>
    %149 = arith.addf %148, %147 : vector<8x32xf32>
    %150 = arith.divf %148, %149 : vector<8x32xf32>
    %151 = arith.mulf %145, %150 : vector<8x32xf32>
    %cst_62 = arith.constant dense<0.000000e+00> : vector<8x32xf32>
    %152 = tpu.matmul %151, %7, %cst_62 {dimension_numbers = #tpu.dot_dimension_numbers<[1], [0], [0], [1], [0, 0, 1, 1], [], []>} : vector<8x32xf32>, vector<32x32xf32>, vector<8x32xf32> -> vector<8x32xf32>
    %153 = vector.broadcast %8 : vector<1x32xf32> to vector<8x32xf32>
    %154 = arith.addf %152, %153 : vector<8x32xf32>
    %cst_63 = arith.constant 0.908999979 : f32
    %155 = vector.broadcast %cst_63 : f32 to vector<8x32xf32>
    %156 = arith.mulf %155, %154 : vector<8x32xf32>
    %157 = arith.negf %154 : vector<8x32xf32>
    %158 = math.exp %157 : vector<8x32xf32>
    %cst_64 = arith.constant 1.000000e+00 : f32
    %159 = vector.broadcast %cst_64 : f32 to vector<8x32xf32>
    %160 = arith.addf %159, %158 : vector<8x32xf32>
    %161 = arith.divf %159, %160 : vector<8x32xf32>
    %162 = arith.mulf %156, %161 : vector<8x32xf32>
    %cst_65 = arith.constant dense<0.000000e+00> : vector<8x64xf32>
    %163 = tpu.matmul %162, %9, %cst_65 {dimension_numbers = #tpu.dot_dimension_numbers<[1], [0], [0], [1], [0, 0, 1, 1], [], []>} : vector<8x32xf32>, vector<32x64xf32>, vector<8x64xf32> -> vector<8x64xf32>
    %164 = vector.broadcast %10 : vector<1x64xf32> to vector<8x64xf32>
    %165 = arith.addf %163, %164 : vector<8x64xf32>
    %166 = math.tanh %165 : vector<8x64xf32>
    %167 = arith.mulf %166, %124 : vector<8x64xf32>
    %168 = vector.extract_strided_slice %167 {offsets = [0, 0], sizes = [8, 16], strides = [1, 1]} : vector<8x64xf32> to vector<8x16xf32>
    %169 = vector.extract_strided_slice %167 {offsets = [0, 16], sizes = [8, 16], strides = [1, 1]} : vector<8x64xf32> to vector<8x16xf32>
    %170 = arith.addf %168, %169 : vector<8x16xf32>
    %171 = vector.extract_strided_slice %167 {offsets = [0, 32], sizes = [8, 16], strides = [1, 1]} : vector<8x64xf32> to vector<8x16xf32>
    %172 = arith.addf %170, %171 : vector<8x16xf32>
    %173 = vector.extract_strided_slice %167 {offsets = [0, 48], sizes = [8, 16], strides = [1, 1]} : vector<8x64xf32> to vector<8x16xf32>
    %174 = arith.addf %172, %173 : vector<8x16xf32>
    %175 = arith.addf %132, %174 : vector<8x16xf32>
    %cst_66 = arith.constant 5.000000e-01 : f32
    %176 = vector.broadcast %cst_66 : f32 to vector<8x16xf32>
    %177 = arith.mulf %176, %175 : vector<8x16xf32>
    %178 = arith.addf %121, %177 : vector<8x16xf32>
    %c2_i32 = arith.constant 2 : i32
    %179 = arith.index_cast %c2_i32 : i32 to index
    %c0_67 = arith.constant 0 : index
    %c0_68 = arith.constant 0 : index
    %180 = vector.load %arg2[%179, %c0_67, %c0_68] : memref<8x8x64xf32, #tpu.memory_space<vmem>>, vector<1x8x64xf32>
    %181 = vector.shape_cast %180 : vector<1x8x64xf32> to vector<8x64xf32>
    %182 = arith.mulf %166, %181 : vector<8x64xf32>
    %183 = vector.extract_strided_slice %182 {offsets = [0, 0], sizes = [8, 16], strides = [1, 1]} : vector<8x64xf32> to vector<8x16xf32>
    %184 = vector.extract_strided_slice %182 {offsets = [0, 16], sizes = [8, 16], strides = [1, 1]} : vector<8x64xf32> to vector<8x16xf32>
    %185 = arith.addf %183, %184 : vector<8x16xf32>
    %186 = vector.extract_strided_slice %182 {offsets = [0, 32], sizes = [8, 16], strides = [1, 1]} : vector<8x64xf32> to vector<8x16xf32>
    %187 = arith.addf %185, %186 : vector<8x16xf32>
    %188 = vector.extract_strided_slice %182 {offsets = [0, 48], sizes = [8, 16], strides = [1, 1]} : vector<8x64xf32> to vector<8x16xf32>
    %189 = arith.addf %187, %188 : vector<8x16xf32>
    %cst_69 = arith.constant 2.000000e+00 : f32
    %190 = vector.broadcast %cst_69 : f32 to vector<8x16xf32>
    %191 = arith.mulf %190, %178 : vector<8x16xf32>
    %192 = arith.subf %191, %136 : vector<8x16xf32>
    %193 = arith.addf %192, %189 : vector<8x16xf32>
    %c1_i32_70 = arith.constant 1 : i32
    %194 = arith.addi %c2_i32, %c1_i32_70 : i32
    %195 = arith.index_cast %194 : i32 to index
    %c0_71 = arith.constant 0 : index
    %c0_72 = arith.constant 0 : index
    %196 = vector.load %arg3[%195, %c0_71, %c0_72] : memref<9x1x32xf32, #tpu.memory_space<vmem>>, vector<1x1x32xf32>
    %197 = vector.shape_cast %196 : vector<1x1x32xf32> to vector<1x32xf32>
    %cst_73 = arith.constant dense<0.000000e+00> : vector<8x32xf32>
    %198 = tpu.matmul %193, %6, %cst_73 {dimension_numbers = #tpu.dot_dimension_numbers<[1], [0], [0], [1], [0, 0, 1, 1], [], []>} : vector<8x16xf32>, vector<16x32xf32>, vector<8x32xf32> -> vector<8x32xf32>
    %199 = vector.broadcast %197 : vector<1x32xf32> to vector<8x32xf32>
    %200 = arith.addf %198, %199 : vector<8x32xf32>
    %cst_74 = arith.constant 0.908999979 : f32
    %201 = vector.broadcast %cst_74 : f32 to vector<8x32xf32>
    %202 = arith.mulf %201, %200 : vector<8x32xf32>
    %203 = arith.negf %200 : vector<8x32xf32>
    %204 = math.exp %203 : vector<8x32xf32>
    %cst_75 = arith.constant 1.000000e+00 : f32
    %205 = vector.broadcast %cst_75 : f32 to vector<8x32xf32>
    %206 = arith.addf %205, %204 : vector<8x32xf32>
    %207 = arith.divf %205, %206 : vector<8x32xf32>
    %208 = arith.mulf %202, %207 : vector<8x32xf32>
    %cst_76 = arith.constant dense<0.000000e+00> : vector<8x32xf32>
    %209 = tpu.matmul %208, %7, %cst_76 {dimension_numbers = #tpu.dot_dimension_numbers<[1], [0], [0], [1], [0, 0, 1, 1], [], []>} : vector<8x32xf32>, vector<32x32xf32>, vector<8x32xf32> -> vector<8x32xf32>
    %210 = vector.broadcast %8 : vector<1x32xf32> to vector<8x32xf32>
    %211 = arith.addf %209, %210 : vector<8x32xf32>
    %cst_77 = arith.constant 0.908999979 : f32
    %212 = vector.broadcast %cst_77 : f32 to vector<8x32xf32>
    %213 = arith.mulf %212, %211 : vector<8x32xf32>
    %214 = arith.negf %211 : vector<8x32xf32>
    %215 = math.exp %214 : vector<8x32xf32>
    %cst_78 = arith.constant 1.000000e+00 : f32
    %216 = vector.broadcast %cst_78 : f32 to vector<8x32xf32>
    %217 = arith.addf %216, %215 : vector<8x32xf32>
    %218 = arith.divf %216, %217 : vector<8x32xf32>
    %219 = arith.mulf %213, %218 : vector<8x32xf32>
    %cst_79 = arith.constant dense<0.000000e+00> : vector<8x64xf32>
    %220 = tpu.matmul %219, %9, %cst_79 {dimension_numbers = #tpu.dot_dimension_numbers<[1], [0], [0], [1], [0, 0, 1, 1], [], []>} : vector<8x32xf32>, vector<32x64xf32>, vector<8x64xf32> -> vector<8x64xf32>
    %221 = vector.broadcast %10 : vector<1x64xf32> to vector<8x64xf32>
    %222 = arith.addf %220, %221 : vector<8x64xf32>
    %223 = math.tanh %222 : vector<8x64xf32>
    %224 = arith.mulf %223, %181 : vector<8x64xf32>
    %225 = vector.extract_strided_slice %224 {offsets = [0, 0], sizes = [8, 16], strides = [1, 1]} : vector<8x64xf32> to vector<8x16xf32>
    %226 = vector.extract_strided_slice %224 {offsets = [0, 16], sizes = [8, 16], strides = [1, 1]} : vector<8x64xf32> to vector<8x16xf32>
    %227 = arith.addf %225, %226 : vector<8x16xf32>
    %228 = vector.extract_strided_slice %224 {offsets = [0, 32], sizes = [8, 16], strides = [1, 1]} : vector<8x64xf32> to vector<8x16xf32>
    %229 = arith.addf %227, %228 : vector<8x16xf32>
    %230 = vector.extract_strided_slice %224 {offsets = [0, 48], sizes = [8, 16], strides = [1, 1]} : vector<8x64xf32> to vector<8x16xf32>
    %231 = arith.addf %229, %230 : vector<8x16xf32>
    %232 = arith.addf %189, %231 : vector<8x16xf32>
    %cst_80 = arith.constant 5.000000e-01 : f32
    %233 = vector.broadcast %cst_80 : f32 to vector<8x16xf32>
    %234 = arith.mulf %233, %232 : vector<8x16xf32>
    %235 = arith.addf %178, %234 : vector<8x16xf32>
    %c3_i32 = arith.constant 3 : i32
    %236 = arith.index_cast %c3_i32 : i32 to index
    %c0_81 = arith.constant 0 : index
    %c0_82 = arith.constant 0 : index
    %237 = vector.load %arg2[%236, %c0_81, %c0_82] : memref<8x8x64xf32, #tpu.memory_space<vmem>>, vector<1x8x64xf32>
    %238 = vector.shape_cast %237 : vector<1x8x64xf32> to vector<8x64xf32>
    %239 = arith.mulf %223, %238 : vector<8x64xf32>
    %240 = vector.extract_strided_slice %239 {offsets = [0, 0], sizes = [8, 16], strides = [1, 1]} : vector<8x64xf32> to vector<8x16xf32>
    %241 = vector.extract_strided_slice %239 {offsets = [0, 16], sizes = [8, 16], strides = [1, 1]} : vector<8x64xf32> to vector<8x16xf32>
    %242 = arith.addf %240, %241 : vector<8x16xf32>
    %243 = vector.extract_strided_slice %239 {offsets = [0, 32], sizes = [8, 16], strides = [1, 1]} : vector<8x64xf32> to vector<8x16xf32>
    %244 = arith.addf %242, %243 : vector<8x16xf32>
    %245 = vector.extract_strided_slice %239 {offsets = [0, 48], sizes = [8, 16], strides = [1, 1]} : vector<8x64xf32> to vector<8x16xf32>
    %246 = arith.addf %244, %245 : vector<8x16xf32>
    %cst_83 = arith.constant 2.000000e+00 : f32
    %247 = vector.broadcast %cst_83 : f32 to vector<8x16xf32>
    %248 = arith.mulf %247, %235 : vector<8x16xf32>
    %249 = arith.subf %248, %193 : vector<8x16xf32>
    %250 = arith.addf %249, %246 : vector<8x16xf32>
    %c1_i32_84 = arith.constant 1 : i32
    %251 = arith.addi %c3_i32, %c1_i32_84 : i32
    %252 = arith.index_cast %251 : i32 to index
    %c0_85 = arith.constant 0 : index
    %c0_86 = arith.constant 0 : index
    %253 = vector.load %arg3[%252, %c0_85, %c0_86] : memref<9x1x32xf32, #tpu.memory_space<vmem>>, vector<1x1x32xf32>
    %254 = vector.shape_cast %253 : vector<1x1x32xf32> to vector<1x32xf32>
    %cst_87 = arith.constant dense<0.000000e+00> : vector<8x32xf32>
    %255 = tpu.matmul %250, %6, %cst_87 {dimension_numbers = #tpu.dot_dimension_numbers<[1], [0], [0], [1], [0, 0, 1, 1], [], []>} : vector<8x16xf32>, vector<16x32xf32>, vector<8x32xf32> -> vector<8x32xf32>
    %256 = vector.broadcast %254 : vector<1x32xf32> to vector<8x32xf32>
    %257 = arith.addf %255, %256 : vector<8x32xf32>
    %cst_88 = arith.constant 0.908999979 : f32
    %258 = vector.broadcast %cst_88 : f32 to vector<8x32xf32>
    %259 = arith.mulf %258, %257 : vector<8x32xf32>
    %260 = arith.negf %257 : vector<8x32xf32>
    %261 = math.exp %260 : vector<8x32xf32>
    %cst_89 = arith.constant 1.000000e+00 : f32
    %262 = vector.broadcast %cst_89 : f32 to vector<8x32xf32>
    %263 = arith.addf %262, %261 : vector<8x32xf32>
    %264 = arith.divf %262, %263 : vector<8x32xf32>
    %265 = arith.mulf %259, %264 : vector<8x32xf32>
    %cst_90 = arith.constant dense<0.000000e+00> : vector<8x32xf32>
    %266 = tpu.matmul %265, %7, %cst_90 {dimension_numbers = #tpu.dot_dimension_numbers<[1], [0], [0], [1], [0, 0, 1, 1], [], []>} : vector<8x32xf32>, vector<32x32xf32>, vector<8x32xf32> -> vector<8x32xf32>
    %267 = vector.broadcast %8 : vector<1x32xf32> to vector<8x32xf32>
    %268 = arith.addf %266, %267 : vector<8x32xf32>
    %cst_91 = arith.constant 0.908999979 : f32
    %269 = vector.broadcast %cst_91 : f32 to vector<8x32xf32>
    %270 = arith.mulf %269, %268 : vector<8x32xf32>
    %271 = arith.negf %268 : vector<8x32xf32>
    %272 = math.exp %271 : vector<8x32xf32>
    %cst_92 = arith.constant 1.000000e+00 : f32
    %273 = vector.broadcast %cst_92 : f32 to vector<8x32xf32>
    %274 = arith.addf %273, %272 : vector<8x32xf32>
    %275 = arith.divf %273, %274 : vector<8x32xf32>
    %276 = arith.mulf %270, %275 : vector<8x32xf32>
    %cst_93 = arith.constant dense<0.000000e+00> : vector<8x64xf32>
    %277 = tpu.matmul %276, %9, %cst_93 {dimension_numbers = #tpu.dot_dimension_numbers<[1], [0], [0], [1], [0, 0, 1, 1], [], []>} : vector<8x32xf32>, vector<32x64xf32>, vector<8x64xf32> -> vector<8x64xf32>
    %278 = vector.broadcast %10 : vector<1x64xf32> to vector<8x64xf32>
    %279 = arith.addf %277, %278 : vector<8x64xf32>
    %280 = math.tanh %279 : vector<8x64xf32>
    %281 = arith.mulf %280, %238 : vector<8x64xf32>
    %282 = vector.extract_strided_slice %281 {offsets = [0, 0], sizes = [8, 16], strides = [1, 1]} : vector<8x64xf32> to vector<8x16xf32>
    %283 = vector.extract_strided_slice %281 {offsets = [0, 16], sizes = [8, 16], strides = [1, 1]} : vector<8x64xf32> to vector<8x16xf32>
    %284 = arith.addf %282, %283 : vector<8x16xf32>
    %285 = vector.extract_strided_slice %281 {offsets = [0, 32], sizes = [8, 16], strides = [1, 1]} : vector<8x64xf32> to vector<8x16xf32>
    %286 = arith.addf %284, %285 : vector<8x16xf32>
    %287 = vector.extract_strided_slice %281 {offsets = [0, 48], sizes = [8, 16], strides = [1, 1]} : vector<8x64xf32> to vector<8x16xf32>
    %288 = arith.addf %286, %287 : vector<8x16xf32>
    %289 = arith.addf %246, %288 : vector<8x16xf32>
    %cst_94 = arith.constant 5.000000e-01 : f32
    %290 = vector.broadcast %cst_94 : f32 to vector<8x16xf32>
    %291 = arith.mulf %290, %289 : vector<8x16xf32>
    %292 = arith.addf %235, %291 : vector<8x16xf32>
    %c4_i32 = arith.constant 4 : i32
    %293 = arith.index_cast %c4_i32 : i32 to index
    %c0_95 = arith.constant 0 : index
    %c0_96 = arith.constant 0 : index
    %294 = vector.load %arg2[%293, %c0_95, %c0_96] : memref<8x8x64xf32, #tpu.memory_space<vmem>>, vector<1x8x64xf32>
    %295 = vector.shape_cast %294 : vector<1x8x64xf32> to vector<8x64xf32>
    %296 = arith.mulf %280, %295 : vector<8x64xf32>
    %297 = vector.extract_strided_slice %296 {offsets = [0, 0], sizes = [8, 16], strides = [1, 1]} : vector<8x64xf32> to vector<8x16xf32>
    %298 = vector.extract_strided_slice %296 {offsets = [0, 16], sizes = [8, 16], strides = [1, 1]} : vector<8x64xf32> to vector<8x16xf32>
    %299 = arith.addf %297, %298 : vector<8x16xf32>
    %300 = vector.extract_strided_slice %296 {offsets = [0, 32], sizes = [8, 16], strides = [1, 1]} : vector<8x64xf32> to vector<8x16xf32>
    %301 = arith.addf %299, %300 : vector<8x16xf32>
    %302 = vector.extract_strided_slice %296 {offsets = [0, 48], sizes = [8, 16], strides = [1, 1]} : vector<8x64xf32> to vector<8x16xf32>
    %303 = arith.addf %301, %302 : vector<8x16xf32>
    %cst_97 = arith.constant 2.000000e+00 : f32
    %304 = vector.broadcast %cst_97 : f32 to vector<8x16xf32>
    %305 = arith.mulf %304, %292 : vector<8x16xf32>
    %306 = arith.subf %305, %250 : vector<8x16xf32>
    %307 = arith.addf %306, %303 : vector<8x16xf32>
    %c1_i32_98 = arith.constant 1 : i32
    %308 = arith.addi %c4_i32, %c1_i32_98 : i32
    %309 = arith.index_cast %308 : i32 to index
    %c0_99 = arith.constant 0 : index
    %c0_100 = arith.constant 0 : index
    %310 = vector.load %arg3[%309, %c0_99, %c0_100] : memref<9x1x32xf32, #tpu.memory_space<vmem>>, vector<1x1x32xf32>
    %311 = vector.shape_cast %310 : vector<1x1x32xf32> to vector<1x32xf32>
    %cst_101 = arith.constant dense<0.000000e+00> : vector<8x32xf32>
    %312 = tpu.matmul %307, %6, %cst_101 {dimension_numbers = #tpu.dot_dimension_numbers<[1], [0], [0], [1], [0, 0, 1, 1], [], []>} : vector<8x16xf32>, vector<16x32xf32>, vector<8x32xf32> -> vector<8x32xf32>
    %313 = vector.broadcast %311 : vector<1x32xf32> to vector<8x32xf32>
    %314 = arith.addf %312, %313 : vector<8x32xf32>
    %cst_102 = arith.constant 0.908999979 : f32
    %315 = vector.broadcast %cst_102 : f32 to vector<8x32xf32>
    %316 = arith.mulf %315, %314 : vector<8x32xf32>
    %317 = arith.negf %314 : vector<8x32xf32>
    %318 = math.exp %317 : vector<8x32xf32>
    %cst_103 = arith.constant 1.000000e+00 : f32
    %319 = vector.broadcast %cst_103 : f32 to vector<8x32xf32>
    %320 = arith.addf %319, %318 : vector<8x32xf32>
    %321 = arith.divf %319, %320 : vector<8x32xf32>
    %322 = arith.mulf %316, %321 : vector<8x32xf32>
    %cst_104 = arith.constant dense<0.000000e+00> : vector<8x32xf32>
    %323 = tpu.matmul %322, %7, %cst_104 {dimension_numbers = #tpu.dot_dimension_numbers<[1], [0], [0], [1], [0, 0, 1, 1], [], []>} : vector<8x32xf32>, vector<32x32xf32>, vector<8x32xf32> -> vector<8x32xf32>
    %324 = vector.broadcast %8 : vector<1x32xf32> to vector<8x32xf32>
    %325 = arith.addf %323, %324 : vector<8x32xf32>
    %cst_105 = arith.constant 0.908999979 : f32
    %326 = vector.broadcast %cst_105 : f32 to vector<8x32xf32>
    %327 = arith.mulf %326, %325 : vector<8x32xf32>
    %328 = arith.negf %325 : vector<8x32xf32>
    %329 = math.exp %328 : vector<8x32xf32>
    %cst_106 = arith.constant 1.000000e+00 : f32
    %330 = vector.broadcast %cst_106 : f32 to vector<8x32xf32>
    %331 = arith.addf %330, %329 : vector<8x32xf32>
    %332 = arith.divf %330, %331 : vector<8x32xf32>
    %333 = arith.mulf %327, %332 : vector<8x32xf32>
    %cst_107 = arith.constant dense<0.000000e+00> : vector<8x64xf32>
    %334 = tpu.matmul %333, %9, %cst_107 {dimension_numbers = #tpu.dot_dimension_numbers<[1], [0], [0], [1], [0, 0, 1, 1], [], []>} : vector<8x32xf32>, vector<32x64xf32>, vector<8x64xf32> -> vector<8x64xf32>
    %335 = vector.broadcast %10 : vector<1x64xf32> to vector<8x64xf32>
    %336 = arith.addf %334, %335 : vector<8x64xf32>
    %337 = math.tanh %336 : vector<8x64xf32>
    %338 = arith.mulf %337, %295 : vector<8x64xf32>
    %339 = vector.extract_strided_slice %338 {offsets = [0, 0], sizes = [8, 16], strides = [1, 1]} : vector<8x64xf32> to vector<8x16xf32>
    %340 = vector.extract_strided_slice %338 {offsets = [0, 16], sizes = [8, 16], strides = [1, 1]} : vector<8x64xf32> to vector<8x16xf32>
    %341 = arith.addf %339, %340 : vector<8x16xf32>
    %342 = vector.extract_strided_slice %338 {offsets = [0, 32], sizes = [8, 16], strides = [1, 1]} : vector<8x64xf32> to vector<8x16xf32>
    %343 = arith.addf %341, %342 : vector<8x16xf32>
    %344 = vector.extract_strided_slice %338 {offsets = [0, 48], sizes = [8, 16], strides = [1, 1]} : vector<8x64xf32> to vector<8x16xf32>
    %345 = arith.addf %343, %344 : vector<8x16xf32>
    %346 = arith.addf %303, %345 : vector<8x16xf32>
    %cst_108 = arith.constant 5.000000e-01 : f32
    %347 = vector.broadcast %cst_108 : f32 to vector<8x16xf32>
    %348 = arith.mulf %347, %346 : vector<8x16xf32>
    %349 = arith.addf %292, %348 : vector<8x16xf32>
    %c5_i32 = arith.constant 5 : i32
    %350 = arith.index_cast %c5_i32 : i32 to index
    %c0_109 = arith.constant 0 : index
    %c0_110 = arith.constant 0 : index
    %351 = vector.load %arg2[%350, %c0_109, %c0_110] : memref<8x8x64xf32, #tpu.memory_space<vmem>>, vector<1x8x64xf32>
    %352 = vector.shape_cast %351 : vector<1x8x64xf32> to vector<8x64xf32>
    %353 = arith.mulf %337, %352 : vector<8x64xf32>
    %354 = vector.extract_strided_slice %353 {offsets = [0, 0], sizes = [8, 16], strides = [1, 1]} : vector<8x64xf32> to vector<8x16xf32>
    %355 = vector.extract_strided_slice %353 {offsets = [0, 16], sizes = [8, 16], strides = [1, 1]} : vector<8x64xf32> to vector<8x16xf32>
    %356 = arith.addf %354, %355 : vector<8x16xf32>
    %357 = vector.extract_strided_slice %353 {offsets = [0, 32], sizes = [8, 16], strides = [1, 1]} : vector<8x64xf32> to vector<8x16xf32>
    %358 = arith.addf %356, %357 : vector<8x16xf32>
    %359 = vector.extract_strided_slice %353 {offsets = [0, 48], sizes = [8, 16], strides = [1, 1]} : vector<8x64xf32> to vector<8x16xf32>
    %360 = arith.addf %358, %359 : vector<8x16xf32>
    %cst_111 = arith.constant 2.000000e+00 : f32
    %361 = vector.broadcast %cst_111 : f32 to vector<8x16xf32>
    %362 = arith.mulf %361, %349 : vector<8x16xf32>
    %363 = arith.subf %362, %307 : vector<8x16xf32>
    %364 = arith.addf %363, %360 : vector<8x16xf32>
    %c1_i32_112 = arith.constant 1 : i32
    %365 = arith.addi %c5_i32, %c1_i32_112 : i32
    %366 = arith.index_cast %365 : i32 to index
    %c0_113 = arith.constant 0 : index
    %c0_114 = arith.constant 0 : index
    %367 = vector.load %arg3[%366, %c0_113, %c0_114] : memref<9x1x32xf32, #tpu.memory_space<vmem>>, vector<1x1x32xf32>
    %368 = vector.shape_cast %367 : vector<1x1x32xf32> to vector<1x32xf32>
    %cst_115 = arith.constant dense<0.000000e+00> : vector<8x32xf32>
    %369 = tpu.matmul %364, %6, %cst_115 {dimension_numbers = #tpu.dot_dimension_numbers<[1], [0], [0], [1], [0, 0, 1, 1], [], []>} : vector<8x16xf32>, vector<16x32xf32>, vector<8x32xf32> -> vector<8x32xf32>
    %370 = vector.broadcast %368 : vector<1x32xf32> to vector<8x32xf32>
    %371 = arith.addf %369, %370 : vector<8x32xf32>
    %cst_116 = arith.constant 0.908999979 : f32
    %372 = vector.broadcast %cst_116 : f32 to vector<8x32xf32>
    %373 = arith.mulf %372, %371 : vector<8x32xf32>
    %374 = arith.negf %371 : vector<8x32xf32>
    %375 = math.exp %374 : vector<8x32xf32>
    %cst_117 = arith.constant 1.000000e+00 : f32
    %376 = vector.broadcast %cst_117 : f32 to vector<8x32xf32>
    %377 = arith.addf %376, %375 : vector<8x32xf32>
    %378 = arith.divf %376, %377 : vector<8x32xf32>
    %379 = arith.mulf %373, %378 : vector<8x32xf32>
    %cst_118 = arith.constant dense<0.000000e+00> : vector<8x32xf32>
    %380 = tpu.matmul %379, %7, %cst_118 {dimension_numbers = #tpu.dot_dimension_numbers<[1], [0], [0], [1], [0, 0, 1, 1], [], []>} : vector<8x32xf32>, vector<32x32xf32>, vector<8x32xf32> -> vector<8x32xf32>
    %381 = vector.broadcast %8 : vector<1x32xf32> to vector<8x32xf32>
    %382 = arith.addf %380, %381 : vector<8x32xf32>
    %cst_119 = arith.constant 0.908999979 : f32
    %383 = vector.broadcast %cst_119 : f32 to vector<8x32xf32>
    %384 = arith.mulf %383, %382 : vector<8x32xf32>
    %385 = arith.negf %382 : vector<8x32xf32>
    %386 = math.exp %385 : vector<8x32xf32>
    %cst_120 = arith.constant 1.000000e+00 : f32
    %387 = vector.broadcast %cst_120 : f32 to vector<8x32xf32>
    %388 = arith.addf %387, %386 : vector<8x32xf32>
    %389 = arith.divf %387, %388 : vector<8x32xf32>
    %390 = arith.mulf %384, %389 : vector<8x32xf32>
    %cst_121 = arith.constant dense<0.000000e+00> : vector<8x64xf32>
    %391 = tpu.matmul %390, %9, %cst_121 {dimension_numbers = #tpu.dot_dimension_numbers<[1], [0], [0], [1], [0, 0, 1, 1], [], []>} : vector<8x32xf32>, vector<32x64xf32>, vector<8x64xf32> -> vector<8x64xf32>
    %392 = vector.broadcast %10 : vector<1x64xf32> to vector<8x64xf32>
    %393 = arith.addf %391, %392 : vector<8x64xf32>
    %394 = math.tanh %393 : vector<8x64xf32>
    %395 = arith.mulf %394, %352 : vector<8x64xf32>
    %396 = vector.extract_strided_slice %395 {offsets = [0, 0], sizes = [8, 16], strides = [1, 1]} : vector<8x64xf32> to vector<8x16xf32>
    %397 = vector.extract_strided_slice %395 {offsets = [0, 16], sizes = [8, 16], strides = [1, 1]} : vector<8x64xf32> to vector<8x16xf32>
    %398 = arith.addf %396, %397 : vector<8x16xf32>
    %399 = vector.extract_strided_slice %395 {offsets = [0, 32], sizes = [8, 16], strides = [1, 1]} : vector<8x64xf32> to vector<8x16xf32>
    %400 = arith.addf %398, %399 : vector<8x16xf32>
    %401 = vector.extract_strided_slice %395 {offsets = [0, 48], sizes = [8, 16], strides = [1, 1]} : vector<8x64xf32> to vector<8x16xf32>
    %402 = arith.addf %400, %401 : vector<8x16xf32>
    %403 = arith.addf %360, %402 : vector<8x16xf32>
    %cst_122 = arith.constant 5.000000e-01 : f32
    %404 = vector.broadcast %cst_122 : f32 to vector<8x16xf32>
    %405 = arith.mulf %404, %403 : vector<8x16xf32>
    %406 = arith.addf %349, %405 : vector<8x16xf32>
    %c6_i32 = arith.constant 6 : i32
    %407 = arith.index_cast %c6_i32 : i32 to index
    %c0_123 = arith.constant 0 : index
    %c0_124 = arith.constant 0 : index
    %408 = vector.load %arg2[%407, %c0_123, %c0_124] : memref<8x8x64xf32, #tpu.memory_space<vmem>>, vector<1x8x64xf32>
    %409 = vector.shape_cast %408 : vector<1x8x64xf32> to vector<8x64xf32>
    %410 = arith.mulf %394, %409 : vector<8x64xf32>
    %411 = vector.extract_strided_slice %410 {offsets = [0, 0], sizes = [8, 16], strides = [1, 1]} : vector<8x64xf32> to vector<8x16xf32>
    %412 = vector.extract_strided_slice %410 {offsets = [0, 16], sizes = [8, 16], strides = [1, 1]} : vector<8x64xf32> to vector<8x16xf32>
    %413 = arith.addf %411, %412 : vector<8x16xf32>
    %414 = vector.extract_strided_slice %410 {offsets = [0, 32], sizes = [8, 16], strides = [1, 1]} : vector<8x64xf32> to vector<8x16xf32>
    %415 = arith.addf %413, %414 : vector<8x16xf32>
    %416 = vector.extract_strided_slice %410 {offsets = [0, 48], sizes = [8, 16], strides = [1, 1]} : vector<8x64xf32> to vector<8x16xf32>
    %417 = arith.addf %415, %416 : vector<8x16xf32>
    %cst_125 = arith.constant 2.000000e+00 : f32
    %418 = vector.broadcast %cst_125 : f32 to vector<8x16xf32>
    %419 = arith.mulf %418, %406 : vector<8x16xf32>
    %420 = arith.subf %419, %364 : vector<8x16xf32>
    %421 = arith.addf %420, %417 : vector<8x16xf32>
    %c1_i32_126 = arith.constant 1 : i32
    %422 = arith.addi %c6_i32, %c1_i32_126 : i32
    %423 = arith.index_cast %422 : i32 to index
    %c0_127 = arith.constant 0 : index
    %c0_128 = arith.constant 0 : index
    %424 = vector.load %arg3[%423, %c0_127, %c0_128] : memref<9x1x32xf32, #tpu.memory_space<vmem>>, vector<1x1x32xf32>
    %425 = vector.shape_cast %424 : vector<1x1x32xf32> to vector<1x32xf32>
    %cst_129 = arith.constant dense<0.000000e+00> : vector<8x32xf32>
    %426 = tpu.matmul %421, %6, %cst_129 {dimension_numbers = #tpu.dot_dimension_numbers<[1], [0], [0], [1], [0, 0, 1, 1], [], []>} : vector<8x16xf32>, vector<16x32xf32>, vector<8x32xf32> -> vector<8x32xf32>
    %427 = vector.broadcast %425 : vector<1x32xf32> to vector<8x32xf32>
    %428 = arith.addf %426, %427 : vector<8x32xf32>
    %cst_130 = arith.constant 0.908999979 : f32
    %429 = vector.broadcast %cst_130 : f32 to vector<8x32xf32>
    %430 = arith.mulf %429, %428 : vector<8x32xf32>
    %431 = arith.negf %428 : vector<8x32xf32>
    %432 = math.exp %431 : vector<8x32xf32>
    %cst_131 = arith.constant 1.000000e+00 : f32
    %433 = vector.broadcast %cst_131 : f32 to vector<8x32xf32>
    %434 = arith.addf %433, %432 : vector<8x32xf32>
    %435 = arith.divf %433, %434 : vector<8x32xf32>
    %436 = arith.mulf %430, %435 : vector<8x32xf32>
    %cst_132 = arith.constant dense<0.000000e+00> : vector<8x32xf32>
    %437 = tpu.matmul %436, %7, %cst_132 {dimension_numbers = #tpu.dot_dimension_numbers<[1], [0], [0], [1], [0, 0, 1, 1], [], []>} : vector<8x32xf32>, vector<32x32xf32>, vector<8x32xf32> -> vector<8x32xf32>
    %438 = vector.broadcast %8 : vector<1x32xf32> to vector<8x32xf32>
    %439 = arith.addf %437, %438 : vector<8x32xf32>
    %cst_133 = arith.constant 0.908999979 : f32
    %440 = vector.broadcast %cst_133 : f32 to vector<8x32xf32>
    %441 = arith.mulf %440, %439 : vector<8x32xf32>
    %442 = arith.negf %439 : vector<8x32xf32>
    %443 = math.exp %442 : vector<8x32xf32>
    %cst_134 = arith.constant 1.000000e+00 : f32
    %444 = vector.broadcast %cst_134 : f32 to vector<8x32xf32>
    %445 = arith.addf %444, %443 : vector<8x32xf32>
    %446 = arith.divf %444, %445 : vector<8x32xf32>
    %447 = arith.mulf %441, %446 : vector<8x32xf32>
    %cst_135 = arith.constant dense<0.000000e+00> : vector<8x64xf32>
    %448 = tpu.matmul %447, %9, %cst_135 {dimension_numbers = #tpu.dot_dimension_numbers<[1], [0], [0], [1], [0, 0, 1, 1], [], []>} : vector<8x32xf32>, vector<32x64xf32>, vector<8x64xf32> -> vector<8x64xf32>
    %449 = vector.broadcast %10 : vector<1x64xf32> to vector<8x64xf32>
    %450 = arith.addf %448, %449 : vector<8x64xf32>
    %451 = math.tanh %450 : vector<8x64xf32>
    %452 = arith.mulf %451, %409 : vector<8x64xf32>
    %453 = vector.extract_strided_slice %452 {offsets = [0, 0], sizes = [8, 16], strides = [1, 1]} : vector<8x64xf32> to vector<8x16xf32>
    %454 = vector.extract_strided_slice %452 {offsets = [0, 16], sizes = [8, 16], strides = [1, 1]} : vector<8x64xf32> to vector<8x16xf32>
    %455 = arith.addf %453, %454 : vector<8x16xf32>
    %456 = vector.extract_strided_slice %452 {offsets = [0, 32], sizes = [8, 16], strides = [1, 1]} : vector<8x64xf32> to vector<8x16xf32>
    %457 = arith.addf %455, %456 : vector<8x16xf32>
    %458 = vector.extract_strided_slice %452 {offsets = [0, 48], sizes = [8, 16], strides = [1, 1]} : vector<8x64xf32> to vector<8x16xf32>
    %459 = arith.addf %457, %458 : vector<8x16xf32>
    %460 = arith.addf %417, %459 : vector<8x16xf32>
    %cst_136 = arith.constant 5.000000e-01 : f32
    %461 = vector.broadcast %cst_136 : f32 to vector<8x16xf32>
    %462 = arith.mulf %461, %460 : vector<8x16xf32>
    %463 = arith.addf %406, %462 : vector<8x16xf32>
    %c7_i32 = arith.constant 7 : i32
    %464 = arith.index_cast %c7_i32 : i32 to index
    %c0_137 = arith.constant 0 : index
    %c0_138 = arith.constant 0 : index
    %465 = vector.load %arg2[%464, %c0_137, %c0_138] : memref<8x8x64xf32, #tpu.memory_space<vmem>>, vector<1x8x64xf32>
    %466 = vector.shape_cast %465 : vector<1x8x64xf32> to vector<8x64xf32>
    %467 = arith.mulf %451, %466 : vector<8x64xf32>
    %468 = vector.extract_strided_slice %467 {offsets = [0, 0], sizes = [8, 16], strides = [1, 1]} : vector<8x64xf32> to vector<8x16xf32>
    %469 = vector.extract_strided_slice %467 {offsets = [0, 16], sizes = [8, 16], strides = [1, 1]} : vector<8x64xf32> to vector<8x16xf32>
    %470 = arith.addf %468, %469 : vector<8x16xf32>
    %471 = vector.extract_strided_slice %467 {offsets = [0, 32], sizes = [8, 16], strides = [1, 1]} : vector<8x64xf32> to vector<8x16xf32>
    %472 = arith.addf %470, %471 : vector<8x16xf32>
    %473 = vector.extract_strided_slice %467 {offsets = [0, 48], sizes = [8, 16], strides = [1, 1]} : vector<8x64xf32> to vector<8x16xf32>
    %474 = arith.addf %472, %473 : vector<8x16xf32>
    %cst_139 = arith.constant 2.000000e+00 : f32
    %475 = vector.broadcast %cst_139 : f32 to vector<8x16xf32>
    %476 = arith.mulf %475, %463 : vector<8x16xf32>
    %477 = arith.subf %476, %421 : vector<8x16xf32>
    %478 = arith.addf %477, %474 : vector<8x16xf32>
    %c1_i32_140 = arith.constant 1 : i32
    %479 = arith.addi %c7_i32, %c1_i32_140 : i32
    %480 = arith.index_cast %479 : i32 to index
    %c0_141 = arith.constant 0 : index
    %c0_142 = arith.constant 0 : index
    %481 = vector.load %arg3[%480, %c0_141, %c0_142] : memref<9x1x32xf32, #tpu.memory_space<vmem>>, vector<1x1x32xf32>
    %482 = vector.shape_cast %481 : vector<1x1x32xf32> to vector<1x32xf32>
    %cst_143 = arith.constant dense<0.000000e+00> : vector<8x32xf32>
    %483 = tpu.matmul %478, %6, %cst_143 {dimension_numbers = #tpu.dot_dimension_numbers<[1], [0], [0], [1], [0, 0, 1, 1], [], []>} : vector<8x16xf32>, vector<16x32xf32>, vector<8x32xf32> -> vector<8x32xf32>
    %484 = vector.broadcast %482 : vector<1x32xf32> to vector<8x32xf32>
    %485 = arith.addf %483, %484 : vector<8x32xf32>
    %cst_144 = arith.constant 0.908999979 : f32
    %486 = vector.broadcast %cst_144 : f32 to vector<8x32xf32>
    %487 = arith.mulf %486, %485 : vector<8x32xf32>
    %488 = arith.negf %485 : vector<8x32xf32>
    %489 = math.exp %488 : vector<8x32xf32>
    %cst_145 = arith.constant 1.000000e+00 : f32
    %490 = vector.broadcast %cst_145 : f32 to vector<8x32xf32>
    %491 = arith.addf %490, %489 : vector<8x32xf32>
    %492 = arith.divf %490, %491 : vector<8x32xf32>
    %493 = arith.mulf %487, %492 : vector<8x32xf32>
    %cst_146 = arith.constant dense<0.000000e+00> : vector<8x32xf32>
    %494 = tpu.matmul %493, %7, %cst_146 {dimension_numbers = #tpu.dot_dimension_numbers<[1], [0], [0], [1], [0, 0, 1, 1], [], []>} : vector<8x32xf32>, vector<32x32xf32>, vector<8x32xf32> -> vector<8x32xf32>
    %495 = vector.broadcast %8 : vector<1x32xf32> to vector<8x32xf32>
    %496 = arith.addf %494, %495 : vector<8x32xf32>
    %cst_147 = arith.constant 0.908999979 : f32
    %497 = vector.broadcast %cst_147 : f32 to vector<8x32xf32>
    %498 = arith.mulf %497, %496 : vector<8x32xf32>
    %499 = arith.negf %496 : vector<8x32xf32>
    %500 = math.exp %499 : vector<8x32xf32>
    %cst_148 = arith.constant 1.000000e+00 : f32
    %501 = vector.broadcast %cst_148 : f32 to vector<8x32xf32>
    %502 = arith.addf %501, %500 : vector<8x32xf32>
    %503 = arith.divf %501, %502 : vector<8x32xf32>
    %504 = arith.mulf %498, %503 : vector<8x32xf32>
    %cst_149 = arith.constant dense<0.000000e+00> : vector<8x64xf32>
    %505 = tpu.matmul %504, %9, %cst_149 {dimension_numbers = #tpu.dot_dimension_numbers<[1], [0], [0], [1], [0, 0, 1, 1], [], []>} : vector<8x32xf32>, vector<32x64xf32>, vector<8x64xf32> -> vector<8x64xf32>
    %506 = vector.broadcast %10 : vector<1x64xf32> to vector<8x64xf32>
    %507 = arith.addf %505, %506 : vector<8x64xf32>
    %508 = math.tanh %507 : vector<8x64xf32>
    %509 = arith.mulf %508, %466 : vector<8x64xf32>
    %510 = vector.extract_strided_slice %509 {offsets = [0, 0], sizes = [8, 16], strides = [1, 1]} : vector<8x64xf32> to vector<8x16xf32>
    %511 = vector.extract_strided_slice %509 {offsets = [0, 16], sizes = [8, 16], strides = [1, 1]} : vector<8x64xf32> to vector<8x16xf32>
    %512 = arith.addf %510, %511 : vector<8x16xf32>
    %513 = vector.extract_strided_slice %509 {offsets = [0, 32], sizes = [8, 16], strides = [1, 1]} : vector<8x64xf32> to vector<8x16xf32>
    %514 = arith.addf %512, %513 : vector<8x16xf32>
    %515 = vector.extract_strided_slice %509 {offsets = [0, 48], sizes = [8, 16], strides = [1, 1]} : vector<8x64xf32> to vector<8x16xf32>
    %516 = arith.addf %514, %515 : vector<8x16xf32>
    %517 = arith.addf %474, %516 : vector<8x16xf32>
    %cst_150 = arith.constant 5.000000e-01 : f32
    %518 = vector.broadcast %cst_150 : f32 to vector<8x16xf32>
    %519 = arith.mulf %518, %517 : vector<8x16xf32>
    %520 = arith.addf %463, %519 : vector<8x16xf32>
    %c8_i32 = arith.constant 8 : i32
    %cst_151 = arith.constant dense<0.000000e+00> : vector<16xf32>
    %521 = vector.multi_reduction <add>, %520, %cst_151 [0] : vector<8x16xf32> to vector<16xf32>
    %522 = vector.shape_cast %521 : vector<16xf32> to vector<1x16xf32>
    %c0_152 = arith.constant 0 : index
    %c0_153 = arith.constant 0 : index
    %523 = vector.load %arg15[%c0_152, %c0_153] : memref<1x16xf32, #tpu.memory_space<vmem>>, vector<1x16xf32>
    %524 = arith.mulf %522, %523 : vector<1x16xf32>
    %cst_154 = arith.constant dense<0.000000e+00> : vector<1xf32>
    %525 = vector.multi_reduction <add>, %524, %cst_154 [1] : vector<1x16xf32> to vector<1xf32>
    %526 = vector.shape_cast %525 : vector<1xf32> to vector<1x1xf32>
    %c0_155 = arith.constant 0 : index
    %c0_156 = arith.constant 0 : index
    %527 = vector.load %arg16[%c0_155, %c0_156] : memref<1x1xf32, #tpu.memory_space<vmem>>, vector<1x1xf32>
    %cst_157 = arith.constant 8.000000e+00 : f32
    %528 = vector.broadcast %cst_157 : f32 to vector<1x1xf32>
    %529 = arith.mulf %528, %527 : vector<1x1xf32>
    %530 = arith.addf %526, %529 : vector<1x1xf32>
    %c0_158 = arith.constant 0 : index
    %c0_159 = arith.constant 0 : index
    %531 = vector.load %arg17[%c0_158, %c0_159] : memref<1x1xf32, #tpu.memory_space<vmem>>, vector<1x1xf32>
    tpu.vector_store %arg17[%c0_158, %c0_159], %530 {strides = array<i32>} : memref<1x1xf32, #tpu.memory_space<vmem>>, vector<1x1xf32>,
    return
  }
  func.func @transform_0(%arg0: i32) -> (i32, i32) {
    %c0_i32 = arith.constant 0 : i32
    %c0_i32_0 = arith.constant 0 : i32
    return %arg0, %c0_i32 : i32, i32
  }
  func.func @transform_1(%arg0: i32) -> (i32, i32, i32) {
    %c0_i32 = arith.constant 0 : i32
    %c0_i32_0 = arith.constant 0 : i32
    %c0_i32_1 = arith.constant 0 : i32
    return %c0_i32, %arg0, %c0_i32_0 : i32, i32, i32
  }
  func.func @transform_2(%arg0: i32) -> (i32, i32, i32) {
    %c0_i32 = arith.constant 0 : i32
    %c0_i32_0 = arith.constant 0 : i32
    %c0_i32_1 = arith.constant 0 : i32
    %c0_i32_2 = arith.constant 0 : i32
    return %c0_i32, %c0_i32_0, %c0_i32_1 : i32, i32, i32
  }
  func.func @transform_3(%arg0: i32) -> (i32, i32) {
    %c0_i32 = arith.constant 0 : i32
    %c0_i32_0 = arith.constant 0 : i32
    %c0_i32_1 = arith.constant 0 : i32
    return %c0_i32, %c0_i32_0 : i32, i32
  }
  func.func @transform_4(%arg0: i32) -> (i32, i32) {
    %c0_i32 = arith.constant 0 : i32
    %c0_i32_0 = arith.constant 0 : i32
    %c0_i32_1 = arith.constant 0 : i32
    return %c0_i32, %c0_i32_0 : i32, i32
  }
  func.func @transform_5(%arg0: i32) -> (i32, i32) {
    %c0_i32 = arith.constant 0 : i32
    %c0_i32_0 = arith.constant 0 : i32
    %c0_i32_1 = arith.constant 0 : i32
    return %c0_i32, %c0_i32_0 : i32, i32
  }
  func.func @transform_6(%arg0: i32) -> (i32, i32) {
    %c0_i32 = arith.constant 0 : i32
    %c0_i32_0 = arith.constant 0 : i32
    %c0_i32_1 = arith.constant 0 : i32
    return %c0_i32, %c0_i32_0 : i32, i32
  }
  func.func @transform_7(%arg0: i32) -> (i32, i32) {
    %c0_i32 = arith.constant 0 : i32
    %c0_i32_0 = arith.constant 0 : i32
    %c0_i32_1 = arith.constant 0 : i32
    return %c0_i32, %c0_i32_0 : i32, i32
  }
  func.func @transform_8(%arg0: i32) -> (i32, i32) {
    %c0_i32 = arith.constant 0 : i32
    %c0_i32_0 = arith.constant 0 : i32
    %c0_i32_1 = arith.constant 0 : i32
    return %c0_i32, %c0_i32_0 : i32, i32
  }
  func.func @transform_9(%arg0: i32) -> (i32, i32) {
    %c0_i32 = arith.constant 0 : i32
    %c0_i32_0 = arith.constant 0 : i32
    %c0_i32_1 = arith.constant 0 : i32
    return %c0_i32, %c0_i32_0 : i32, i32
  }
  func.func @transform_10(%arg0: i32) -> (i32, i32) {
    %c0_i32 = arith.constant 0 : i32
    %c0_i32_0 = arith.constant 0 : i32
    %c0_i32_1 = arith.constant 0 : i32
    return %c0_i32, %c0_i32_0 : i32, i32
  }
  func.func @transform_11(%arg0: i32) -> (i32, i32) {
    %c0_i32 = arith.constant 0 : i32
    %c0_i32_0 = arith.constant 0 : i32
    %c0_i32_1 = arith.constant 0 : i32
    return %c0_i32, %c0_i32_0 : i32, i32
  }
  func.func @transform_12(%arg0: i32) -> (i32, i32) {
    %c0_i32 = arith.constant 0 : i32
    %c0_i32_0 = arith.constant 0 : i32
    %c0_i32_1 = arith.constant 0 : i32
    return %c0_i32, %c0_i32_0 : i32, i32
  }
  func.func @transform_13(%arg0: i32) -> (i32, i32) {
    %c0_i32 = arith.constant 0 : i32
    %c0_i32_0 = arith.constant 0 : i32
    %c0_i32_1 = arith.constant 0 : i32
    return %c0_i32, %c0_i32_0 : i32, i32
  }
  func.func @transform_14(%arg0: i32) -> (i32, i32) {
    %c0_i32 = arith.constant 0 : i32
    %c0_i32_0 = arith.constant 0 : i32
    %c0_i32_1 = arith.constant 0 : i32
    return %c0_i32, %c0_i32_0 : i32, i32
  }
  func.func @transform_15(%arg0: i32) -> (i32, i32) {
    %c0_i32 = arith.constant 0 : i32
    %c0_i32_0 = arith.constant 0 : i32
    %c0_i32_1 = arith.constant 0 : i32
    return %c0_i32, %c0_i32_0 : i32, i32
  }
  func.func @transform_16(%arg0: i32) -> (i32, i32) {
    %c0_i32 = arith.constant 0 : i32
    %c0_i32_0 = arith.constant 0 : i32
    return %arg0, %c0_i32 : i32, i32
  }
}

</mosaic_0001>

<llo_original>
// kernel: discriminator_forward.1
$region0: #{discriminator_forward.1}
  #allocation0 [shape = 'u32[]', space=smem, size = 0x4, offset = 0x4, fixed_abs, tag = 'smem constant byte address 0x4 - core index']
  #allocation1 [shape = 'u32[144,128]{1,0:T(1,128)}', space=vmem, size = 0x12000, scoped, tag = 'internal scratch']
  #allocation2 [shape = 'f32[1,1]{1,0:T(1,128)S(1)}', space=vmem, size = 0x200, scoped, tag = 'scoped memory for discriminator_forward.1']
  %s0 = inlined_call_operand.vmem [shape: f32[8,4], index: 0, kind: input, shape index: {}]
  %s1 = inlined_call_operand.vmem [shape: f32[8,8,64], index: 1, kind: input, shape index: {}]
  %s2 = inlined_call_operand.vmem [shape: f32[9,1,32], index: 2, kind: input, shape index: {}]
  %s3 = inlined_call_operand.vmem [shape: f32[4,32], index: 3, kind: input, shape index: {}]
  %s4 = inlined_call_operand.vmem [shape: f32[1,32], index: 4, kind: input, shape index: {}]
  %s5 = inlined_call_operand.vmem [shape: f32[32,32], index: 5, kind: input, shape index: {}]
  %s6 = inlined_call_operand.vmem [shape: f32[1,32], index: 6, kind: input, shape index: {}]
  %s7 = inlined_call_operand.vmem [shape: f32[32,16], index: 7, kind: input, shape index: {}]
  %s8 = inlined_call_operand.vmem [shape: f32[1,16], index: 8, kind: input, shape index: {}]
  %s9 = inlined_call_operand.vmem [shape: f32[16,32], index: 9, kind: input, shape index: {}]
  %s10 = inlined_call_operand.vmem [shape: f32[32,32], index: 10, kind: input, shape index: {}]
  %s11 = inlined_call_operand.vmem [shape: f32[1,32], index: 11, kind: input, shape index: {}]
  %s12 = inlined_call_operand.vmem [shape: f32[32,64], index: 12, kind: input, shape index: {}]
  %s13 = inlined_call_operand.vmem [shape: f32[1,64], index: 13, kind: input, shape index: {}]
  %s14 = inlined_call_operand.vmem [shape: f32[1,16], index: 14, kind: input, shape index: {}]
  %s15 = inlined_call_operand.<no memory space> [shape: f32[1,1], index: 15, kind: input, shape index: {}]
  %s16 = inlined_call_operand.hbm [shape: f32[1,1], index: 16, kind: output, shape index: {}]
  %s17 = sld [smem:[#allocation0]]
  $region74: #{discriminator_forward.1} parent=0
    _
  %s19 = ssub.s32 1, %s17
  %s20 = scalar_select 0, %s19, %s17
  %v21 = vstv %s15
  %22 = vst [vmem:[#allocation2] sm:$0x1] %v21
  $region1: #{discriminator_forward.1} parent=0
    #allocation3 [shape = 'u8[512]{0}', space=vmem, size = 0x400, scoped, tag = 'output window, operand 0, single buffered']
    #allocation4 [shape = 's32[1]{0}', space=sflag, size = 0x4, scoped, tag = 'scoped memory for discriminator_forward.1']
    %23 = vsyncpa [#allocation4], 0
    // Predicated region
    $region2: #{discriminator_forward.1} parent=1 // pred_check
      _
    $region3: #{discriminator_forward.1} parent=1 // pred_check_branch
      %25 = sbr.rel (0) target = $region5
    $region4: #{discriminator_forward.1} parent=1 // pred_region
      _
    $region5: #{discriminator_forward.1} parent=1 // pred_fallthru
      _
    // Predicated region
    $region6: #{discriminator_forward.1} parent=1 // pred_check
      _
    $region7: #{discriminator_forward.1} parent=1 // pred_check_branch
      %27 = sbr.rel (0) target = $region9
    $region8: #{discriminator_forward.1} parent=1 // pred_region
      _
    $region9: #{discriminator_forward.1} parent=1 // pred_fallthru
      _
    // Predicated region
    $region10: #{discriminator_forward.1} parent=1 // pred_check
      _
    $region11: #{discriminator_forward.1} parent=1 // pred_check_branch
      %29 = sbr.rel (0) target = $region13
    $region12: #{discriminator_forward.1} parent=1 // pred_region
      _
    $region13: #{discriminator_forward.1} parent=1 // pred_fallthru
      _
    // Predicated region
    $region14: #{discriminator_forward.1} parent=1 // pred_check
      _
    $region15: #{discriminator_forward.1} parent=1 // pred_check_branch
      %31 = sbr.rel (0) target = $region17
    $region16: #{discriminator_forward.1} parent=1 // pred_region
      _
    $region17: #{discriminator_forward.1} parent=1 // pred_fallthru
      _
    // Predicated region
    $region18: #{discriminator_forward.1} parent=1 // pred_check
      _
    $region19: #{discriminator_forward.1} parent=1 // pred_check_branch
      %33 = sbr.rel (0) target = $region21
    $region20: #{discriminator_forward.1} parent=1 // pred_region
      _
    $region21: #{discriminator_forward.1} parent=1 // pred_fallthru
      _
    // Predicated region
    $region22: #{discriminator_forward.1} parent=1 // pred_check
      _
    $region23: #{discriminator_forward.1} parent=1 // pred_check_branch
      %35 = sbr.rel (0) target = $region25
    $region24: #{discriminator_forward.1} parent=1 // pred_region
      _
    $region25: #{discriminator_forward.1} parent=1 // pred_fallthru
      _
    // Predicated region
    $region26: #{discriminator_forward.1} parent=1 // pred_check
      _
    $region27: #{discriminator_forward.1} parent=1 // pred_check_branch
      %37 = sbr.rel (0) target = $region29
    $region28: #{discriminator_forward.1} parent=1 // pred_region
      _
    $region29: #{discriminator_forward.1} parent=1 // pred_fallthru
      _
    // Predicated region
    $region30: #{discriminator_forward.1} parent=1 // pred_check
      _
    $region31: #{discriminator_forward.1} parent=1 // pred_check_branch
      %39 = sbr.rel (0) target = $region33
    $region32: #{discriminator_forward.1} parent=1 // pred_region
      _
    $region33: #{discriminator_forward.1} parent=1 // pred_fallthru
      _
    // Predicated region
    $region34: #{discriminator_forward.1} parent=1 // pred_check
      _
    $region35: #{discriminator_forward.1} parent=1 // pred_check_branch
      %41 = sbr.rel (0) target = $region37
    $region36: #{discriminator_forward.1} parent=1 // pred_region
      _
    $region37: #{discriminator_forward.1} parent=1 // pred_fallthru
      _
    // Predicated region
    $region38: #{discriminator_forward.1} parent=1 // pred_check
      _
    $region39: #{discriminator_forward.1} parent=1 // pred_check_branch
      %43 = sbr.rel (0) target = $region41
    $region40: #{discriminator_forward.1} parent=1 // pred_region
      _
    $region41: #{discriminator_forward.1} parent=1 // pred_fallthru
      _
    // Predicated region
    $region42: #{discriminator_forward.1} parent=1 // pred_check
      _
    $region43: #{discriminator_forward.1} parent=1 // pred_check_branch
      %45 = sbr.rel (0) target = $region45
    $region44: #{discriminator_forward.1} parent=1 // pred_region
      _
    $region45: #{discriminator_forward.1} parent=1 // pred_fallthru
      _
    // Predicated region
    $region46: #{discriminator_forward.1} parent=1 // pred_check
      _
    $region47: #{discriminator_forward.1} parent=1 // pred_check_branch
      %47 = sbr.rel (0) target = $region49
    $region48: #{discriminator_forward.1} parent=1 // pred_region
      _
    $region49: #{discriminator_forward.1} parent=1 // pred_fallthru
      _
    // Predicated region
    $region50: #{discriminator_forward.1} parent=1 // pred_check
      _
    $region51: #{discriminator_forward.1} parent=1 // pred_check_branch
      %49 = sbr.rel (0) target = $region53
    $region52: #{discriminator_forward.1} parent=1 // pred_region
      _
    $region53: #{discriminator_forward.1} parent=1 // pred_fallthru
      _
    // Predicated region
    $region54: #{discriminator_forward.1} parent=1 // pred_check
      _
    $region55: #{discriminator_forward.1} parent=1 // pred_check_branch
      %51 = sbr.rel (0) target = $region57
    $region56: #{discriminator_forward.1} parent=1 // pred_region
      _
    $region57: #{discriminator_forward.1} parent=1 // pred_fallthru
      _
    // Predicated region
    $region58: #{discriminator_forward.1} parent=1 // pred_check
      _
    $region59: #{discriminator_forward.1} parent=1 // pred_check_branch
      %53 = sbr.rel (0) target = $region61
    $region60: #{discriminator_forward.1} parent=1 // pred_region
      _
    $region61: #{discriminator_forward.1} parent=1 // pred_fallthru
      _
    // Predicated region
    $region62: #{discriminator_forward.1} parent=1 // pred_check
      _
    $region63: #{discriminator_forward.1} parent=1 // pred_check_branch
      %55 = sbr.rel (0) target = $region65
    $region64: #{discriminator_forward.1} parent=1 // pred_region
      _
    $region65: #{discriminator_forward.1} parent=1 // pred_fallthru
      _
    %v56 = vld [vmem:[%s3] sm:$0xf]
    %v57 = vld [vmem:[%s4] sm:$0x1]
    %v58 = vld [vmem:[%s5] sm:$0xff]
    %v59 = vld [vmem:[%s5 + $0x8] sm:$0xff]
    %v60 = vld [vmem:[%s5 + $0x10] sm:$0xff]
    %v61 = vld [vmem:[%s5 + $0x18] sm:$0xff]
    %v62 = vld [vmem:[%s6] sm:$0x1]
    %v63 = vld [vmem:[%s7] sm:$0xff]
    %v64 = vld [vmem:[%s7 + $0x8] sm:$0xff]
    %v65 = vld [vmem:[%s7 + $0x10] sm:$0xff]
    %v66 = vld [vmem:[%s7 + $0x18] sm:$0xff]
    %v67 = vld [vmem:[%s8] sm:$0x1]
    %v68 = vld [vmem:[%s9] sm:$0xff]
    %v69 = vld [vmem:[%s9 + $0x8] sm:$0xff]
    %v70 = vld [vmem:[%s10] sm:$0xff]
    %v71 = vld [vmem:[%s10 + $0x8] sm:$0xff]
    %v72 = vld [vmem:[%s10 + $0x10] sm:$0xff]
    %v73 = vld [vmem:[%s10 + $0x18] sm:$0xff]
    %v74 = vld [vmem:[%s11] sm:$0x1]
    %v75 = vld [vmem:[%s12] sm:$0xff]
    %v76 = vld [vmem:[%s12 + $0x8] sm:$0xff]
    %v77 = vld [vmem:[%s12 + $0x10] sm:$0xff]
    %v78 = vld [vmem:[%s12 + $0x18] sm:$0xff]
    %v79 = vld [vmem:[%s13] sm:$0x1]
    %v80 = vld [vmem:[%s0] sm:$0xff]
    %v82 = vlaneseq
    %v83 = vshrl.u32 %v82, 7
    %v84 = vsub.s32 0, %v83
    %v85 = vrot.slane %v57, %v84
    %vm87 = vcmask 31744
    %v89 = vsel %vm87, %v80, 0
    %vm91 = vcmask 1043456
    %v93 = vsel %vm91, %v56, 0
    %95 = vmatprep.subr.mxu0 0.0
    %96 = vmatpush1.msra.mxu0 %v93
    %97 = vmatprep.subr.mxu0 0.0
    %98 = vmatpush1.msra.mxu0 0.0
    %99 = vmatprep.subr.mxu0 0.0
    %100 = vmatpush1.msra.mxu0 0.0
    %101 = vmatprep.subr.mxu0 0.0
    %102 = vmatpush1.msra.mxu0 0.0
    %103 = vmatprep.subr.mxu0 0.0
    %104 = vmatpush1.msra.mxu0 0.0
    %105 = vmatprep.subr.mxu0 0.0
    %106 = vmatpush1.msra.mxu0 0.0
    %107 = vmatprep.subr.mxu0 0.0
    %108 = vmatpush1.msra.mxu0 0.0
    %109 = vmatprep.subr.mxu0 0.0
    %110 = vmatpush1.msra.mxu0 0.0
    %111 = vmatprep.subr.mxu0 0.0
    %112 = vmatpush1.msra.mxu0 0.0
    %113 = vmatprep.subr.mxu0 0.0
    %114 = vmatpush1.msra.mxu0 0.0
    %115 = vmatprep.subr.mxu0 0.0
    %116 = vmatpush1.msra.mxu0 0.0
    %117 = vmatprep.subr.mxu0 0.0
    %118 = vmatpush1.msra.mxu0 0.0
    %119 = vmatprep.subr.mxu0 0.0
    %120 = vmatpush1.msra.mxu0 0.0
    %121 = vmatprep.subr.mxu0 0.0
    %122 = vmatpush1.msra.mxu0 0.0
    %123 = vmatprep.subr.mxu0 0.0
    %124 = vmatpush1.msra.mxu0 0.0
    %125 = vmatprep.subr.mxu0 0.0
    %126 = vmatpush1.msra.mxu0 0.0
    %127 = vmatprep.subr.mxu0 0.0
    %128 = vmatpush1.msra.mxu0 0.0
    %129 = vmatprep.subr.mxu0 0.0
    %130 = vmatpush1.msra.mxu0 0.0
    %131 = vmatprep.subr.mxu0 0.0
    %132 = vmatpush1.msra.mxu0 0.0
    %133 = vmatprep.subr.mxu0 0.0
    %134 = vmatpush1.msra.mxu0 0.0
    %135 = vmatprep.subr.mxu0 0.0
    %136 = vmatpush1.msra.mxu0 0.0
    %137 = vmatprep.subr.mxu0 0.0
    %138 = vmatpush1.msra.mxu0 0.0
    %139 = vmatprep.subr.mxu0 0.0
    %140 = vmatpush1.msra.mxu0 0.0
    %141 = vmatprep.subr.mxu0 0.0
    %142 = vmatpush1.msra.mxu0 0.0
    %143 = vmatprep.subr.mxu0 0.0
    %144 = vmatpush1.msra.mxu0 0.0
    %145 = vmatprep.subr.mxu0 0.0
    %146 = vmatpush1.msra.mxu0 0.0
    %147 = vmatprep.subr.mxu0 0.0
    %148 = vmatpush1.msra.mxu0 0.0
    %149 = vmatprep.subr.mxu0 0.0
    %150 = vmatpush1.msra.mxu0 0.0
    %151 = vmatprep.subr.mxu0 0.0
    %152 = vmatpush1.msra.mxu0 0.0
    %153 = vmatprep.subr.mxu0 0.0
    %154 = vmatpush1.msra.mxu0 0.0
    %155 = vmatprep.subr.mxu0 0.0
    %156 = vmatpush1.msra.mxu0 0.0
    %157 = vmatprep.subr.mxu0 0.0
    %158 = vmatpush1.msra.mxu0 0.0
    %159 = vmatprep.mubr.f32.mxu0 0.0
    %160 = vmatmul.mubr.f32.gmra.mrb[0].mxu0 %v89
    %v161 = vpop.f32.mrb[0].mxu0
    %v162 = vadd.f32 %v85, %v161
    %v163 = vpop.f32.mrb[0].mxu0
    %164 = vdwg.mxu0
    %v165 = vmul.f32 %v162, 0.909
    %v166 = vxor.u32 %v162, 2147483648
    %v167 = vmul.f32 %v166, 1.442695
    %v168 = vpow.pop %v167
    %v169 = vadd.f32 %v168, 1.0
    %v170 = vrcp.pop %v169
    %v171 = vmul.f32 1.0, %v170
    %v172 = vmul.f32 %v165, %v171
    %v174 = vlaneseq
    %v175 = vshrl.u32 %v174, 7
    %v176 = vsub.s32 0, %v175
    %v177 = vrot.slane %v62, %v176
    %vm179 = vcmask 261120
    %v181 = vsel %vm179, %v172, 0
    %183 = vmatprep.subr.mxu0 0.0
    %184 = vmatpush1.msra.mxu0 %v58
    %185 = vmatprep.subr.mxu0 0.0
    %186 = vmatpush1.msra.mxu0 %v59
    %187 = vmatprep.subr.mxu0 0.0
    %188 = vmatpush1.msra.mxu0 %v60
    %189 = vmatprep.subr.mxu0 0.0
    %190 = vmatpush1.msra.mxu0 %v61
    %191 = vmatprep.subr.mxu0 0.0
    %192 = vmatpush1.msra.mxu0 0.0
    %193 = vmatprep.subr.mxu0 0.0
    %194 = vmatpush1.msra.mxu0 0.0
    %195 = vmatprep.subr.mxu0 0.0
    %196 = vmatpush1.msra.mxu0 0.0
    %197 = vmatprep.subr.mxu0 0.0
    %198 = vmatpush1.msra.mxu0 0.0
    %199 = vmatprep.subr.mxu0 0.0
    %200 = vmatpush1.msra.mxu0 0.0
    %201 = vmatprep.subr.mxu0 0.0
    %202 = vmatpush1.msra.mxu0 0.0
    %203 = vmatprep.subr.mxu0 0.0
    %204 = vmatpush1.msra.mxu0 0.0
    %205 = vmatprep.subr.mxu0 0.0
    %206 = vmatpush1.msra.mxu0 0.0
    %207 = vmatprep.subr.mxu0 0.0
    %208 = vmatpush1.msra.mxu0 0.0
    %209 = vmatprep.subr.mxu0 0.0
    %210 = vmatpush1.msra.mxu0 0.0
    %211 = vmatprep.subr.mxu0 0.0
    %212 = vmatpush1.msra.mxu0 0.0
    %213 = vmatprep.subr.mxu0 0.0
    %214 = vmatpush1.msra.mxu0 0.0
    %215 = vmatprep.subr.mxu0 0.0
    %216 = vmatpush1.msra.mxu0 0.0
    %217 = vmatprep.subr.mxu0 0.0
    %218 = vmatpush1.msra.mxu0 0.0
    %219 = vmatprep.subr.mxu0 0.0
    %220 = vmatpush1.msra.mxu0 0.0
    %221 = vmatprep.subr.mxu0 0.0
    %222 = vmatpush1.msra.mxu0 0.0
    %223 = vmatprep.subr.mxu0 0.0
    %224 = vmatpush1.msra.mxu0 0.0
    %225 = vmatprep.subr.mxu0 0.0
    %226 = vmatpush1.msra.mxu0 0.0
    %227 = vmatprep.subr.mxu0 0.0
    %228 = vmatpush1.msra.mxu0 0.0
    %229 = vmatprep.subr.mxu0 0.0
    %230 = vmatpush1.msra.mxu0 0.0
    %231 = vmatprep.subr.mxu0 0.0
    %232 = vmatpush1.msra.mxu0 0.0
    %233 = vmatprep.subr.mxu0 0.0
    %234 = vmatpush1.msra.mxu0 0.0
    %235 = vmatprep.subr.mxu0 0.0
    %236 = vmatpush1.msra.mxu0 0.0
    %237 = vmatprep.subr.mxu0 0.0
    %238 = vmatpush1.msra.mxu0 0.0
    %239 = vmatprep.subr.mxu0 0.0
    %240 = vmatpush1.msra.mxu0 0.0
    %241 = vmatprep.subr.mxu0 0.0
    %242 = vmatpush1.msra.mxu0 0.0
    %243 = vmatprep.subr.mxu0 0.0
    %244 = vmatpush1.msra.mxu0 0.0
    %245 = vmatprep.subr.mxu0 0.0
    %246 = vmatpush1.msra.mxu0 0.0
    %247 = vmatprep.mubr.f32.mxu0 0.0
    %248 = vmatmul.mubr.f32.gmra.mrb[0].mxu0 %v181
    %v249 = vpop.f32.mrb[0].mxu0
    %v250 = vadd.f32 %v177, %v249
    %v251 = vpop.f32.mrb[0].mxu0
    %252 = vdwg.mxu0
    %v253 = vmul.f32 %v250, 0.909
    %v254 = vxor.u32 %v250, 2147483648
    %v255 = vmul.f32 %v254, 1.442695
    %v256 = vpow.pop %v255
    %v257 = vadd.f32 %v256, 1.0
    %v258 = vrcp.pop %v257
    %v259 = vmul.f32 1.0, %v258
    %v260 = vmul.f32 %v253, %v259
    %v262 = vlaneseq
    %v263 = vshrl.u32 %v262, 7
    %v264 = vsub.s32 0, %v263
    %v265 = vrot.slane %v67, %v264
    %v268 = vsel %vm179, %v260, 0
    %270 = vmatprep.subr.mxu0 0.0
    %271 = vmatpush1.msra.mxu0 %v63
    %272 = vmatprep.subr.mxu0 0.0
    %273 = vmatpush1.msra.mxu0 %v64
    %274 = vmatprep.subr.mxu0 0.0
    %275 = vmatpush1.msra.mxu0 %v65
    %276 = vmatprep.subr.mxu0 0.0
    %277 = vmatpush1.msra.mxu0 %v66
    %278 = vmatprep.subr.mxu0 0.0
    %279 = vmatpush1.msra.mxu0 0.0
    %280 = vmatprep.subr.mxu0 0.0
    %281 = vmatpush1.msra.mxu0 0.0
    %282 = vmatprep.subr.mxu0 0.0
    %283 = vmatpush1.msra.mxu0 0.0
    %284 = vmatprep.subr.mxu0 0.0
    %285 = vmatpush1.msra.mxu0 0.0
    %286 = vmatprep.subr.mxu0 0.0
    %287 = vmatpush1.msra.mxu0 0.0
    %288 = vmatprep.subr.mxu0 0.0
    %289 = vmatpush1.msra.mxu0 0.0
    %290 = vmatprep.subr.mxu0 0.0
    %291 = vmatpush1.msra.mxu0 0.0
    %292 = vmatprep.subr.mxu0 0.0
    %293 = vmatpush1.msra.mxu0 0.0
    %294 = vmatprep.subr.mxu0 0.0
    %295 = vmatpush1.msra.mxu0 0.0
    %296 = vmatprep.subr.mxu0 0.0
    %297 = vmatpush1.msra.mxu0 0.0
    %298 = vmatprep.subr.mxu0 0.0
    %299 = vmatpush1.msra.mxu0 0.0
    %300 = vmatprep.subr.mxu0 0.0
    %301 = vmatpush1.msra.mxu0 0.0
    %302 = vmatprep.subr.mxu0 0.0
    %303 = vmatpush1.msra.mxu0 0.0
    %304 = vmatprep.subr.mxu0 0.0
    %305 = vmatpush1.msra.mxu0 0.0
    %306 = vmatprep.subr.mxu0 0.0
    %307 = vmatpush1.msra.mxu0 0.0
    %308 = vmatprep.subr.mxu0 0.0
    %309 = vmatpush1.msra.mxu0 0.0
    %310 = vmatprep.subr.mxu0 0.0
    %311 = vmatpush1.msra.mxu0 0.0
    %312 = vmatprep.subr.mxu0 0.0
    %313 = vmatpush1.msra.mxu0 0.0
    %314 = vmatprep.subr.mxu0 0.0
    %315 = vmatpush1.msra.mxu0 0.0
    %316 = vmatprep.subr.mxu0 0.0
    %317 = vmatpush1.msra.mxu0 0.0
    %318 = vmatprep.subr.mxu0 0.0
    %319 = vmatpush1.msra.mxu0 0.0
    %320 = vmatprep.subr.mxu0 0.0
    %321 = vmatpush1.msra.mxu0 0.0
    %322 = vmatprep.subr.mxu0 0.0
    %323 = vmatpush1.msra.mxu0 0.0
    %324 = vmatprep.subr.mxu0 0.0
    %325 = vmatpush1.msra.mxu0 0.0
    %326 = vmatprep.subr.mxu0 0.0
    %327 = vmatpush1.msra.mxu0 0.0
    %328 = vmatprep.subr.mxu0 0.0
    %329 = vmatpush1.msra.mxu0 0.0
    %330 = vmatprep.subr.mxu0 0.0
    %331 = vmatpush1.msra.mxu0 0.0
    %332 = vmatprep.subr.mxu0 0.0
    %333 = vmatpush1.msra.mxu0 0.0
    %334 = vmatprep.mubr.f32.mxu0 0.0
    %335 = vmatmul.mubr.f32.gmra.mrb[0].mxu0 %v268
    %v336 = vpop.f32.mrb[0].mxu0
    %v337 = vadd.f32 %v265, %v336
    %v338 = vpop.f32.mrb[0].mxu0
    %339 = vdwg.mxu0
    %v340 = vld [vmem:[%s2] sm:$0x1]
    %v342 = vlaneseq
    %v343 = vshrl.u32 %v342, 7
    %v344 = vsub.s32 0, %v343
    %v345 = vrot.slane %v340, %v344
    %vm347 = vcmask 130048
    %v349 = vsel %vm347, %v337, 0
    %351 = vmatprep.subr.mxu0 0.0
    %352 = vmatpush1.msra.mxu0 %v68
    %353 = vmatprep.subr.mxu0 0.0
    %354 = vmatpush1.msra.mxu0 %v69
    %355 = vmatprep.subr.mxu0 0.0
    %356 = vmatpush1.msra.mxu0 0.0
    %357 = vmatprep.subr.mxu0 0.0
    %358 = vmatpush1.msra.mxu0 0.0
    %359 = vmatprep.subr.mxu0 0.0
    %360 = vmatpush1.msra.mxu0 0.0
    %361 = vmatprep.subr.mxu0 0.0
    %362 = vmatpush1.msra.mxu0 0.0
    %363 = vmatprep.subr.mxu0 0.0
    %364 = vmatpush1.msra.mxu0 0.0
    %365 = vmatprep.subr.mxu0 0.0
    %366 = vmatpush1.msra.mxu0 0.0
    %367 = vmatprep.subr.mxu0 0.0
    %368 = vmatpush1.msra.mxu0 0.0
    %369 = vmatprep.subr.mxu0 0.0
    %370 = vmatpush1.msra.mxu0 0.0
    %371 = vmatprep.subr.mxu0 0.0
    %372 = vmatpush1.msra.mxu0 0.0
    %373 = vmatprep.subr.mxu0 0.0
    %374 = vmatpush1.msra.mxu0 0.0
    %375 = vmatprep.subr.mxu0 0.0
    %376 = vmatpush1.msra.mxu0 0.0
    %377 = vmatprep.subr.mxu0 0.0
    %378 = vmatpush1.msra.mxu0 0.0
    %379 = vmatprep.subr.mxu0 0.0
    %380 = vmatpush1.msra.mxu0 0.0
    %381 = vmatprep.subr.mxu0 0.0
    %382 = vmatpush1.msra.mxu0 0.0
    %383 = vmatprep.subr.mxu0 0.0
    %384 = vmatpush1.msra.mxu0 0.0
    %385 = vmatprep.subr.mxu0 0.0
    %386 = vmatpush1.msra.mxu0 0.0
    %387 = vmatprep.subr.mxu0 0.0
    %388 = vmatpush1.msra.mxu0 0.0
    %389 = vmatprep.subr.mxu0 0.0
    %390 = vmatpush1.msra.mxu0 0.0
    %391 = vmatprep.subr.mxu0 0.0
    %392 = vmatpush1.msra.mxu0 0.0
    %393 = vmatprep.subr.mxu0 0.0
    %394 = vmatpush1.msra.mxu0 0.0
    %395 = vmatprep.subr.mxu0 0.0
    %396 = vmatpush1.msra.mxu0 0.0
    %397 = vmatprep.subr.mxu0 0.0
    %398 = vmatpush1.msra.mxu0 0.0
    %399 = vmatprep.subr.mxu0 0.0
    %400 = vmatpush1.msra.mxu0 0.0
    %401 = vmatprep.subr.mxu0 0.0
    %402 = vmatpush1.msra.mxu0 0.0
    %403 = vmatprep.subr.mxu0 0.0
    %404 = vmatpush1.msra.mxu0 0.0
    %405 = vmatprep.subr.mxu0 0.0
    %406 = vmatpush1.msra.mxu0 0.0
    %407 = vmatprep.subr.mxu0 0.0
    %408 = vmatpush1.msra.mxu0 0.0
    %409 = vmatprep.subr.mxu0 0.0
    %410 = vmatpush1.msra.mxu0 0.0
    %411 = vmatprep.subr.mxu0 0.0
    %412 = vmatpush1.msra.mxu0 0.0
    %413 = vmatprep.subr.mxu0 0.0
    %414 = vmatpush1.msra.mxu0 0.0
    %415 = vmatprep.mubr.f32.mxu0 0.0
    %416 = vmatmul.mubr.f32.gmra.mrb[0].mxu0 %v349
    %v417 = vpop.f32.mrb[0].mxu0
    %v418 = vadd.f32 %v345, %v417
    %v419 = vpop.f32.mrb[0].mxu0
    %420 = vdwg.mxu0
    %v421 = vmul.f32 %v418, 0.909
    %v422 = vxor.u32 %v418, 2147483648
    %v423 = vmul.f32 %v422, 1.442695
    %v424 = vpow.pop %v423
    %v425 = vadd.f32 %v424, 1.0
    %v426 = vrcp.pop %v425
    %v427 = vmul.f32 1.0, %v426
    %v428 = vmul.f32 %v421, %v427
    %v430 = vlaneseq
    %v431 = vshrl.u32 %v430, 7
    %v432 = vsub.s32 0, %v431
    %v433 = vrot.slane %v74, %v432
    %v436 = vsel %vm179, %v428, 0
    %438 = vmatprep.subr.mxu0 0.0
    %439 = vmatpush1.msra.mxu0 %v70
    %440 = vmatprep.subr.mxu0 0.0
    %441 = vmatpush1.msra.mxu0 %v71
    %442 = vmatprep.subr.mxu0 0.0
    %443 = vmatpush1.msra.mxu0 %v72
    %444 = vmatprep.subr.mxu0 0.0
    %445 = vmatpush1.msra.mxu0 %v73
    %446 = vmatprep.subr.mxu0 0.0
    %447 = vmatpush1.msra.mxu0 0.0
    %448 = vmatprep.subr.mxu0 0.0
    %449 = vmatpush1.msra.mxu0 0.0
    %450 = vmatprep.subr.mxu0 0.0
    %451 = vmatpush1.msra.mxu0 0.0
    %452 = vmatprep.subr.mxu0 0.0
    %453 = vmatpush1.msra.mxu0 0.0
    %454 = vmatprep.subr.mxu0 0.0
    %455 = vmatpush1.msra.mxu0 0.0
    %456 = vmatprep.subr.mxu0 0.0
    %457 = vmatpush1.msra.mxu0 0.0
    %458 = vmatprep.subr.mxu0 0.0
    %459 = vmatpush1.msra.mxu0 0.0
    %460 = vmatprep.subr.mxu0 0.0
    %461 = vmatpush1.msra.mxu0 0.0
    %462 = vmatprep.subr.mxu0 0.0
    %463 = vmatpush1.msra.mxu0 0.0
    %464 = vmatprep.subr.mxu0 0.0
    %465 = vmatpush1.msra.mxu0 0.0
    %466 = vmatprep.subr.mxu0 0.0
    %467 = vmatpush1.msra.mxu0 0.0
    %468 = vmatprep.subr.mxu0 0.0
    %469 = vmatpush1.msra.mxu0 0.0
    %470 = vmatprep.subr.mxu0 0.0
    %471 = vmatpush1.msra.mxu0 0.0
    %472 = vmatprep.subr.mxu0 0.0
    %473 = vmatpush1.msra.mxu0 0.0
    %474 = vmatprep.subr.mxu0 0.0
    %475 = vmatpush1.msra.mxu0 0.0
    %476 = vmatprep.subr.mxu0 0.0
    %477 = vmatpush1.msra.mxu0 0.0
    %478 = vmatprep.subr.mxu0 0.0
    %479 = vmatpush1.msra.mxu0 0.0
    %480 = vmatprep.subr.mxu0 0.0
    %481 = vmatpush1.msra.mxu0 0.0
    %482 = vmatprep.subr.mxu0 0.0
    %483 = vmatpush1.msra.mxu0 0.0
    %484 = vmatprep.subr.mxu0 0.0
    %485 = vmatpush1.msra.mxu0 0.0
    %486 = vmatprep.subr.mxu0 0.0
    %487 = vmatpush1.msra.mxu0 0.0
    %488 = vmatprep.subr.mxu0 0.0
    %489 = vmatpush1.msra.mxu0 0.0
    %490 = vmatprep.subr.mxu0 0.0
    %491 = vmatpush1.msra.mxu0 0.0
    %492 = vmatprep.subr.mxu0 0.0
    %493 = vmatpush1.msra.mxu0 0.0
    %494 = vmatprep.subr.mxu0 0.0
    %495 = vmatpush1.msra.mxu0 0.0
    %496 = vmatprep.subr.mxu0 0.0
    %497 = vmatpush1.msra.mxu0 0.0
    %498 = vmatprep.subr.mxu0 0.0
    %499 = vmatpush1.msra.mxu0 0.0
    %500 = vmatprep.subr.mxu0 0.0
    %501 = vmatpush1.msra.mxu0 0.0
    %502 = vmatprep.mubr.f32.mxu0 0.0
    %503 = vmatmul.mubr.f32.gmra.mrb[0].mxu0 %v436
    %v504 = vpop.f32.mrb[0].mxu0
    %v505 = vadd.f32 %v433, %v504
    %v506 = vpop.f32.mrb[0].mxu0
    %507 = vdwg.mxu0
    %v508 = vmul.f32 %v505, 0.909
    %v509 = vxor.u32 %v505, 2147483648
    %v510 = vmul.f32 %v509, 1.442695
    %v511 = vpow.pop %v510
    %v512 = vadd.f32 %v511, 1.0
    %v513 = vrcp.pop %v512
    %v514 = vmul.f32 1.0, %v513
    %v515 = vmul.f32 %v508, %v514
    %v517 = vlaneseq
    %v518 = vshrl.u32 %v517, 7
    %v519 = vsub.s32 0, %v518
    %v520 = vrot.slane %v79, %v519
    %v523 = vsel %vm179, %v515, 0
    %525 = vmatprep.subr.mxu0 0.0
    %526 = vmatpush1.msra.mxu0 %v75
    %527 = vmatprep.subr.mxu0 0.0
    %528 = vmatpush1.msra.mxu0 %v76
    %529 = vmatprep.subr.mxu0 0.0
    %530 = vmatpush1.msra.mxu0 %v77
    %531 = vmatprep.subr.mxu0 0.0
    %532 = vmatpush1.msra.mxu0 %v78
    %533 = vmatprep.subr.mxu0 0.0
    %534 = vmatpush1.msra.mxu0 0.0
    %535 = vmatprep.subr.mxu0 0.0
    %536 = vmatpush1.msra.mxu0 0.0
    %537 = vmatprep.subr.mxu0 0.0
    %538 = vmatpush1.msra.mxu0 0.0
    %539 = vmatprep.subr.mxu0 0.0
    %540 = vmatpush1.msra.mxu0 0.0
    %541 = vmatprep.subr.mxu0 0.0
    %542 = vmatpush1.msra.mxu0 0.0
    %543 = vmatprep.subr.mxu0 0.0
    %544 = vmatpush1.msra.mxu0 0.0
    %545 = vmatprep.subr.mxu0 0.0
    %546 = vmatpush1.msra.mxu0 0.0
    %547 = vmatprep.subr.mxu0 0.0
    %548 = vmatpush1.msra.mxu0 0.0
    %549 = vmatprep.subr.mxu0 0.0
    %550 = vmatpush1.msra.mxu0 0.0
    %551 = vmatprep.subr.mxu0 0.0
    %552 = vmatpush1.msra.mxu0 0.0
    %553 = vmatprep.subr.mxu0 0.0
    %554 = vmatpush1.msra.mxu0 0.0
    %555 = vmatprep.subr.mxu0 0.0
    %556 = vmatpush1.msra.mxu0 0.0
    %557 = vmatprep.subr.mxu0 0.0
    %558 = vmatpush1.msra.mxu0 0.0
    %559 = vmatprep.subr.mxu0 0.0
    %560 = vmatpush1.msra.mxu0 0.0
    %561 = vmatprep.subr.mxu0 0.0
    %562 = vmatpush1.msra.mxu0 0.0
    %563 = vmatprep.subr.mxu0 0.0
    %564 = vmatpush1.msra.mxu0 0.0
    %565 = vmatprep.subr.mxu0 0.0
    %566 = vmatpush1.msra.mxu0 0.0
    %567 = vmatprep.subr.mxu0 0.0
    %568 = vmatpush1.msra.mxu0 0.0
    %569 = vmatprep.subr.mxu0 0.0
    %570 = vmatpush1.msra.mxu0 0.0
    %571 = vmatprep.subr.mxu0 0.0
    %572 = vmatpush1.msra.mxu0 0.0
    %573 = vmatprep.subr.mxu0 0.0
    %574 = vmatpush1.msra.mxu0 0.0
    %575 = vmatprep.subr.mxu0 0.0
    %576 = vmatpush1.msra.mxu0 0.0
    %577 = vmatprep.subr.mxu0 0.0
    %578 = vmatpush1.msra.mxu0 0.0
    %579 = vmatprep.subr.mxu0 0.0
    %580 = vmatpush1.msra.mxu0 0.0
    %581 = vmatprep.subr.mxu0 0.0
    %582 = vmatpush1.msra.mxu0 0.0
    %583 = vmatprep.subr.mxu0 0.0
    %584 = vmatpush1.msra.mxu0 0.0
    %585 = vmatprep.subr.mxu0 0.0
    %586 = vmatpush1.msra.mxu0 0.0
    %587 = vmatprep.subr.mxu0 0.0
    %588 = vmatpush1.msra.mxu0 0.0
    %589 = vmatprep.mubr.f32.mxu0 0.0
    %590 = vmatmul.mubr.f32.gmra.mrb[0].mxu0 %v523
    %v591 = vpop.f32.mrb[0].mxu0
    %v592 = vadd.f32 %v520, %v591
    %v593 = vpop.f32.mrb[0].mxu0
    %594 = vdwg.mxu0
    %v595 = vtanh.pop %v592
    %v596 = vld [vmem:[%s1] sm:$0xff]
    %v597 = vmul.f32 %v595, %v596
    %599 = vrot.lane.b32.xlu0 %v597, 112
    %v600 = vpop.permute.xlu0 %599
    %v602 = vadd.f32 %v597, %v600
    %603 = vrot.lane.b32.xlu0 %v597, 96
    %v604 = vpop.permute.xlu0 %603
    %v606 = vadd.f32 %v602, %v604
    %607 = vrot.lane.b32.xlu0 %v597, 80
    %v608 = vpop.permute.xlu0 %607
    %v610 = vadd.f32 %v606, %v608
    %v611 = vmul.f32 %v337, 2.0
    %v612 = vsub.f32 %v611, %v337
    %v613 = vadd.f32 %v612, %v610
    %s614 = scalar_lea.vmem %s2, 1
    %v615 = vld [vmem:[%s614] sm:$0x1]
    %v617 = vlaneseq
    %v618 = vshrl.u32 %v617, 7
    %v619 = vsub.s32 0, %v618
    %v620 = vrot.slane %v615, %v619
    %v623 = vsel %vm347, %v613, 0
    %625 = vmatprep.subr.mxu0 0.0
    %626 = vmatpush1.msra.mxu0 %v68
    %627 = vmatprep.subr.mxu0 0.0
    %628 = vmatpush1.msra.mxu0 %v69
    %629 = vmatprep.subr.mxu0 0.0
    %630 = vmatpush1.msra.mxu0 0.0
    %631 = vmatprep.subr.mxu0 0.0
    %632 = vmatpush1.msra.mxu0 0.0
    %633 = vmatprep.subr.mxu0 0.0
    %634 = vmatpush1.msra.mxu0 0.0
    %635 = vmatprep.subr.mxu0 0.0
    %636 = vmatpush1.msra.mxu0 0.0
    %637 = vmatprep.subr.mxu0 0.0
    %638 = vmatpush1.msra.mxu0 0.0
    %639 = vmatprep.subr.mxu0 0.0
    %640 = vmatpush1.msra.mxu0 0.0
    %641 = vmatprep.subr.mxu0 0.0
    %642 = vmatpush1.msra.mxu0 0.0
    %643 = vmatprep.subr.mxu0 0.0
    %644 = vmatpush1.msra.mxu0 0.0
    %645 = vmatprep.subr.mxu0 0.0
    %646 = vmatpush1.msra.mxu0 0.0
    %647 = vmatprep.subr.mxu0 0.0
    %648 = vmatpush1.msra.mxu0 0.0
    %649 = vmatprep.subr.mxu0 0.0
    %650 = vmatpush1.msra.mxu0 0.0
    %651 = vmatprep.subr.mxu0 0.0
    %652 = vmatpush1.msra.mxu0 0.0
    %653 = vmatprep.subr.mxu0 0.0
    %654 = vmatpush1.msra.mxu0 0.0
    %655 = vmatprep.subr.mxu0 0.0
    %656 = vmatpush1.msra.mxu0 0.0
    %657 = vmatprep.subr.mxu0 0.0
    %658 = vmatpush1.msra.mxu0 0.0
    %659 = vmatprep.subr.mxu0 0.0
    %660 = vmatpush1.msra.mxu0 0.0
    %661 = vmatprep.subr.mxu0 0.0
    %662 = vmatpush1.msra.mxu0 0.0
    %663 = vmatprep.subr.mxu0 0.0
    %664 = vmatpush1.msra.mxu0 0.0
    %665 = vmatprep.subr.mxu0 0.0
    %666 = vmatpush1.msra.mxu0 0.0
    %667 = vmatprep.subr.mxu0 0.0
    %668 = vmatpush1.msra.mxu0 0.0
    %669 = vmatprep.subr.mxu0 0.0
    %670 = vmatpush1.msra.mxu0 0.0
    %671 = vmatprep.subr.mxu0 0.0
    %672 = vmatpush1.msra.mxu0 0.0
    %673 = vmatprep.subr.mxu0 0.0
    %674 = vmatpush1.msra.mxu0 0.0
    %675 = vmatprep.subr.mxu0 0.0
    %676 = vmatpush1.msra.mxu0 0.0
    %677 = vmatprep.subr.mxu0 0.0
    %678 = vmatpush1.msra.mxu0 0.0
    %679 = vmatprep.subr.mxu0 0.0
    %680 = vmatpush1.msra.mxu0 0.0
    %681 = vmatprep.subr.mxu0 0.0
    %682 = vmatpush1.msra.mxu0 0.0
    %683 = vmatprep.subr.mxu0 0.0
    %684 = vmatpush1.msra.mxu0 0.0
    %685 = vmatprep.subr.mxu0 0.0
    %686 = vmatpush1.msra.mxu0 0.0
    %687 = vmatprep.subr.mxu0 0.0
    %688 = vmatpush1.msra.mxu0 0.0
    %689 = vmatprep.mubr.f32.mxu0 0.0
    %690 = vmatmul.mubr.f32.gmra.mrb[0].mxu0 %v623
    %v691 = vpop.f32.mrb[0].mxu0
    %v692 = vadd.f32 %v620, %v691
    %v693 = vpop.f32.mrb[0].mxu0
    %694 = vdwg.mxu0
    %v695 = vmul.f32 %v692, 0.909
    %v696 = vxor.u32 %v692, 2147483648
    %v697 = vmul.f32 %v696, 1.442695
    %v698 = vpow.pop %v697
    %v699 = vadd.f32 %v698, 1.0
    %v700 = vrcp.pop %v699
    %v701 = vmul.f32 1.0, %v700
    %v702 = vmul.f32 %v695, %v701
    %v704 = vsel %vm179, %v702, 0
    %706 = vmatprep.subr.mxu0 0.0
    %707 = vmatpush1.msra.mxu0 %v70
    %708 = vmatprep.subr.mxu0 0.0
    %709 = vmatpush1.msra.mxu0 %v71
    %710 = vmatprep.subr.mxu0 0.0
    %711 = vmatpush1.msra.mxu0 %v72
    %712 = vmatprep.subr.mxu0 0.0
    %713 = vmatpush1.msra.mxu0 %v73
    %714 = vmatprep.subr.mxu0 0.0
    %715 = vmatpush1.msra.mxu0 0.0
    %716 = vmatprep.subr.mxu0 0.0
    %717 = vmatpush1.msra.mxu0 0.0
    %718 = vmatprep.subr.mxu0 0.0
    %719 = vmatpush1.msra.mxu0 0.0
    %720 = vmatprep.subr.mxu0 0.0
    %721 = vmatpush1.msra.mxu0 0.0
    %722 = vmatprep.subr.mxu0 0.0
    %723 = vmatpush1.msra.mxu0 0.0
    %724 = vmatprep.subr.mxu0 0.0
    %725 = vmatpush1.msra.mxu0 0.0
    %726 = vmatprep.subr.mxu0 0.0
    %727 = vmatpush1.msra.mxu0 0.0
    %728 = vmatprep.subr.mxu0 0.0
    %729 = vmatpush1.msra.mxu0 0.0
    %730 = vmatprep.subr.mxu0 0.0
    %731 = vmatpush1.msra.mxu0 0.0
    %732 = vmatprep.subr.mxu0 0.0
    %733 = vmatpush1.msra.mxu0 0.0
    %734 = vmatprep.subr.mxu0 0.0
    %735 = vmatpush1.msra.mxu0 0.0
    %736 = vmatprep.subr.mxu0 0.0
    %737 = vmatpush1.msra.mxu0 0.0
    %738 = vmatprep.subr.mxu0 0.0
    %739 = vmatpush1.msra.mxu0 0.0
    %740 = vmatprep.subr.mxu0 0.0
    %741 = vmatpush1.msra.mxu0 0.0
    %742 = vmatprep.subr.mxu0 0.0
    %743 = vmatpush1.msra.mxu0 0.0
    %744 = vmatprep.subr.mxu0 0.0
    %745 = vmatpush1.msra.mxu0 0.0
    %746 = vmatprep.subr.mxu0 0.0
    %747 = vmatpush1.msra.mxu0 0.0
    %748 = vmatprep.subr.mxu0 0.0
    %749 = vmatpush1.msra.mxu0 0.0
    %750 = vmatprep.subr.mxu0 0.0
    %751 = vmatpush1.msra.mxu0 0.0
    %752 = vmatprep.subr.mxu0 0.0
    %753 = vmatpush1.msra.mxu0 0.0
    %754 = vmatprep.subr.mxu0 0.0
    %755 = vmatpush1.msra.mxu0 0.0
    %756 = vmatprep.subr.mxu0 0.0
    %757 = vmatpush1.msra.mxu0 0.0
    %758 = vmatprep.subr.mxu0 0.0
    %759 = vmatpush1.msra.mxu0 0.0
    %760 = vmatprep.subr.mxu0 0.0
    %761 = vmatpush1.msra.mxu0 0.0
    %762 = vmatprep.subr.mxu0 0.0
    %763 = vmatpush1.msra.mxu0 0.0
    %764 = vmatprep.subr.mxu0 0.0
    %765 = vmatpush1.msra.mxu0 0.0
    %766 = vmatprep.subr.mxu0 0.0
    %767 = vmatpush1.msra.mxu0 0.0
    %768 = vmatprep.subr.mxu0 0.0
    %769 = vmatpush1.msra.mxu0 0.0
    %770 = vmatprep.mubr.f32.mxu0 0.0
    %771 = vmatmul.mubr.f32.gmra.mrb[0].mxu0 %v704
    %v772 = vpop.f32.mrb[0].mxu0
    %v773 = vadd.f32 %v433, %v772
    %v774 = vpop.f32.mrb[0].mxu0
    %775 = vdwg.mxu0
    %v776 = vmul.f32 %v773, 0.909
    %v777 = vxor.u32 %v773, 2147483648
    %v778 = vmul.f32 %v777, 1.442695
    %v779 = vpow.pop %v778
    %v780 = vadd.f32 %v779, 1.0
    %v781 = vrcp.pop %v780
    %v782 = vmul.f32 1.0, %v781
    %v783 = vmul.f32 %v776, %v782
    %v785 = vsel %vm179, %v783, 0
    %787 = vmatprep.subr.mxu0 0.0
    %788 = vmatpush1.msra.mxu0 %v75
    %789 = vmatprep.subr.mxu0 0.0
    %790 = vmatpush1.msra.mxu0 %v76
    %791 = vmatprep.subr.mxu0 0.0
    %792 = vmatpush1.msra.mxu0 %v77
    %793 = vmatprep.subr.mxu0 0.0
    %794 = vmatpush1.msra.mxu0 %v78
    %795 = vmatprep.subr.mxu0 0.0
    %796 = vmatpush1.msra.mxu0 0.0
    %797 = vmatprep.subr.mxu0 0.0
    %798 = vmatpush1.msra.mxu0 0.0
    %799 = vmatprep.subr.mxu0 0.0
    %800 = vmatpush1.msra.mxu0 0.0
    %801 = vmatprep.subr.mxu0 0.0
    %802 = vmatpush1.msra.mxu0 0.0
    %803 = vmatprep.subr.mxu0 0.0
    %804 = vmatpush1.msra.mxu0 0.0
    %805 = vmatprep.subr.mxu0 0.0
    %806 = vmatpush1.msra.mxu0 0.0
    %807 = vmatprep.subr.mxu0 0.0
    %808 = vmatpush1.msra.mxu0 0.0
    %809 = vmatprep.subr.mxu0 0.0
    %810 = vmatpush1.msra.mxu0 0.0
    %811 = vmatprep.subr.mxu0 0.0
    %812 = vmatpush1.msra.mxu0 0.0
    %813 = vmatprep.subr.mxu0 0.0
    %814 = vmatpush1.msra.mxu0 0.0
    %815 = vmatprep.subr.mxu0 0.0
    %816 = vmatpush1.msra.mxu0 0.0
    %817 = vmatprep.subr.mxu0 0.0
    %818 = vmatpush1.msra.mxu0 0.0
    %819 = vmatprep.subr.mxu0 0.0
    %820 = vmatpush1.msra.mxu0 0.0
    %821 = vmatprep.subr.mxu0 0.0
    %822 = vmatpush1.msra.mxu0 0.0
    %823 = vmatprep.subr.mxu0 0.0
    %824 = vmatpush1.msra.mxu0 0.0
    %825 = vmatprep.subr.mxu0 0.0
    %826 = vmatpush1.msra.mxu0 0.0
    %827 = vmatprep.subr.mxu0 0.0
    %828 = vmatpush1.msra.mxu0 0.0
    %829 = vmatprep.subr.mxu0 0.0
    %830 = vmatpush1.msra.mxu0 0.0
    %831 = vmatprep.subr.mxu0 0.0
    %832 = vmatpush1.msra.mxu0 0.0
    %833 = vmatprep.subr.mxu0 0.0
    %834 = vmatpush1.msra.mxu0 0.0
    %835 = vmatprep.subr.mxu0 0.0
    %836 = vmatpush1.msra.mxu0 0.0
    %837 = vmatprep.subr.mxu0 0.0
    %838 = vmatpush1.msra.mxu0 0.0
    %839 = vmatprep.subr.mxu0 0.0
    %840 = vmatpush1.msra.mxu0 0.0
    %841 = vmatprep.subr.mxu0 0.0
    %842 = vmatpush1.msra.mxu0 0.0
    %843 = vmatprep.subr.mxu0 0.0
    %844 = vmatpush1.msra.mxu0 0.0
    %845 = vmatprep.subr.mxu0 0.0
    %846 = vmatpush1.msra.mxu0 0.0
    %847 = vmatprep.subr.mxu0 0.0
    %848 = vmatpush1.msra.mxu0 0.0
    %849 = vmatprep.subr.mxu0 0.0
    %850 = vmatpush1.msra.mxu0 0.0
    %851 = vmatprep.mubr.f32.mxu0 0.0
    %852 = vmatmul.mubr.f32.gmra.mrb[0].mxu0 %v785
    %v853 = vpop.f32.mrb[0].mxu0
    %v854 = vadd.f32 %v520, %v853
    %v855 = vpop.f32.mrb[0].mxu0
    %856 = vdwg.mxu0
    %v857 = vtanh.pop %v854
    %v858 = vmul.f32 %v857, %v596
    %860 = vrot.lane.b32.xlu0 %v858, 112
    %v861 = vpop.permute.xlu0 %860
    %v863 = vadd.f32 %v858, %v861
    %864 = vrot.lane.b32.xlu0 %v858, 96
    %v865 = vpop.permute.xlu0 %864
    %v867 = vadd.f32 %v863, %v865
    %868 = vrot.lane.b32.xlu0 %v858, 80
    %v869 = vpop.permute.xlu0 %868
    %v871 = vadd.f32 %v867, %v869
    %v872 = vadd.f32 %v610, %v871
    %v873 = vmul.f32 %v872, 0.5
    %v874 = vadd.f32 %v337, %v873
    %s875 = scalar_lea.vmem %s1, 8
    %v876 = vld [vmem:[%s875] sm:$0xff]
    %v877 = vmul.f32 %v857, %v876
    %879 = vrot.lane.b32.xlu0 %v877, 112
    %v880 = vpop.permute.xlu0 %879
    %v882 = vadd.f32 %v877, %v880
    %883 = vrot.lane.b32.xlu0 %v877, 96
    %v884 = vpop.permute.xlu0 %883
    %v886 = vadd.f32 %v882, %v884
    %887 = vrot.lane.b32.xlu0 %v877, 80
    %v888 = vpop.permute.xlu0 %887
    %v890 = vadd.f32 %v886, %v888
    %v891 = vmul.f32 %v874, 2.0
    %v892 = vsub.f32 %v891, %v613
    %v893 = vadd.f32 %v892, %v890
    %s894 = scalar_lea.vmem %s2, 2
    %v895 = vld [vmem:[%s894] sm:$0x1]
    %v897 = vlaneseq
    %v898 = vshrl.u32 %v897, 7
    %v899 = vsub.s32 0, %v898
    %v900 = vrot.slane %v895, %v899
    %v903 = vsel %vm347, %v893, 0
    %905 = vmatprep.subr.mxu0 0.0
    %906 = vmatpush1.msra.mxu0 %v68
    %907 = vmatprep.subr.mxu0 0.0
    %908 = vmatpush1.msra.mxu0 %v69
    %909 = vmatprep.subr.mxu0 0.0
    %910 = vmatpush1.msra.mxu0 0.0
    %911 = vmatprep.subr.mxu0 0.0
    %912 = vmatpush1.msra.mxu0 0.0
    %913 = vmatprep.subr.mxu0 0.0
    %914 = vmatpush1.msra.mxu0 0.0
    %915 = vmatprep.subr.mxu0 0.0
    %916 = vmatpush1.msra.mxu0 0.0
    %917 = vmatprep.subr.mxu0 0.0
    %918 = vmatpush1.msra.mxu0 0.0
    %919 = vmatprep.subr.mxu0 0.0
    %920 = vmatpush1.msra.mxu0 0.0
    %921 = vmatprep.subr.mxu0 0.0
    %922 = vmatpush1.msra.mxu0 0.0
    %923 = vmatprep.subr.mxu0 0.0
    %924 = vmatpush1.msra.mxu0 0.0
    %925 = vmatprep.subr.mxu0 0.0
    %926 = vmatpush1.msra.mxu0 0.0
    %927 = vmatprep.subr.mxu0 0.0
    %928 = vmatpush1.msra.mxu0 0.0
    %929 = vmatprep.subr.mxu0 0.0
    %930 = vmatpush1.msra.mxu0 0.0
    %931 = vmatprep.subr.mxu0 0.0
    %932 = vmatpush1.msra.mxu0 0.0
    %933 = vmatprep.subr.mxu0 0.0
    %934 = vmatpush1.msra.mxu0 0.0
    %935 = vmatprep.subr.mxu0 0.0
    %936 = vmatpush1.msra.mxu0 0.0
    %937 = vmatprep.subr.mxu0 0.0
    %938 = vmatpush1.msra.mxu0 0.0
    %939 = vmatprep.subr.mxu0 0.0
    %940 = vmatpush1.msra.mxu0 0.0
    %941 = vmatprep.subr.mxu0 0.0
    %942 = vmatpush1.msra.mxu0 0.0
    %943 = vmatprep.subr.mxu0 0.0
    %944 = vmatpush1.msra.mxu0 0.0
    %945 = vmatprep.subr.mxu0 0.0
    %946 = vmatpush1.msra.mxu0 0.0
    %947 = vmatprep.subr.mxu0 0.0
    %948 = vmatpush1.msra.mxu0 0.0
    %949 = vmatprep.subr.mxu0 0.0
    %950 = vmatpush1.msra.mxu0 0.0
    %951 = vmatprep.subr.mxu0 0.0
    %952 = vmatpush1.msra.mxu0 0.0
    %953 = vmatprep.subr.mxu0 0.0
    %954 = vmatpush1.msra.mxu0 0.0
    %955 = vmatprep.subr.mxu0 0.0
    %956 = vmatpush1.msra.mxu0 0.0
    %957 = vmatprep.subr.mxu0 0.0
    %958 = vmatpush1.msra.mxu0 0.0
    %959 = vmatprep.subr.mxu0 0.0
    %960 = vmatpush1.msra.mxu0 0.0
    %961 = vmatprep.subr.mxu0 0.0
    %962 = vmatpush1.msra.mxu0 0.0
    %963 = vmatprep.subr.mxu0 0.0
    %964 = vmatpush1.msra.mxu0 0.0
    %965 = vmatprep.subr.mxu0 0.0
    %966 = vmatpush1.msra.mxu0 0.0
    %967 = vmatprep.subr.mxu0 0.0
    %968 = vmatpush1.msra.mxu0 0.0
    %969 = vmatprep.mubr.f32.mxu0 0.0
    %970 = vmatmul.mubr.f32.gmra.mrb[0].mxu0 %v903
    %v971 = vpop.f32.mrb[0].mxu0
    %v972 = vadd.f32 %v900, %v971
    %v973 = vpop.f32.mrb[0].mxu0
    %974 = vdwg.mxu0
    %v975 = vmul.f32 %v972, 0.909
    %v976 = vxor.u32 %v972, 2147483648
    %v977 = vmul.f32 %v976, 1.442695
    %v978 = vpow.pop %v977
    %v979 = vadd.f32 %v978, 1.0
    %v980 = vrcp.pop %v979
    %v981 = vmul.f32 1.0, %v980
    %v982 = vmul.f32 %v975, %v981
    %v984 = vsel %vm179, %v982, 0
    %986 = vmatprep.subr.mxu0 0.0
    %987 = vmatpush1.msra.mxu0 %v70
    %988 = vmatprep.subr.mxu0 0.0
    %989 = vmatpush1.msra.mxu0 %v71
    %990 = vmatprep.subr.mxu0 0.0
    %991 = vmatpush1.msra.mxu0 %v72
    %992 = vmatprep.subr.mxu0 0.0
    %993 = vmatpush1.msra.mxu0 %v73
    %994 = vmatprep.subr.mxu0 0.0
    %995 = vmatpush1.msra.mxu0 0.0
    %996 = vmatprep.subr.mxu0 0.0
    %997 = vmatpush1.msra.mxu0 0.0
    %998 = vmatprep.subr.mxu0 0.0
    %999 = vmatpush1.msra.mxu0 0.0
    %1000 = vmatprep.subr.mxu0 0.0
    %1001 = vmatpush1.msra.mxu0 0.0
    %1002 = vmatprep.subr.mxu0 0.0
    %1003 = vmatpush1.msra.mxu0 0.0
    %1004 = vmatprep.subr.mxu0 0.0
    %1005 = vmatpush1.msra.mxu0 0.0
    %1006 = vmatprep.subr.mxu0 0.0
    %1007 = vmatpush1.msra.mxu0 0.0
    %1008 = vmatprep.subr.mxu0 0.0
    %1009 = vmatpush1.msra.mxu0 0.0
    %1010 = vmatprep.subr.mxu0 0.0
    %1011 = vmatpush1.msra.mxu0 0.0
    %1012 = vmatprep.subr.mxu0 0.0
    %1013 = vmatpush1.msra.mxu0 0.0
    %1014 = vmatprep.subr.mxu0 0.0
    %1015 = vmatpush1.msra.mxu0 0.0
    %1016 = vmatprep.subr.mxu0 0.0
    %1017 = vmatpush1.msra.mxu0 0.0
    %1018 = vmatprep.subr.mxu0 0.0
    %1019 = vmatpush1.msra.mxu0 0.0
    %1020 = vmatprep.subr.mxu0 0.0
    %1021 = vmatpush1.msra.mxu0 0.0
    %1022 = vmatprep.subr.mxu0 0.0
    %1023 = vmatpush1.msra.mxu0 0.0
    %1024 = vmatprep.subr.mxu0 0.0
    %1025 = vmatpush1.msra.mxu0 0.0
    %1026 = vmatprep.subr.mxu0 0.0
    %1027 = vmatpush1.msra.mxu0 0.0
    %1028 = vmatprep.subr.mxu0 0.0
    %1029 = vmatpush1.msra.mxu0 0.0
    %1030 = vmatprep.subr.mxu0 0.0
    %1031 = vmatpush1.msra.mxu0 0.0
    %1032 = vmatprep.subr.mxu0 0.0
    %1033 = vmatpush1.msra.mxu0 0.0
    %1034 = vmatprep.subr.mxu0 0.0
    %1035 = vmatpush1.msra.mxu0 0.0
    %1036 = vmatprep.subr.mxu0 0.0
    %1037 = vmatpush1.msra.mxu0 0.0
    %1038 = vmatprep.subr.mxu0 0.0
    %1039 = vmatpush1.msra.mxu0 0.0
    %1040 = vmatprep.subr.mxu0 0.0
    %1041 = vmatpush1.msra.mxu0 0.0
    %1042 = vmatprep.subr.mxu0 0.0
    %1043 = vmatpush1.msra.mxu0 0.0
    %1044 = vmatprep.subr.mxu0 0.0
    %1045 = vmatpush1.msra.mxu0 0.0
    %1046 = vmatprep.subr.mxu0 0.0
    %1047 = vmatpush1.msra.mxu0 0.0
    %1048 = vmatprep.subr.mxu0 0.0
    %1049 = vmatpush1.msra.mxu0 0.0
    %1050 = vmatprep.mubr.f32.mxu0 0.0
    %1051 = vmatmul.mubr.f32.gmra.mrb[0].mxu0 %v984
    %v1052 = vpop.f32.mrb[0].mxu0
    %v1053 = vadd.f32 %v433, %v1052
    %v1054 = vpop.f32.mrb[0].mxu0
    %1055 = vdwg.mxu0
    %v1056 = vmul.f32 %v1053, 0.909
    %v1057 = vxor.u32 %v1053, 2147483648
    %v1058 = vmul.f32 %v1057, 1.442695
    %v1059 = vpow.pop %v1058
    %v1060 = vadd.f32 %v1059, 1.0
    %v1061 = vrcp.pop %v1060
    %v1062 = vmul.f32 1.0, %v1061
    %v1063 = vmul.f32 %v1056, %v1062
    %v1065 = vsel %vm179, %v1063, 0
    %1067 = vmatprep.subr.mxu0 0.0
    %1068 = vmatpush1.msra.mxu0 %v75
    %1069 = vmatprep.subr.mxu0 0.0
    %1070 = vmatpush1.msra.mxu0 %v76
    %1071 = vmatprep.subr.mxu0 0.0
    %1072 = vmatpush1.msra.mxu0 %v77
    %1073 = vmatprep.subr.mxu0 0.0
    %1074 = vmatpush1.msra.mxu0 %v78
    %1075 = vmatprep.subr.mxu0 0.0
    %1076 = vmatpush1.msra.mxu0 0.0
    %1077 = vmatprep.subr.mxu0 0.0
    %1078 = vmatpush1.msra.mxu0 0.0
    %1079 = vmatprep.subr.mxu0 0.0
    %1080 = vmatpush1.msra.mxu0 0.0
    %1081 = vmatprep.subr.mxu0 0.0
    %1082 = vmatpush1.msra.mxu0 0.0
    %1083 = vmatprep.subr.mxu0 0.0
    %1084 = vmatpush1.msra.mxu0 0.0
    %1085 = vmatprep.subr.mxu0 0.0
    %1086 = vmatpush1.msra.mxu0 0.0
    %1087 = vmatprep.subr.mxu0 0.0
    %1088 = vmatpush1.msra.mxu0 0.0
    %1089 = vmatprep.subr.mxu0 0.0
    %1090 = vmatpush1.msra.mxu0 0.0
    %1091 = vmatprep.subr.mxu0 0.0
    %1092 = vmatpush1.msra.mxu0 0.0
    %1093 = vmatprep.subr.mxu0 0.0
    %1094 = vmatpush1.msra.mxu0 0.0
    %1095 = vmatprep.subr.mxu0 0.0
    %1096 = vmatpush1.msra.mxu0 0.0
    %1097 = vmatprep.subr.mxu0 0.0
    %1098 = vmatpush1.msra.mxu0 0.0
    %1099 = vmatprep.subr.mxu0 0.0
    %1100 = vmatpush1.msra.mxu0 0.0
    %1101 = vmatprep.subr.mxu0 0.0
    %1102 = vmatpush1.msra.mxu0 0.0
    %1103 = vmatprep.subr.mxu0 0.0
    %1104 = vmatpush1.msra.mxu0 0.0
    %1105 = vmatprep.subr.mxu0 0.0
    %1106 = vmatpush1.msra.mxu0 0.0
    %1107 = vmatprep.subr.mxu0 0.0
    %1108 = vmatpush1.msra.mxu0 0.0
    %1109 = vmatprep.subr.mxu0 0.0
    %1110 = vmatpush1.msra.mxu0 0.0
    %1111 = vmatprep.subr.mxu0 0.0
    %1112 = vmatpush1.msra.mxu0 0.0
    %1113 = vmatprep.subr.mxu0 0.0
    %1114 = vmatpush1.msra.mxu0 0.0
    %1115 = vmatprep.subr.mxu0 0.0
    %1116 = vmatpush1.msra.mxu0 0.0
    %1117 = vmatprep.subr.mxu0 0.0
    %1118 = vmatpush1.msra.mxu0 0.0
    %1119 = vmatprep.subr.mxu0 0.0
    %1120 = vmatpush1.msra.mxu0 0.0
    %1121 = vmatprep.subr.mxu0 0.0
    %1122 = vmatpush1.msra.mxu0 0.0
    %1123 = vmatprep.subr.mxu0 0.0
    %1124 = vmatpush1.msra.mxu0 0.0
    %1125 = vmatprep.subr.mxu0 0.0
    %1126 = vmatpush1.msra.mxu0 0.0
    %1127 = vmatprep.subr.mxu0 0.0
    %1128 = vmatpush1.msra.mxu0 0.0
    %1129 = vmatprep.subr.mxu0 0.0
    %1130 = vmatpush1.msra.mxu0 0.0
    %1131 = vmatprep.mubr.f32.mxu0 0.0
    %1132 = vmatmul.mubr.f32.gmra.mrb[0].mxu0 %v1065
    %v1133 = vpop.f32.mrb[0].mxu0
    %v1134 = vadd.f32 %v520, %v1133
    %v1135 = vpop.f32.mrb[0].mxu0
    %1136 = vdwg.mxu0
    %v1137 = vtanh.pop %v1134
    %v1138 = vmul.f32 %v1137, %v876
    %1140 = vrot.lane.b32.xlu0 %v1138, 112
    %v1141 = vpop.permute.xlu0 %1140
    %v1143 = vadd.f32 %v1138, %v1141
    %1144 = vrot.lane.b32.xlu0 %v1138, 96
    %v1145 = vpop.permute.xlu0 %1144
    %v1147 = vadd.f32 %v1143, %v1145
    %1148 = vrot.lane.b32.xlu0 %v1138, 80
    %v1149 = vpop.permute.xlu0 %1148
    %v1151 = vadd.f32 %v1147, %v1149
    %v1152 = vadd.f32 %v890, %v1151
    %v1153 = vmul.f32 %v1152, 0.5
    %v1154 = vadd.f32 %v874, %v1153
    %s1155 = scalar_lea.vmem %s1, 16
    %v1156 = vld [vmem:[%s1155] sm:$0xff]
    %v1157 = vmul.f32 %v1137, %v1156
    %1159 = vrot.lane.b32.xlu0 %v1157, 112
    %v1160 = vpop.permute.xlu0 %1159
    %v1162 = vadd.f32 %v1157, %v1160
    %1163 = vrot.lane.b32.xlu0 %v1157, 96
    %v1164 = vpop.permute.xlu0 %1163
    %v1166 = vadd.f32 %v1162, %v1164
    %1167 = vrot.lane.b32.xlu0 %v1157, 80
    %v1168 = vpop.permute.xlu0 %1167
    %v1170 = vadd.f32 %v1166, %v1168
    %v1171 = vmul.f32 %v1154, 2.0
    %v1172 = vsub.f32 %v1171, %v893
    %v1173 = vadd.f32 %v1172, %v1170
    %s1174 = scalar_lea.vmem %s2, 3
    %v1175 = vld [vmem:[%s1174] sm:$0x1]
    %v1177 = vlaneseq
    %v1178 = vshrl.u32 %v1177, 7
    %v1179 = vsub.s32 0, %v1178
    %v1180 = vrot.slane %v1175, %v1179
    %v1183 = vsel %vm347, %v1173, 0
    %1185 = vmatprep.subr.mxu0 0.0
    %1186 = vmatpush1.msra.mxu0 %v68
    %1187 = vmatprep.subr.mxu0 0.0
    %1188 = vmatpush1.msra.mxu0 %v69
    %1189 = vmatprep.subr.mxu0 0.0
    %1190 = vmatpush1.msra.mxu0 0.0
    %1191 = vmatprep.subr.mxu0 0.0
    %1192 = vmatpush1.msra.mxu0 0.0
    %1193 = vmatprep.subr.mxu0 0.0
    %1194 = vmatpush1.msra.mxu0 0.0
    %1195 = vmatprep.subr.mxu0 0.0
    %1196 = vmatpush1.msra.mxu0 0.0
    %1197 = vmatprep.subr.mxu0 0.0
    %1198 = vmatpush1.msra.mxu0 0.0
    %1199 = vmatprep.subr.mxu0 0.0
    %1200 = vmatpush1.msra.mxu0 0.0
    %1201 = vmatprep.subr.mxu0 0.0
    %1202 = vmatpush1.msra.mxu0 0.0
    %1203 = vmatprep.subr.mxu0 0.0
    %1204 = vmatpush1.msra.mxu0 0.0
    %1205 = vmatprep.subr.mxu0 0.0
    %1206 = vmatpush1.msra.mxu0 0.0
    %1207 = vmatprep.subr.mxu0 0.0
    %1208 = vmatpush1.msra.mxu0 0.0
    %1209 = vmatprep.subr.mxu0 0.0
    %1210 = vmatpush1.msra.mxu0 0.0
    %1211 = vmatprep.subr.mxu0 0.0
    %1212 = vmatpush1.msra.mxu0 0.0
    %1213 = vmatprep.subr.mxu0 0.0
    %1214 = vmatpush1.msra.mxu0 0.0
    %1215 = vmatprep.subr.mxu0 0.0
    %1216 = vmatpush1.msra.mxu0 0.0
    %1217 = vmatprep.subr.mxu0 0.0
    %1218 = vmatpush1.msra.mxu0 0.0
    %1219 = vmatprep.subr.mxu0 0.0
    %1220 = vmatpush1.msra.mxu0 0.0
    %1221 = vmatprep.subr.mxu0 0.0
    %1222 = vmatpush1.msra.mxu0 0.0
    %1223 = vmatprep.subr.mxu0 0.0
    %1224 = vmatpush1.msra.mxu0 0.0
    %1225 = vmatprep.subr.mxu0 0.0
    %1226 = vmatpush1.msra.mxu0 0.0
    %1227 = vmatprep.subr.mxu0 0.0
    %1228 = vmatpush1.msra.mxu0 0.0
    %1229 = vmatprep.subr.mxu0 0.0
    %1230 = vmatpush1.msra.mxu0 0.0
    %1231 = vmatprep.subr.mxu0 0.0
    %1232 = vmatpush1.msra.mxu0 0.0
    %1233 = vmatprep.subr.mxu0 0.0
    %1234 = vmatpush1.msra.mxu0 0.0
    %1235 = vmatprep.subr.mxu0 0.0
    %1236 = vmatpush1.msra.mxu0 0.0
    %1237 = vmatprep.subr.mxu0 0.0
    %1238 = vmatpush1.msra.mxu0 0.0
    %1239 = vmatprep.subr.mxu0 0.0
    %1240 = vmatpush1.msra.mxu0 0.0
    %1241 = vmatprep.subr.mxu0 0.0
    %1242 = vmatpush1.msra.mxu0 0.0
    %1243 = vmatprep.subr.mxu0 0.0
    %1244 = vmatpush1.msra.mxu0 0.0
    %1245 = vmatprep.subr.mxu0 0.0
    %1246 = vmatpush1.msra.mxu0 0.0
    %1247 = vmatprep.subr.mxu0 0.0
    %1248 = vmatpush1.msra.mxu0 0.0
    %1249 = vmatprep.mubr.f32.mxu0 0.0
    %1250 = vmatmul.mubr.f32.gmra.mrb[0].mxu0 %v1183
    %v1251 = vpop.f32.mrb[0].mxu0
    %v1252 = vadd.f32 %v1180, %v1251
    %v1253 = vpop.f32.mrb[0].mxu0
    %1254 = vdwg.mxu0
    %v1255 = vmul.f32 %v1252, 0.909
    %v1256 = vxor.u32 %v1252, 2147483648
    %v1257 = vmul.f32 %v1256, 1.442695
    %v1258 = vpow.pop %v1257
    %v1259 = vadd.f32 %v1258, 1.0
    %v1260 = vrcp.pop %v1259
    %v1261 = vmul.f32 1.0, %v1260
    %v1262 = vmul.f32 %v1255, %v1261
    %v1264 = vsel %vm179, %v1262, 0
    %1266 = vmatprep.subr.mxu0 0.0
    %1267 = vmatpush1.msra.mxu0 %v70
    %1268 = vmatprep.subr.mxu0 0.0
    %1269 = vmatpush1.msra.mxu0 %v71
    %1270 = vmatprep.subr.mxu0 0.0
    %1271 = vmatpush1.msra.mxu0 %v72
    %1272 = vmatprep.subr.mxu0 0.0
    %1273 = vmatpush1.msra.mxu0 %v73
    %1274 = vmatprep.subr.mxu0 0.0
    %1275 = vmatpush1.msra.mxu0 0.0
    %1276 = vmatprep.subr.mxu0 0.0
    %1277 = vmatpush1.msra.mxu0 0.0
    %1278 = vmatprep.subr.mxu0 0.0
    %1279 = vmatpush1.msra.mxu0 0.0
    %1280 = vmatprep.subr.mxu0 0.0
    %1281 = vmatpush1.msra.mxu0 0.0
    %1282 = vmatprep.subr.mxu0 0.0
    %1283 = vmatpush1.msra.mxu0 0.0
    %1284 = vmatprep.subr.mxu0 0.0
    %1285 = vmatpush1.msra.mxu0 0.0
    %1286 = vmatprep.subr.mxu0 0.0
    %1287 = vmatpush1.msra.mxu0 0.0
    %1288 = vmatprep.subr.mxu0 0.0
    %1289 = vmatpush1.msra.mxu0 0.0
    %1290 = vmatprep.subr.mxu0 0.0
    %1291 = vmatpush1.msra.mxu0 0.0
    %1292 = vmatprep.subr.mxu0 0.0
    %1293 = vmatpush1.msra.mxu0 0.0
    %1294 = vmatprep.subr.mxu0 0.0
    %1295 = vmatpush1.msra.mxu0 0.0
    %1296 = vmatprep.subr.mxu0 0.0
    %1297 = vmatpush1.msra.mxu0 0.0
    %1298 = vmatprep.subr.mxu0 0.0
    %1299 = vmatpush1.msra.mxu0 0.0
    %1300 = vmatprep.subr.mxu0 0.0
    %1301 = vmatpush1.msra.mxu0 0.0
    %1302 = vmatprep.subr.mxu0 0.0
    %1303 = vmatpush1.msra.mxu0 0.0
    %1304 = vmatprep.subr.mxu0 0.0
    %1305 = vmatpush1.msra.mxu0 0.0
    %1306 = vmatprep.subr.mxu0 0.0
    %1307 = vmatpush1.msra.mxu0 0.0
    %1308 = vmatprep.subr.mxu0 0.0
    %1309 = vmatpush1.msra.mxu0 0.0
    %1310 = vmatprep.subr.mxu0 0.0
    %1311 = vmatpush1.msra.mxu0 0.0
    %1312 = vmatprep.subr.mxu0 0.0
    %1313 = vmatpush1.msra.mxu0 0.0
    %1314 = vmatprep.subr.mxu0 0.0
    %1315 = vmatpush1.msra.mxu0 0.0
    %1316 = vmatprep.subr.mxu0 0.0
    %1317 = vmatpush1.msra.mxu0 0.0
    %1318 = vmatprep.subr.mxu0 0.0
    %1319 = vmatpush1.msra.mxu0 0.0
    %1320 = vmatprep.subr.mxu0 0.0
    %1321 = vmatpush1.msra.mxu0 0.0
    %1322 = vmatprep.subr.mxu0 0.0
    %1323 = vmatpush1.msra.mxu0 0.0
    %1324 = vmatprep.subr.mxu0 0.0
    %1325 = vmatpush1.msra.mxu0 0.0
    %1326 = vmatprep.subr.mxu0 0.0
    %1327 = vmatpush1.msra.mxu0 0.0
    %1328 = vmatprep.subr.mxu0 0.0
    %1329 = vmatpush1.msra.mxu0 0.0
    %1330 = vmatprep.mubr.f32.mxu0 0.0
    %1331 = vmatmul.mubr.f32.gmra.mrb[0].mxu0 %v1264
    %v1332 = vpop.f32.mrb[0].mxu0
    %v1333 = vadd.f32 %v433, %v1332
    %v1334 = vpop.f32.mrb[0].mxu0
    %1335 = vdwg.mxu0
    %v1336 = vmul.f32 %v1333, 0.909
    %v1337 = vxor.u32 %v1333, 2147483648
    %v1338 = vmul.f32 %v1337, 1.442695
    %v1339 = vpow.pop %v1338
    %v1340 = vadd.f32 %v1339, 1.0
    %v1341 = vrcp.pop %v1340
    %v1342 = vmul.f32 1.0, %v1341
    %v1343 = vmul.f32 %v1336, %v1342
    %v1345 = vsel %vm179, %v1343, 0
    %1347 = vmatprep.subr.mxu0 0.0
    %1348 = vmatpush1.msra.mxu0 %v75
    %1349 = vmatprep.subr.mxu0 0.0
    %1350 = vmatpush1.msra.mxu0 %v76
    %1351 = vmatprep.subr.mxu0 0.0
    %1352 = vmatpush1.msra.mxu0 %v77
    %1353 = vmatprep.subr.mxu0 0.0
    %1354 = vmatpush1.msra.mxu0 %v78
    %1355 = vmatprep.subr.mxu0 0.0
    %1356 = vmatpush1.msra.mxu0 0.0
    %1357 = vmatprep.subr.mxu0 0.0
    %1358 = vmatpush1.msra.mxu0 0.0
    %1359 = vmatprep.subr.mxu0 0.0
    %1360 = vmatpush1.msra.mxu0 0.0
    %1361 = vmatprep.subr.mxu0 0.0
    %1362 = vmatpush1.msra.mxu0 0.0
    %1363 = vmatprep.subr.mxu0 0.0
    %1364 = vmatpush1.msra.mxu0 0.0
    %1365 = vmatprep.subr.mxu0 0.0
    %1366 = vmatpush1.msra.mxu0 0.0
    %1367 = vmatprep.subr.mxu0 0.0
    %1368 = vmatpush1.msra.mxu0 0.0
    %1369 = vmatprep.subr.mxu0 0.0
    %1370 = vmatpush1.msra.mxu0 0.0
    %1371 = vmatprep.subr.mxu0 0.0
    %1372 = vmatpush1.msra.mxu0 0.0
    %1373 = vmatprep.subr.mxu0 0.0
    %1374 = vmatpush1.msra.mxu0 0.0
    %1375 = vmatprep.subr.mxu0 0.0
    %1376 = vmatpush1.msra.mxu0 0.0
    %1377 = vmatprep.subr.mxu0 0.0
    %1378 = vmatpush1.msra.mxu0 0.0
    %1379 = vmatprep.subr.mxu0 0.0
    %1380 = vmatpush1.msra.mxu0 0.0
    %1381 = vmatprep.subr.mxu0 0.0
    %1382 = vmatpush1.msra.mxu0 0.0
    %1383 = vmatprep.subr.mxu0 0.0
    %1384 = vmatpush1.msra.mxu0 0.0
    %1385 = vmatprep.subr.mxu0 0.0
    %1386 = vmatpush1.msra.mxu0 0.0
    %1387 = vmatprep.subr.mxu0 0.0
    %1388 = vmatpush1.msra.mxu0 0.0
    %1389 = vmatprep.subr.mxu0 0.0
    %1390 = vmatpush1.msra.mxu0 0.0
    %1391 = vmatprep.subr.mxu0 0.0
    %1392 = vmatpush1.msra.mxu0 0.0
    %1393 = vmatprep.subr.mxu0 0.0
    %1394 = vmatpush1.msra.mxu0 0.0
    %1395 = vmatprep.subr.mxu0 0.0
    %1396 = vmatpush1.msra.mxu0 0.0
    %1397 = vmatprep.subr.mxu0 0.0
    %1398 = vmatpush1.msra.mxu0 0.0
    %1399 = vmatprep.subr.mxu0 0.0
    %1400 = vmatpush1.msra.mxu0 0.0
    %1401 = vmatprep.subr.mxu0 0.0
    %1402 = vmatpush1.msra.mxu0 0.0
    %1403 = vmatprep.subr.mxu0 0.0
    %1404 = vmatpush1.msra.mxu0 0.0
    %1405 = vmatprep.subr.mxu0 0.0
    %1406 = vmatpush1.msra.mxu0 0.0
    %1407 = vmatprep.subr.mxu0 0.0
    %1408 = vmatpush1.msra.mxu0 0.0
    %1409 = vmatprep.subr.mxu0 0.0
    %1410 = vmatpush1.msra.mxu0 0.0
    %1411 = vmatprep.mubr.f32.mxu0 0.0
    %1412 = vmatmul.mubr.f32.gmra.mrb[0].mxu0 %v1345
    %v1413 = vpop.f32.mrb[0].mxu0
    %v1414 = vadd.f32 %v520, %v1413
    %v1415 = vpop.f32.mrb[0].mxu0
    %1416 = vdwg.mxu0
    %v1417 = vtanh.pop %v1414
    %v1418 = vmul.f32 %v1417, %v1156
    %1420 = vrot.lane.b32.xlu0 %v1418, 112
    %v1421 = vpop.permute.xlu0 %1420
    %v1423 = vadd.f32 %v1418, %v1421
    %1424 = vrot.lane.b32.xlu0 %v1418, 96
    %v1425 = vpop.permute.xlu0 %1424
    %v1427 = vadd.f32 %v1423, %v1425
    %1428 = vrot.lane.b32.xlu0 %v1418, 80
    %v1429 = vpop.permute.xlu0 %1428
    %v1431 = vadd.f32 %v1427, %v1429
    %v1432 = vadd.f32 %v1170, %v1431
    %v1433 = vmul.f32 %v1432, 0.5
    %v1434 = vadd.f32 %v1154, %v1433
    %s1435 = scalar_lea.vmem %s1, 24
    %v1436 = vld [vmem:[%s1435] sm:$0xff]
    %v1437 = vmul.f32 %v1417, %v1436
    %1439 = vrot.lane.b32.xlu0 %v1437, 112
    %v1440 = vpop.permute.xlu0 %1439
    %v1442 = vadd.f32 %v1437, %v1440
    %1443 = vrot.lane.b32.xlu0 %v1437, 96
    %v1444 = vpop.permute.xlu0 %1443
    %v1446 = vadd.f32 %v1442, %v1444
    %1447 = vrot.lane.b32.xlu0 %v1437, 80
    %v1448 = vpop.permute.xlu0 %1447
    %v1450 = vadd.f32 %v1446, %v1448
    %v1451 = vmul.f32 %v1434, 2.0
    %v1452 = vsub.f32 %v1451, %v1173
    %v1453 = vadd.f32 %v1452, %v1450
    %s1454 = scalar_lea.vmem %s2, 4
    %v1455 = vld [vmem:[%s1454] sm:$0x1]
    %v1457 = vlaneseq
    %v1458 = vshrl.u32 %v1457, 7
    %v1459 = vsub.s32 0, %v1458
    %v1460 = vrot.slane %v1455, %v1459
    %v1463 = vsel %vm347, %v1453, 0
    %1465 = vmatprep.subr.mxu0 0.0
    %1466 = vmatpush1.msra.mxu0 %v68
    %1467 = vmatprep.subr.mxu0 0.0
    %1468 = vmatpush1.msra.mxu0 %v69
    %1469 = vmatprep.subr.mxu0 0.0
    %1470 = vmatpush1.msra.mxu0 0.0
    %1471 = vmatprep.subr.mxu0 0.0
    %1472 = vmatpush1.msra.mxu0 0.0
    %1473 = vmatprep.subr.mxu0 0.0
    %1474 = vmatpush1.msra.mxu0 0.0
    %1475 = vmatprep.subr.mxu0 0.0
    %1476 = vmatpush1.msra.mxu0 0.0
    %1477 = vmatprep.subr.mxu0 0.0
    %1478 = vmatpush1.msra.mxu0 0.0
    %1479 = vmatprep.subr.mxu0 0.0
    %1480 = vmatpush1.msra.mxu0 0.0
    %1481 = vmatprep.subr.mxu0 0.0
    %1482 = vmatpush1.msra.mxu0 0.0
    %1483 = vmatprep.subr.mxu0 0.0
    %1484 = vmatpush1.msra.mxu0 0.0
    %1485 = vmatprep.subr.mxu0 0.0
    %1486 = vmatpush1.msra.mxu0 0.0
    %1487 = vmatprep.subr.mxu0 0.0
    %1488 = vmatpush1.msra.mxu0 0.0
    %1489 = vmatprep.subr.mxu0 0.0
    %1490 = vmatpush1.msra.mxu0 0.0
    %1491 = vmatprep.subr.mxu0 0.0
    %1492 = vmatpush1.msra.mxu0 0.0
    %1493 = vmatprep.subr.mxu0 0.0
    %1494 = vmatpush1.msra.mxu0 0.0
    %1495 = vmatprep.subr.mxu0 0.0
    %1496 = vmatpush1.msra.mxu0 0.0
    %1497 = vmatprep.subr.mxu0 0.0
    %1498 = vmatpush1.msra.mxu0 0.0
    %1499 = vmatprep.subr.mxu0 0.0
    %1500 = vmatpush1.msra.mxu0 0.0
    %1501 = vmatprep.subr.mxu0 0.0
    %1502 = vmatpush1.msra.mxu0 0.0
    %1503 = vmatprep.subr.mxu0 0.0
    %1504 = vmatpush1.msra.mxu0 0.0
    %1505 = vmatprep.subr.mxu0 0.0
    %1506 = vmatpush1.msra.mxu0 0.0
    %1507 = vmatprep.subr.mxu0 0.0
    %1508 = vmatpush1.msra.mxu0 0.0
    %1509 = vmatprep.subr.mxu0 0.0
    %1510 = vmatpush1.msra.mxu0 0.0
    %1511 = vmatprep.subr.mxu0 0.0
    %1512 = vmatpush1.msra.mxu0 0.0
    %1513 = vmatprep.subr.mxu0 0.0
    %1514 = vmatpush1.msra.mxu0 0.0
    %1515 = vmatprep.subr.mxu0 0.0
    %1516 = vmatpush1.msra.mxu0 0.0
    %1517 = vmatprep.subr.mxu0 0.0
    %1518 = vmatpush1.msra.mxu0 0.0
    %1519 = vmatprep.subr.mxu0 0.0
    %1520 = vmatpush1.msra.mxu0 0.0
    %1521 = vmatprep.subr.mxu0 0.0
    %1522 = vmatpush1.msra.mxu0 0.0
    %1523 = vmatprep.subr.mxu0 0.0
    %1524 = vmatpush1.msra.mxu0 0.0
    %1525 = vmatprep.subr.mxu0 0.0
    %1526 = vmatpush1.msra.mxu0 0.0
    %1527 = vmatprep.subr.mxu0 0.0
    %1528 = vmatpush1.msra.mxu0 0.0
    %1529 = vmatprep.mubr.f32.mxu0 0.0
    %1530 = vmatmul.mubr.f32.gmra.mrb[0].mxu0 %v1463
    %v1531 = vpop.f32.mrb[0].mxu0
    %v1532 = vadd.f32 %v1460, %v1531
    %v1533 = vpop.f32.mrb[0].mxu0
    %1534 = vdwg.mxu0
    %v1535 = vmul.f32 %v1532, 0.909
    %v1536 = vxor.u32 %v1532, 2147483648
    %v1537 = vmul.f32 %v1536, 1.442695
    %v1538 = vpow.pop %v1537
    %v1539 = vadd.f32 %v1538, 1.0
    %v1540 = vrcp.pop %v1539
    %v1541 = vmul.f32 1.0, %v1540
    %v1542 = vmul.f32 %v1535, %v1541
    %v1544 = vsel %vm179, %v1542, 0
    %1546 = vmatprep.subr.mxu0 0.0
    %1547 = vmatpush1.msra.mxu0 %v70
    %1548 = vmatprep.subr.mxu0 0.0
    %1549 = vmatpush1.msra.mxu0 %v71
    %1550 = vmatprep.subr.mxu0 0.0
    %1551 = vmatpush1.msra.mxu0 %v72
    %1552 = vmatprep.subr.mxu0 0.0
    %1553 = vmatpush1.msra.mxu0 %v73
    %1554 = vmatprep.subr.mxu0 0.0
    %1555 = vmatpush1.msra.mxu0 0.0
    %1556 = vmatprep.subr.mxu0 0.0
    %1557 = vmatpush1.msra.mxu0 0.0
    %1558 = vmatprep.subr.mxu0 0.0
    %1559 = vmatpush1.msra.mxu0 0.0
    %1560 = vmatprep.subr.mxu0 0.0
    %1561 = vmatpush1.msra.mxu0 0.0
    %1562 = vmatprep.subr.mxu0 0.0
    %1563 = vmatpush1.msra.mxu0 0.0
    %1564 = vmatprep.subr.mxu0 0.0
    %1565 = vmatpush1.msra.mxu0 0.0
    %1566 = vmatprep.subr.mxu0 0.0
    %1567 = vmatpush1.msra.mxu0 0.0
    %1568 = vmatprep.subr.mxu0 0.0
    %1569 = vmatpush1.msra.mxu0 0.0
    %1570 = vmatprep.subr.mxu0 0.0
    %1571 = vmatpush1.msra.mxu0 0.0
    %1572 = vmatprep.subr.mxu0 0.0
    %1573 = vmatpush1.msra.mxu0 0.0
    %1574 = vmatprep.subr.mxu0 0.0
    %1575 = vmatpush1.msra.mxu0 0.0
    %1576 = vmatprep.subr.mxu0 0.0
    %1577 = vmatpush1.msra.mxu0 0.0
    %1578 = vmatprep.subr.mxu0 0.0
    %1579 = vmatpush1.msra.mxu0 0.0
    %1580 = vmatprep.subr.mxu0 0.0
    %1581 = vmatpush1.msra.mxu0 0.0
    %1582 = vmatprep.subr.mxu0 0.0
    %1583 = vmatpush1.msra.mxu0 0.0
    %1584 = vmatprep.subr.mxu0 0.0
    %1585 = vmatpush1.msra.mxu0 0.0
    %1586 = vmatprep.subr.mxu0 0.0
    %1587 = vmatpush1.msra.mxu0 0.0
    %1588 = vmatprep.subr.mxu0 0.0
    %1589 = vmatpush1.msra.mxu0 0.0
    %1590 = vmatprep.subr.mxu0 0.0
    %1591 = vmatpush1.msra.mxu0 0.0
    %1592 = vmatprep.subr.mxu0 0.0
    %1593 = vmatpush1.msra.mxu0 0.0
    %1594 = vmatprep.subr.mxu0 0.0
    %1595 = vmatpush1.msra.mxu0 0.0
    %1596 = vmatprep.subr.mxu0 0.0
    %1597 = vmatpush1.msra.mxu0 0.0
    %1598 = vmatprep.subr.mxu0 0.0
    %1599 = vmatpush1.msra.mxu0 0.0
    %1600 = vmatprep.subr.mxu0 0.0
    %1601 = vmatpush1.msra.mxu0 0.0
    %1602 = vmatprep.subr.mxu0 0.0
    %1603 = vmatpush1.msra.mxu0 0.0
    %1604 = vmatprep.subr.mxu0 0.0
    %1605 = vmatpush1.msra.mxu0 0.0
    %1606 = vmatprep.subr.mxu0 0.0
    %1607 = vmatpush1.msra.mxu0 0.0
    %1608 = vmatprep.subr.mxu0 0.0
    %1609 = vmatpush1.msra.mxu0 0.0
    %1610 = vmatprep.mubr.f32.mxu0 0.0
    %1611 = vmatmul.mubr.f32.gmra.mrb[0].mxu0 %v1544
    %v1612 = vpop.f32.mrb[0].mxu0
    %v1613 = vadd.f32 %v433, %v1612
    %v1614 = vpop.f32.mrb[0].mxu0
    %1615 = vdwg.mxu0
    %v1616 = vmul.f32 %v1613, 0.909
    %v1617 = vxor.u32 %v1613, 2147483648
    %v1618 = vmul.f32 %v1617, 1.442695
    %v1619 = vpow.pop %v1618
    %v1620 = vadd.f32 %v1619, 1.0
    %v1621 = vrcp.pop %v1620
    %v1622 = vmul.f32 1.0, %v1621
    %v1623 = vmul.f32 %v1616, %v1622
    %v1625 = vsel %vm179, %v1623, 0
    %1627 = vmatprep.subr.mxu0 0.0
    %1628 = vmatpush1.msra.mxu0 %v75
    %1629 = vmatprep.subr.mxu0 0.0
    %1630 = vmatpush1.msra.mxu0 %v76
    %1631 = vmatprep.subr.mxu0 0.0
    %1632 = vmatpush1.msra.mxu0 %v77
    %1633 = vmatprep.subr.mxu0 0.0
    %1634 = vmatpush1.msra.mxu0 %v78
    %1635 = vmatprep.subr.mxu0 0.0
    %1636 = vmatpush1.msra.mxu0 0.0
    %1637 = vmatprep.subr.mxu0 0.0
    %1638 = vmatpush1.msra.mxu0 0.0
    %1639 = vmatprep.subr.mxu0 0.0
    %1640 = vmatpush1.msra.mxu0 0.0
    %1641 = vmatprep.subr.mxu0 0.0
    %1642 = vmatpush1.msra.mxu0 0.0
    %1643 = vmatprep.subr.mxu0 0.0
    %1644 = vmatpush1.msra.mxu0 0.0
    %1645 = vmatprep.subr.mxu0 0.0
    %1646 = vmatpush1.msra.mxu0 0.0
    %1647 = vmatprep.subr.mxu0 0.0
    %1648 = vmatpush1.msra.mxu0 0.0
    %1649 = vmatprep.subr.mxu0 0.0
    %1650 = vmatpush1.msra.mxu0 0.0
    %1651 = vmatprep.subr.mxu0 0.0
    %1652 = vmatpush1.msra.mxu0 0.0
    %1653 = vmatprep.subr.mxu0 0.0
    %1654 = vmatpush1.msra.mxu0 0.0
    %1655 = vmatprep.subr.mxu0 0.0
    %1656 = vmatpush1.msra.mxu0 0.0
    %1657 = vmatprep.subr.mxu0 0.0
    %1658 = vmatpush1.msra.mxu0 0.0
    %1659 = vmatprep.subr.mxu0 0.0
    %1660 = vmatpush1.msra.mxu0 0.0
    %1661 = vmatprep.subr.mxu0 0.0
    %1662 = vmatpush1.msra.mxu0 0.0
    %1663 = vmatprep.subr.mxu0 0.0
    %1664 = vmatpush1.msra.mxu0 0.0
    %1665 = vmatprep.subr.mxu0 0.0
    %1666 = vmatpush1.msra.mxu0 0.0
    %1667 = vmatprep.subr.mxu0 0.0
    %1668 = vmatpush1.msra.mxu0 0.0
    %1669 = vmatprep.subr.mxu0 0.0
    %1670 = vmatpush1.msra.mxu0 0.0
    %1671 = vmatprep.subr.mxu0 0.0
    %1672 = vmatpush1.msra.mxu0 0.0
    %1673 = vmatprep.subr.mxu0 0.0
    %1674 = vmatpush1.msra.mxu0 0.0
    %1675 = vmatprep.subr.mxu0 0.0
    %1676 = vmatpush1.msra.mxu0 0.0
    %1677 = vmatprep.subr.mxu0 0.0
    %1678 = vmatpush1.msra.mxu0 0.0
    %1679 = vmatprep.subr.mxu0 0.0
    %1680 = vmatpush1.msra.mxu0 0.0
    %1681 = vmatprep.subr.mxu0 0.0
    %1682 = vmatpush1.msra.mxu0 0.0
    %1683 = vmatprep.subr.mxu0 0.0
    %1684 = vmatpush1.msra.mxu0 0.0
    %1685 = vmatprep.subr.mxu0 0.0
    %1686 = vmatpush1.msra.mxu0 0.0
    %1687 = vmatprep.subr.mxu0 0.0
    %1688 = vmatpush1.msra.mxu0 0.0
    %1689 = vmatprep.subr.mxu0 0.0
    %1690 = vmatpush1.msra.mxu0 0.0
    %1691 = vmatprep.mubr.f32.mxu0 0.0
    %1692 = vmatmul.mubr.f32.gmra.mrb[0].mxu0 %v1625
    %v1693 = vpop.f32.mrb[0].mxu0
    %v1694 = vadd.f32 %v520, %v1693
    %v1695 = vpop.f32.mrb[0].mxu0
    %1696 = vdwg.mxu0
    %v1697 = vtanh.pop %v1694
    %v1698 = vmul.f32 %v1697, %v1436
    %1700 = vrot.lane.b32.xlu0 %v1698, 112
    %v1701 = vpop.permute.xlu0 %1700
    %v1703 = vadd.f32 %v1698, %v1701
    %1704 = vrot.lane.b32.xlu0 %v1698, 96
    %v1705 = vpop.permute.xlu0 %1704
    %v1707 = vadd.f32 %v1703, %v1705
    %1708 = vrot.lane.b32.xlu0 %v1698, 80
    %v1709 = vpop.permute.xlu0 %1708
    %v1711 = vadd.f32 %v1707, %v1709
    %v1712 = vadd.f32 %v1450, %v1711
    %v1713 = vmul.f32 %v1712, 0.5
    %v1714 = vadd.f32 %v1434, %v1713
    %s1715 = scalar_lea.vmem %s1, 32
    %v1716 = vld [vmem:[%s1715] sm:$0xff]
    %v1717 = vmul.f32 %v1697, %v1716
    %1719 = vrot.lane.b32.xlu0 %v1717, 112
    %v1720 = vpop.permute.xlu0 %1719
    %v1722 = vadd.f32 %v1717, %v1720
    %1723 = vrot.lane.b32.xlu0 %v1717, 96
    %v1724 = vpop.permute.xlu0 %1723
    %v1726 = vadd.f32 %v1722, %v1724
    %1727 = vrot.lane.b32.xlu0 %v1717, 80
    %v1728 = vpop.permute.xlu0 %1727
    %v1730 = vadd.f32 %v1726, %v1728
    %v1731 = vmul.f32 %v1714, 2.0
    %v1732 = vsub.f32 %v1731, %v1453
    %v1733 = vadd.f32 %v1732, %v1730
    %s1734 = scalar_lea.vmem %s2, 5
    %v1735 = vld [vmem:[%s1734] sm:$0x1]
    %v1737 = vlaneseq
    %v1738 = vshrl.u32 %v1737, 7
    %v1739 = vsub.s32 0, %v1738
    %v1740 = vrot.slane %v1735, %v1739
    %v1743 = vsel %vm347, %v1733, 0
    %1745 = vmatprep.subr.mxu0 0.0
    %1746 = vmatpush1.msra.mxu0 %v68
    %1747 = vmatprep.subr.mxu0 0.0
    %1748 = vmatpush1.msra.mxu0 %v69
    %1749 = vmatprep.subr.mxu0 0.0
    %1750 = vmatpush1.msra.mxu0 0.0
    %1751 = vmatprep.subr.mxu0 0.0
    %1752 = vmatpush1.msra.mxu0 0.0
    %1753 = vmatprep.subr.mxu0 0.0
    %1754 = vmatpush1.msra.mxu0 0.0
    %1755 = vmatprep.subr.mxu0 0.0
    %1756 = vmatpush1.msra.mxu0 0.0
    %1757 = vmatprep.subr.mxu0 0.0
    %1758 = vmatpush1.msra.mxu0 0.0
    %1759 = vmatprep.subr.mxu0 0.0
    %1760 = vmatpush1.msra.mxu0 0.0
    %1761 = vmatprep.subr.mxu0 0.0
    %1762 = vmatpush1.msra.mxu0 0.0
    %1763 = vmatprep.subr.mxu0 0.0
    %1764 = vmatpush1.msra.mxu0 0.0
    %1765 = vmatprep.subr.mxu0 0.0
    %1766 = vmatpush1.msra.mxu0 0.0
    %1767 = vmatprep.subr.mxu0 0.0
    %1768 = vmatpush1.msra.mxu0 0.0
    %1769 = vmatprep.subr.mxu0 0.0
    %1770 = vmatpush1.msra.mxu0 0.0
    %1771 = vmatprep.subr.mxu0 0.0
    %1772 = vmatpush1.msra.mxu0 0.0
    %1773 = vmatprep.subr.mxu0 0.0
    %1774 = vmatpush1.msra.mxu0 0.0
    %1775 = vmatprep.subr.mxu0 0.0
    %1776 = vmatpush1.msra.mxu0 0.0
    %1777 = vmatprep.subr.mxu0 0.0
    %1778 = vmatpush1.msra.mxu0 0.0
    %1779 = vmatprep.subr.mxu0 0.0
    %1780 = vmatpush1.msra.mxu0 0.0
    %1781 = vmatprep.subr.mxu0 0.0
    %1782 = vmatpush1.msra.mxu0 0.0
    %1783 = vmatprep.subr.mxu0 0.0
    %1784 = vmatpush1.msra.mxu0 0.0
    %1785 = vmatprep.subr.mxu0 0.0
    %1786 = vmatpush1.msra.mxu0 0.0
    %1787 = vmatprep.subr.mxu0 0.0
    %1788 = vmatpush1.msra.mxu0 0.0
    %1789 = vmatprep.subr.mxu0 0.0
    %1790 = vmatpush1.msra.mxu0 0.0
    %1791 = vmatprep.subr.mxu0 0.0
    %1792 = vmatpush1.msra.mxu0 0.0
    %1793 = vmatprep.subr.mxu0 0.0
    %1794 = vmatpush1.msra.mxu0 0.0
    %1795 = vmatprep.subr.mxu0 0.0
    %1796 = vmatpush1.msra.mxu0 0.0
    %1797 = vmatprep.subr.mxu0 0.0
    %1798 = vmatpush1.msra.mxu0 0.0
    %1799 = vmatprep.subr.mxu0 0.0
    %1800 = vmatpush1.msra.mxu0 0.0
    %1801 = vmatprep.subr.mxu0 0.0
    %1802 = vmatpush1.msra.mxu0 0.0
    %1803 = vmatprep.subr.mxu0 0.0
    %1804 = vmatpush1.msra.mxu0 0.0
    %1805 = vmatprep.subr.mxu0 0.0
    %1806 = vmatpush1.msra.mxu0 0.0
    %1807 = vmatprep.subr.mxu0 0.0
    %1808 = vmatpush1.msra.mxu0 0.0
    %1809 = vmatprep.mubr.f32.mxu0 0.0
    %1810 = vmatmul.mubr.f32.gmra.mrb[0].mxu0 %v1743
    %v1811 = vpop.f32.mrb[0].mxu0
    %v1812 = vadd.f32 %v1740, %v1811
    %v1813 = vpop.f32.mrb[0].mxu0
    %1814 = vdwg.mxu0
    %v1815 = vmul.f32 %v1812, 0.909
    %v1816 = vxor.u32 %v1812, 2147483648
    %v1817 = vmul.f32 %v1816, 1.442695
    %v1818 = vpow.pop %v1817
    %v1819 = vadd.f32 %v1818, 1.0
    %v1820 = vrcp.pop %v1819
    %v1821 = vmul.f32 1.0, %v1820
    %v1822 = vmul.f32 %v1815, %v1821
    %v1824 = vsel %vm179, %v1822, 0
    %1826 = vmatprep.subr.mxu0 0.0
    %1827 = vmatpush1.msra.mxu0 %v70
    %1828 = vmatprep.subr.mxu0 0.0
    %1829 = vmatpush1.msra.mxu0 %v71
    %1830 = vmatprep.subr.mxu0 0.0
    %1831 = vmatpush1.msra.mxu0 %v72
    %1832 = vmatprep.subr.mxu0 0.0
    %1833 = vmatpush1.msra.mxu0 %v73
    %1834 = vmatprep.subr.mxu0 0.0
    %1835 = vmatpush1.msra.mxu0 0.0
    %1836 = vmatprep.subr.mxu0 0.0
    %1837 = vmatpush1.msra.mxu0 0.0
    %1838 = vmatprep.subr.mxu0 0.0
    %1839 = vmatpush1.msra.mxu0 0.0
    %1840 = vmatprep.subr.mxu0 0.0
    %1841 = vmatpush1.msra.mxu0 0.0
    %1842 = vmatprep.subr.mxu0 0.0
    %1843 = vmatpush1.msra.mxu0 0.0
    %1844 = vmatprep.subr.mxu0 0.0
    %1845 = vmatpush1.msra.mxu0 0.0
    %1846 = vmatprep.subr.mxu0 0.0
    %1847 = vmatpush1.msra.mxu0 0.0
    %1848 = vmatprep.subr.mxu0 0.0
    %1849 = vmatpush1.msra.mxu0 0.0
    %1850 = vmatprep.subr.mxu0 0.0
    %1851 = vmatpush1.msra.mxu0 0.0
    %1852 = vmatprep.subr.mxu0 0.0
    %1853 = vmatpush1.msra.mxu0 0.0
    %1854 = vmatprep.subr.mxu0 0.0
    %1855 = vmatpush1.msra.mxu0 0.0
    %1856 = vmatprep.subr.mxu0 0.0
    %1857 = vmatpush1.msra.mxu0 0.0
    %1858 = vmatprep.subr.mxu0 0.0
    %1859 = vmatpush1.msra.mxu0 0.0
    %1860 = vmatprep.subr.mxu0 0.0
    %1861 = vmatpush1.msra.mxu0 0.0
    %1862 = vmatprep.subr.mxu0 0.0
    %1863 = vmatpush1.msra.mxu0 0.0
    %1864 = vmatprep.subr.mxu0 0.0
    %1865 = vmatpush1.msra.mxu0 0.0
    %1866 = vmatprep.subr.mxu0 0.0
    %1867 = vmatpush1.msra.mxu0 0.0
    %1868 = vmatprep.subr.mxu0 0.0
    %1869 = vmatpush1.msra.mxu0 0.0
    %1870 = vmatprep.subr.mxu0 0.0
    %1871 = vmatpush1.msra.mxu0 0.0
    %1872 = vmatprep.subr.mxu0 0.0
    %1873 = vmatpush1.msra.mxu0 0.0
    %1874 = vmatprep.subr.mxu0 0.0
    %1875 = vmatpush1.msra.mxu0 0.0
    %1876 = vmatprep.subr.mxu0 0.0
    %1877 = vmatpush1.msra.mxu0 0.0
    %1878 = vmatprep.subr.mxu0 0.0
    %1879 = vmatpush1.msra.mxu0 0.0
    %1880 = vmatprep.subr.mxu0 0.0
    %1881 = vmatpush1.msra.mxu0 0.0
    %1882 = vmatprep.subr.mxu0 0.0
    %1883 = vmatpush1.msra.mxu0 0.0
    %1884 = vmatprep.subr.mxu0 0.0
    %1885 = vmatpush1.msra.mxu0 0.0
    %1886 = vmatprep.subr.mxu0 0.0
    %1887 = vmatpush1.msra.mxu0 0.0
    %1888 = vmatprep.subr.mxu0 0.0
    %1889 = vmatpush1.msra.mxu0 0.0
    %1890 = vmatprep.mubr.f32.mxu0 0.0
    %1891 = vmatmul.mubr.f32.gmra.mrb[0].mxu0 %v1824
    %v1892 = vpop.f32.mrb[0].mxu0
    %v1893 = vadd.f32 %v433, %v1892
    %v1894 = vpop.f32.mrb[0].mxu0
    %1895 = vdwg.mxu0
    %v1896 = vmul.f32 %v1893, 0.909
    %v1897 = vxor.u32 %v1893, 2147483648
    %v1898 = vmul.f32 %v1897, 1.442695
    %v1899 = vpow.pop %v1898
    %v1900 = vadd.f32 %v1899, 1.0
    %v1901 = vrcp.pop %v1900
    %v1902 = vmul.f32 1.0, %v1901
    %v1903 = vmul.f32 %v1896, %v1902
    %v1905 = vsel %vm179, %v1903, 0
    %1907 = vmatprep.subr.mxu0 0.0
    %1908 = vmatpush1.msra.mxu0 %v75
    %1909 = vmatprep.subr.mxu0 0.0
    %1910 = vmatpush1.msra.mxu0 %v76
    %1911 = vmatprep.subr.mxu0 0.0
    %1912 = vmatpush1.msra.mxu0 %v77
    %1913 = vmatprep.subr.mxu0 0.0
    %1914 = vmatpush1.msra.mxu0 %v78
    %1915 = vmatprep.subr.mxu0 0.0
    %1916 = vmatpush1.msra.mxu0 0.0
    %1917 = vmatprep.subr.mxu0 0.0
    %1918 = vmatpush1.msra.mxu0 0.0
    %1919 = vmatprep.subr.mxu0 0.0
    %1920 = vmatpush1.msra.mxu0 0.0
    %1921 = vmatprep.subr.mxu0 0.0
    %1922 = vmatpush1.msra.mxu0 0.0
    %1923 = vmatprep.subr.mxu0 0.0
    %1924 = vmatpush1.msra.mxu0 0.0
    %1925 = vmatprep.subr.mxu0 0.0
    %1926 = vmatpush1.msra.mxu0 0.0
    %1927 = vmatprep.subr.mxu0 0.0
    %1928 = vmatpush1.msra.mxu0 0.0
    %1929 = vmatprep.subr.mxu0 0.0
    %1930 = vmatpush1.msra.mxu0 0.0
    %1931 = vmatprep.subr.mxu0 0.0
    %1932 = vmatpush1.msra.mxu0 0.0
    %1933 = vmatprep.subr.mxu0 0.0
    %1934 = vmatpush1.msra.mxu0 0.0
    %1935 = vmatprep.subr.mxu0 0.0
    %1936 = vmatpush1.msra.mxu0 0.0
    %1937 = vmatprep.subr.mxu0 0.0
    %1938 = vmatpush1.msra.mxu0 0.0
    %1939 = vmatprep.subr.mxu0 0.0
    %1940 = vmatpush1.msra.mxu0 0.0
    %1941 = vmatprep.subr.mxu0 0.0
    %1942 = vmatpush1.msra.mxu0 0.0
    %1943 = vmatprep.subr.mxu0 0.0
    %1944 = vmatpush1.msra.mxu0 0.0
    %1945 = vmatprep.subr.mxu0 0.0
    %1946 = vmatpush1.msra.mxu0 0.0
    %1947 = vmatprep.subr.mxu0 0.0
    %1948 = vmatpush1.msra.mxu0 0.0
    %1949 = vmatprep.subr.mxu0 0.0
    %1950 = vmatpush1.msra.mxu0 0.0
    %1951 = vmatprep.subr.mxu0 0.0
    %1952 = vmatpush1.msra.mxu0 0.0
    %1953 = vmatprep.subr.mxu0 0.0
    %1954 = vmatpush1.msra.mxu0 0.0
    %1955 = vmatprep.subr.mxu0 0.0
    %1956 = vmatpush1.msra.mxu0 0.0
    %1957 = vmatprep.subr.mxu0 0.0
    %1958 = vmatpush1.msra.mxu0 0.0
    %1959 = vmatprep.subr.mxu0 0.0
    %1960 = vmatpush1.msra.mxu0 0.0
    %1961 = vmatprep.subr.mxu0 0.0
    %1962 = vmatpush1.msra.mxu0 0.0
    %1963 = vmatprep.subr.mxu0 0.0
    %1964 = vmatpush1.msra.mxu0 0.0
    %1965 = vmatprep.subr.mxu0 0.0
    %1966 = vmatpush1.msra.mxu0 0.0
    %1967 = vmatprep.subr.mxu0 0.0
    %1968 = vmatpush1.msra.mxu0 0.0
    %1969 = vmatprep.subr.mxu0 0.0
    %1970 = vmatpush1.msra.mxu0 0.0
    %1971 = vmatprep.mubr.f32.mxu0 0.0
    %1972 = vmatmul.mubr.f32.gmra.mrb[0].mxu0 %v1905
    %v1973 = vpop.f32.mrb[0].mxu0
    %v1974 = vadd.f32 %v520, %v1973
    %v1975 = vpop.f32.mrb[0].mxu0
    %1976 = vdwg.mxu0
    %v1977 = vtanh.pop %v1974
    %v1978 = vmul.f32 %v1977, %v1716
    %1980 = vrot.lane.b32.xlu0 %v1978, 112
    %v1981 = vpop.permute.xlu0 %1980
    %v1983 = vadd.f32 %v1978, %v1981
    %1984 = vrot.lane.b32.xlu0 %v1978, 96
    %v1985 = vpop.permute.xlu0 %1984
    %v1987 = vadd.f32 %v1983, %v1985
    %1988 = vrot.lane.b32.xlu0 %v1978, 80
    %v1989 = vpop.permute.xlu0 %1988
    %v1991 = vadd.f32 %v1987, %v1989
    %v1992 = vadd.f32 %v1730, %v1991
    %v1993 = vmul.f32 %v1992, 0.5
    %v1994 = vadd.f32 %v1714, %v1993
    %s1995 = scalar_lea.vmem %s1, 40
    %v1996 = vld [vmem:[%s1995] sm:$0xff]
    %v1997 = vmul.f32 %v1977, %v1996
    %1999 = vrot.lane.b32.xlu0 %v1997, 112
    %v2000 = vpop.permute.xlu0 %1999
    %v2002 = vadd.f32 %v1997, %v2000
    %2003 = vrot.lane.b32.xlu0 %v1997, 96
    %v2004 = vpop.permute.xlu0 %2003
    %v2006 = vadd.f32 %v2002, %v2004
    %2007 = vrot.lane.b32.xlu0 %v1997, 80
    %v2008 = vpop.permute.xlu0 %2007
    %v2010 = vadd.f32 %v2006, %v2008
    %v2011 = vmul.f32 %v1994, 2.0
    %v2012 = vsub.f32 %v2011, %v1733
    %v2013 = vadd.f32 %v2012, %v2010
    %s2014 = scalar_lea.vmem %s2, 6
    %v2015 = vld [vmem:[%s2014] sm:$0x1]
    %v2017 = vlaneseq
    %v2018 = vshrl.u32 %v2017, 7
    %v2019 = vsub.s32 0, %v2018
    %v2020 = vrot.slane %v2015, %v2019
    %v2023 = vsel %vm347, %v2013, 0
    %2025 = vmatprep.subr.mxu0 0.0
    %2026 = vmatpush1.msra.mxu0 %v68
    %2027 = vmatprep.subr.mxu0 0.0
    %2028 = vmatpush1.msra.mxu0 %v69
    %2029 = vmatprep.subr.mxu0 0.0
    %2030 = vmatpush1.msra.mxu0 0.0
    %2031 = vmatprep.subr.mxu0 0.0
    %2032 = vmatpush1.msra.mxu0 0.0
    %2033 = vmatprep.subr.mxu0 0.0
    %2034 = vmatpush1.msra.mxu0 0.0
    %2035 = vmatprep.subr.mxu0 0.0
    %2036 = vmatpush1.msra.mxu0 0.0
    %2037 = vmatprep.subr.mxu0 0.0
    %2038 = vmatpush1.msra.mxu0 0.0
    %2039 = vmatprep.subr.mxu0 0.0
    %2040 = vmatpush1.msra.mxu0 0.0
    %2041 = vmatprep.subr.mxu0 0.0
    %2042 = vmatpush1.msra.mxu0 0.0
    %2043 = vmatprep.subr.mxu0 0.0
    %2044 = vmatpush1.msra.mxu0 0.0
    %2045 = vmatprep.subr.mxu0 0.0
    %2046 = vmatpush1.msra.mxu0 0.0
    %2047 = vmatprep.subr.mxu0 0.0
    %2048 = vmatpush1.msra.mxu0 0.0
    %2049 = vmatprep.subr.mxu0 0.0
    %2050 = vmatpush1.msra.mxu0 0.0
    %2051 = vmatprep.subr.mxu0 0.0
    %2052 = vmatpush1.msra.mxu0 0.0
    %2053 = vmatprep.subr.mxu0 0.0
    %2054 = vmatpush1.msra.mxu0 0.0
    %2055 = vmatprep.subr.mxu0 0.0
    %2056 = vmatpush1.msra.mxu0 0.0
    %2057 = vmatprep.subr.mxu0 0.0
    %2058 = vmatpush1.msra.mxu0 0.0
    %2059 = vmatprep.subr.mxu0 0.0
    %2060 = vmatpush1.msra.mxu0 0.0
    %2061 = vmatprep.subr.mxu0 0.0
    %2062 = vmatpush1.msra.mxu0 0.0
    %2063 = vmatprep.subr.mxu0 0.0
    %2064 = vmatpush1.msra.mxu0 0.0
    %2065 = vmatprep.subr.mxu0 0.0
    %2066 = vmatpush1.msra.mxu0 0.0
    %2067 = vmatprep.subr.mxu0 0.0
    %2068 = vmatpush1.msra.mxu0 0.0
    %2069 = vmatprep.subr.mxu0 0.0
    %2070 = vmatpush1.msra.mxu0 0.0
    %2071 = vmatprep.subr.mxu0 0.0
    %2072 = vmatpush1.msra.mxu0 0.0
    %2073 = vmatprep.subr.mxu0 0.0
    %2074 = vmatpush1.msra.mxu0 0.0
    %2075 = vmatprep.subr.mxu0 0.0
    %2076 = vmatpush1.msra.mxu0 0.0
    %2077 = vmatprep.subr.mxu0 0.0
    %2078 = vmatpush1.msra.mxu0 0.0
    %2079 = vmatprep.subr.mxu0 0.0
    %2080 = vmatpush1.msra.mxu0 0.0
    %2081 = vmatprep.subr.mxu0 0.0
    %2082 = vmatpush1.msra.mxu0 0.0
    %2083 = vmatprep.subr.mxu0 0.0
    %2084 = vmatpush1.msra.mxu0 0.0
    %2085 = vmatprep.subr.mxu0 0.0
    %2086 = vmatpush1.msra.mxu0 0.0
    %2087 = vmatprep.subr.mxu0 0.0
    %2088 = vmatpush1.msra.mxu0 0.0
    %2089 = vmatprep.mubr.f32.mxu0 0.0
    %2090 = vmatmul.mubr.f32.gmra.mrb[0].mxu0 %v2023
    %v2091 = vpop.f32.mrb[0].mxu0
    %v2092 = vadd.f32 %v2020, %v2091
    %v2093 = vpop.f32.mrb[0].mxu0
    %2094 = vdwg.mxu0
    %v2095 = vmul.f32 %v2092, 0.909
    %v2096 = vxor.u32 %v2092, 2147483648
    %v2097 = vmul.f32 %v2096, 1.442695
    %v2098 = vpow.pop %v2097
    %v2099 = vadd.f32 %v2098, 1.0
    %v2100 = vrcp.pop %v2099
    %v2101 = vmul.f32 1.0, %v2100
    %v2102 = vmul.f32 %v2095, %v2101
    %v2104 = vsel %vm179, %v2102, 0
    %2106 = vmatprep.subr.mxu0 0.0
    %2107 = vmatpush1.msra.mxu0 %v70
    %2108 = vmatprep.subr.mxu0 0.0
    %2109 = vmatpush1.msra.mxu0 %v71
    %2110 = vmatprep.subr.mxu0 0.0
    %2111 = vmatpush1.msra.mxu0 %v72
    %2112 = vmatprep.subr.mxu0 0.0
    %2113 = vmatpush1.msra.mxu0 %v73
    %2114 = vmatprep.subr.mxu0 0.0
    %2115 = vmatpush1.msra.mxu0 0.0
    %2116 = vmatprep.subr.mxu0 0.0
    %2117 = vmatpush1.msra.mxu0 0.0
    %2118 = vmatprep.subr.mxu0 0.0
    %2119 = vmatpush1.msra.mxu0 0.0
    %2120 = vmatprep.subr.mxu0 0.0
    %2121 = vmatpush1.msra.mxu0 0.0
    %2122 = vmatprep.subr.mxu0 0.0
    %2123 = vmatpush1.msra.mxu0 0.0
    %2124 = vmatprep.subr.mxu0 0.0
    %2125 = vmatpush1.msra.mxu0 0.0
    %2126 = vmatprep.subr.mxu0 0.0
    %2127 = vmatpush1.msra.mxu0 0.0
    %2128 = vmatprep.subr.mxu0 0.0
    %2129 = vmatpush1.msra.mxu0 0.0
    %2130 = vmatprep.subr.mxu0 0.0
    %2131 = vmatpush1.msra.mxu0 0.0
    %2132 = vmatprep.subr.mxu0 0.0
    %2133 = vmatpush1.msra.mxu0 0.0
    %2134 = vmatprep.subr.mxu0 0.0
    %2135 = vmatpush1.msra.mxu0 0.0
    %2136 = vmatprep.subr.mxu0 0.0
    %2137 = vmatpush1.msra.mxu0 0.0
    %2138 = vmatprep.subr.mxu0 0.0
    %2139 = vmatpush1.msra.mxu0 0.0
    %2140 = vmatprep.subr.mxu0 0.0
    %2141 = vmatpush1.msra.mxu0 0.0
    %2142 = vmatprep.subr.mxu0 0.0
    %2143 = vmatpush1.msra.mxu0 0.0
    %2144 = vmatprep.subr.mxu0 0.0
    %2145 = vmatpush1.msra.mxu0 0.0
    %2146 = vmatprep.subr.mxu0 0.0
    %2147 = vmatpush1.msra.mxu0 0.0
    %2148 = vmatprep.subr.mxu0 0.0
    %2149 = vmatpush1.msra.mxu0 0.0
    %2150 = vmatprep.subr.mxu0 0.0
    %2151 = vmatpush1.msra.mxu0 0.0
    %2152 = vmatprep.subr.mxu0 0.0
    %2153 = vmatpush1.msra.mxu0 0.0
    %2154 = vmatprep.subr.mxu0 0.0
    %2155 = vmatpush1.msra.mxu0 0.0
    %2156 = vmatprep.subr.mxu0 0.0
    %2157 = vmatpush1.msra.mxu0 0.0
    %2158 = vmatprep.subr.mxu0 0.0
    %2159 = vmatpush1.msra.mxu0 0.0
    %2160 = vmatprep.subr.mxu0 0.0
    %2161 = vmatpush1.msra.mxu0 0.0
    %2162 = vmatprep.subr.mxu0 0.0
    %2163 = vmatpush1.msra.mxu0 0.0
    %2164 = vmatprep.subr.mxu0 0.0
    %2165 = vmatpush1.msra.mxu0 0.0
    %2166 = vmatprep.subr.mxu0 0.0
    %2167 = vmatpush1.msra.mxu0 0.0
    %2168 = vmatprep.subr.mxu0 0.0
    %2169 = vmatpush1.msra.mxu0 0.0
    %2170 = vmatprep.mubr.f32.mxu0 0.0
    %2171 = vmatmul.mubr.f32.gmra.mrb[0].mxu0 %v2104
    %v2172 = vpop.f32.mrb[0].mxu0
    %v2173 = vadd.f32 %v433, %v2172
    %v2174 = vpop.f32.mrb[0].mxu0
    %2175 = vdwg.mxu0
    %v2176 = vmul.f32 %v2173, 0.909
    %v2177 = vxor.u32 %v2173, 2147483648
    %v2178 = vmul.f32 %v2177, 1.442695
    %v2179 = vpow.pop %v2178
    %v2180 = vadd.f32 %v2179, 1.0
    %v2181 = vrcp.pop %v2180
    %v2182 = vmul.f32 1.0, %v2181
    %v2183 = vmul.f32 %v2176, %v2182
    %v2185 = vsel %vm179, %v2183, 0
    %2187 = vmatprep.subr.mxu0 0.0
    %2188 = vmatpush1.msra.mxu0 %v75
    %2189 = vmatprep.subr.mxu0 0.0
    %2190 = vmatpush1.msra.mxu0 %v76
    %2191 = vmatprep.subr.mxu0 0.0
    %2192 = vmatpush1.msra.mxu0 %v77
    %2193 = vmatprep.subr.mxu0 0.0
    %2194 = vmatpush1.msra.mxu0 %v78
    %2195 = vmatprep.subr.mxu0 0.0
    %2196 = vmatpush1.msra.mxu0 0.0
    %2197 = vmatprep.subr.mxu0 0.0
    %2198 = vmatpush1.msra.mxu0 0.0
    %2199 = vmatprep.subr.mxu0 0.0
    %2200 = vmatpush1.msra.mxu0 0.0
    %2201 = vmatprep.subr.mxu0 0.0
    %2202 = vmatpush1.msra.mxu0 0.0
    %2203 = vmatprep.subr.mxu0 0.0
    %2204 = vmatpush1.msra.mxu0 0.0
    %2205 = vmatprep.subr.mxu0 0.0
    %2206 = vmatpush1.msra.mxu0 0.0
    %2207 = vmatprep.subr.mxu0 0.0
    %2208 = vmatpush1.msra.mxu0 0.0
    %2209 = vmatprep.subr.mxu0 0.0
    %2210 = vmatpush1.msra.mxu0 0.0
    %2211 = vmatprep.subr.mxu0 0.0
    %2212 = vmatpush1.msra.mxu0 0.0
    %2213 = vmatprep.subr.mxu0 0.0
    %2214 = vmatpush1.msra.mxu0 0.0
    %2215 = vmatprep.subr.mxu0 0.0
    %2216 = vmatpush1.msra.mxu0 0.0
    %2217 = vmatprep.subr.mxu0 0.0
    %2218 = vmatpush1.msra.mxu0 0.0
    %2219 = vmatprep.subr.mxu0 0.0
    %2220 = vmatpush1.msra.mxu0 0.0
    %2221 = vmatprep.subr.mxu0 0.0
    %2222 = vmatpush1.msra.mxu0 0.0
    %2223 = vmatprep.subr.mxu0 0.0
    %2224 = vmatpush1.msra.mxu0 0.0
    %2225 = vmatprep.subr.mxu0 0.0
    %2226 = vmatpush1.msra.mxu0 0.0
    %2227 = vmatprep.subr.mxu0 0.0
    %2228 = vmatpush1.msra.mxu0 0.0
    %2229 = vmatprep.subr.mxu0 0.0
    %2230 = vmatpush1.msra.mxu0 0.0
    %2231 = vmatprep.subr.mxu0 0.0
    %2232 = vmatpush1.msra.mxu0 0.0
    %2233 = vmatprep.subr.mxu0 0.0
    %2234 = vmatpush1.msra.mxu0 0.0
    %2235 = vmatprep.subr.mxu0 0.0
    %2236 = vmatpush1.msra.mxu0 0.0
    %2237 = vmatprep.subr.mxu0 0.0
    %2238 = vmatpush1.msra.mxu0 0.0
    %2239 = vmatprep.subr.mxu0 0.0
    %2240 = vmatpush1.msra.mxu0 0.0
    %2241 = vmatprep.subr.mxu0 0.0
    %2242 = vmatpush1.msra.mxu0 0.0
    %2243 = vmatprep.subr.mxu0 0.0
    %2244 = vmatpush1.msra.mxu0 0.0
    %2245 = vmatprep.subr.mxu0 0.0
    %2246 = vmatpush1.msra.mxu0 0.0
    %2247 = vmatprep.subr.mxu0 0.0
    %2248 = vmatpush1.msra.mxu0 0.0
    %2249 = vmatprep.subr.mxu0 0.0
    %2250 = vmatpush1.msra.mxu0 0.0
    %2251 = vmatprep.mubr.f32.mxu0 0.0
    %2252 = vmatmul.mubr.f32.gmra.mrb[0].mxu0 %v2185
    %v2253 = vpop.f32.mrb[0].mxu0
    %v2254 = vadd.f32 %v520, %v2253
    %v2255 = vpop.f32.mrb[0].mxu0
    %2256 = vdwg.mxu0
    %v2257 = vtanh.pop %v2254
    %v2258 = vmul.f32 %v2257, %v1996
    %2260 = vrot.lane.b32.xlu0 %v2258, 112
    %v2261 = vpop.permute.xlu0 %2260
    %v2263 = vadd.f32 %v2258, %v2261
    %2264 = vrot.lane.b32.xlu0 %v2258, 96
    %v2265 = vpop.permute.xlu0 %2264
    %v2267 = vadd.f32 %v2263, %v2265
    %2268 = vrot.lane.b32.xlu0 %v2258, 80
    %v2269 = vpop.permute.xlu0 %2268
    %v2271 = vadd.f32 %v2267, %v2269
    %v2272 = vadd.f32 %v2010, %v2271
    %v2273 = vmul.f32 %v2272, 0.5
    %v2274 = vadd.f32 %v1994, %v2273
    %s2275 = scalar_lea.vmem %s1, 48
    %v2276 = vld [vmem:[%s2275] sm:$0xff]
    %v2277 = vmul.f32 %v2257, %v2276
    %2279 = vrot.lane.b32.xlu0 %v2277, 112
    %v2280 = vpop.permute.xlu0 %2279
    %v2282 = vadd.f32 %v2277, %v2280
    %2283 = vrot.lane.b32.xlu0 %v2277, 96
    %v2284 = vpop.permute.xlu0 %2283
    %v2286 = vadd.f32 %v2282, %v2284
    %2287 = vrot.lane.b32.xlu0 %v2277, 80
    %v2288 = vpop.permute.xlu0 %2287
    %v2290 = vadd.f32 %v2286, %v2288
    %v2291 = vmul.f32 %v2274, 2.0
    %v2292 = vsub.f32 %v2291, %v2013
    %v2293 = vadd.f32 %v2292, %v2290
    %s2294 = scalar_lea.vmem %s2, 7
    %v2295 = vld [vmem:[%s2294] sm:$0x1]
    %v2297 = vlaneseq
    %v2298 = vshrl.u32 %v2297, 7
    %v2299 = vsub.s32 0, %v2298
    %v2300 = vrot.slane %v2295, %v2299
    %v2303 = vsel %vm347, %v2293, 0
    %2305 = vmatprep.subr.mxu0 0.0
    %2306 = vmatpush1.msra.mxu0 %v68
    %2307 = vmatprep.subr.mxu0 0.0
    %2308 = vmatpush1.msra.mxu0 %v69
    %2309 = vmatprep.subr.mxu0 0.0
    %2310 = vmatpush1.msra.mxu0 0.0
    %2311 = vmatprep.subr.mxu0 0.0
    %2312 = vmatpush1.msra.mxu0 0.0
    %2313 = vmatprep.subr.mxu0 0.0
    %2314 = vmatpush1.msra.mxu0 0.0
    %2315 = vmatprep.subr.mxu0 0.0
    %2316 = vmatpush1.msra.mxu0 0.0
    %2317 = vmatprep.subr.mxu0 0.0
    %2318 = vmatpush1.msra.mxu0 0.0
    %2319 = vmatprep.subr.mxu0 0.0
    %2320 = vmatpush1.msra.mxu0 0.0
    %2321 = vmatprep.subr.mxu0 0.0
    %2322 = vmatpush1.msra.mxu0 0.0
    %2323 = vmatprep.subr.mxu0 0.0
    %2324 = vmatpush1.msra.mxu0 0.0
    %2325 = vmatprep.subr.mxu0 0.0
    %2326 = vmatpush1.msra.mxu0 0.0
    %2327 = vmatprep.subr.mxu0 0.0
    %2328 = vmatpush1.msra.mxu0 0.0
    %2329 = vmatprep.subr.mxu0 0.0
    %2330 = vmatpush1.msra.mxu0 0.0
    %2331 = vmatprep.subr.mxu0 0.0
    %2332 = vmatpush1.msra.mxu0 0.0
    %2333 = vmatprep.subr.mxu0 0.0
    %2334 = vmatpush1.msra.mxu0 0.0
    %2335 = vmatprep.subr.mxu0 0.0
    %2336 = vmatpush1.msra.mxu0 0.0
    %2337 = vmatprep.subr.mxu0 0.0
    %2338 = vmatpush1.msra.mxu0 0.0
    %2339 = vmatprep.subr.mxu0 0.0
    %2340 = vmatpush1.msra.mxu0 0.0
    %2341 = vmatprep.subr.mxu0 0.0
    %2342 = vmatpush1.msra.mxu0 0.0
    %2343 = vmatprep.subr.mxu0 0.0
    %2344 = vmatpush1.msra.mxu0 0.0
    %2345 = vmatprep.subr.mxu0 0.0
    %2346 = vmatpush1.msra.mxu0 0.0
    %2347 = vmatprep.subr.mxu0 0.0
    %2348 = vmatpush1.msra.mxu0 0.0
    %2349 = vmatprep.subr.mxu0 0.0
    %2350 = vmatpush1.msra.mxu0 0.0
    %2351 = vmatprep.subr.mxu0 0.0
    %2352 = vmatpush1.msra.mxu0 0.0
    %2353 = vmatprep.subr.mxu0 0.0
    %2354 = vmatpush1.msra.mxu0 0.0
    %2355 = vmatprep.subr.mxu0 0.0
    %2356 = vmatpush1.msra.mxu0 0.0
    %2357 = vmatprep.subr.mxu0 0.0
    %2358 = vmatpush1.msra.mxu0 0.0
    %2359 = vmatprep.subr.mxu0 0.0
    %2360 = vmatpush1.msra.mxu0 0.0
    %2361 = vmatprep.subr.mxu0 0.0
    %2362 = vmatpush1.msra.mxu0 0.0
    %2363 = vmatprep.subr.mxu0 0.0
    %2364 = vmatpush1.msra.mxu0 0.0
    %2365 = vmatprep.subr.mxu0 0.0
    %2366 = vmatpush1.msra.mxu0 0.0
    %2367 = vmatprep.subr.mxu0 0.0
    %2368 = vmatpush1.msra.mxu0 0.0
    %2369 = vmatprep.mubr.f32.mxu0 0.0
    %2370 = vmatmul.mubr.f32.gmra.mrb[0].mxu0 %v2303
    %v2371 = vpop.f32.mrb[0].mxu0
    %v2372 = vadd.f32 %v2300, %v2371
    %v2373 = vpop.f32.mrb[0].mxu0
    %2374 = vdwg.mxu0
    %v2375 = vmul.f32 %v2372, 0.909
    %v2376 = vxor.u32 %v2372, 2147483648
    %v2377 = vmul.f32 %v2376, 1.442695
    %v2378 = vpow.pop %v2377
    %v2379 = vadd.f32 %v2378, 1.0
    %v2380 = vrcp.pop %v2379
    %v2381 = vmul.f32 1.0, %v2380
    %v2382 = vmul.f32 %v2375, %v2381
    %v2384 = vsel %vm179, %v2382, 0
    %2386 = vmatprep.subr.mxu0 0.0
    %2387 = vmatpush1.msra.mxu0 %v70
    %2388 = vmatprep.subr.mxu0 0.0
    %2389 = vmatpush1.msra.mxu0 %v71
    %2390 = vmatprep.subr.mxu0 0.0
    %2391 = vmatpush1.msra.mxu0 %v72
    %2392 = vmatprep.subr.mxu0 0.0
    %2393 = vmatpush1.msra.mxu0 %v73
    %2394 = vmatprep.subr.mxu0 0.0
    %2395 = vmatpush1.msra.mxu0 0.0
    %2396 = vmatprep.subr.mxu0 0.0
    %2397 = vmatpush1.msra.mxu0 0.0
    %2398 = vmatprep.subr.mxu0 0.0
    %2399 = vmatpush1.msra.mxu0 0.0
    %2400 = vmatprep.subr.mxu0 0.0
    %2401 = vmatpush1.msra.mxu0 0.0
    %2402 = vmatprep.subr.mxu0 0.0
    %2403 = vmatpush1.msra.mxu0 0.0
    %2404 = vmatprep.subr.mxu0 0.0
    %2405 = vmatpush1.msra.mxu0 0.0
    %2406 = vmatprep.subr.mxu0 0.0
    %2407 = vmatpush1.msra.mxu0 0.0
    %2408 = vmatprep.subr.mxu0 0.0
    %2409 = vmatpush1.msra.mxu0 0.0
    %2410 = vmatprep.subr.mxu0 0.0
    %2411 = vmatpush1.msra.mxu0 0.0
    %2412 = vmatprep.subr.mxu0 0.0
    %2413 = vmatpush1.msra.mxu0 0.0
    %2414 = vmatprep.subr.mxu0 0.0
    %2415 = vmatpush1.msra.mxu0 0.0
    %2416 = vmatprep.subr.mxu0 0.0
    %2417 = vmatpush1.msra.mxu0 0.0
    %2418 = vmatprep.subr.mxu0 0.0
    %2419 = vmatpush1.msra.mxu0 0.0
    %2420 = vmatprep.subr.mxu0 0.0
    %2421 = vmatpush1.msra.mxu0 0.0
    %2422 = vmatprep.subr.mxu0 0.0
    %2423 = vmatpush1.msra.mxu0 0.0
    %2424 = vmatprep.subr.mxu0 0.0
    %2425 = vmatpush1.msra.mxu0 0.0
    %2426 = vmatprep.subr.mxu0 0.0
    %2427 = vmatpush1.msra.mxu0 0.0
    %2428 = vmatprep.subr.mxu0 0.0
    %2429 = vmatpush1.msra.mxu0 0.0
    %2430 = vmatprep.subr.mxu0 0.0
    %2431 = vmatpush1.msra.mxu0 0.0
    %2432 = vmatprep.subr.mxu0 0.0
    %2433 = vmatpush1.msra.mxu0 0.0
    %2434 = vmatprep.subr.mxu0 0.0
    %2435 = vmatpush1.msra.mxu0 0.0
    %2436 = vmatprep.subr.mxu0 0.0
    %2437 = vmatpush1.msra.mxu0 0.0
    %2438 = vmatprep.subr.mxu0 0.0
    %2439 = vmatpush1.msra.mxu0 0.0
    %2440 = vmatprep.subr.mxu0 0.0
    %2441 = vmatpush1.msra.mxu0 0.0
    %2442 = vmatprep.subr.mxu0 0.0
    %2443 = vmatpush1.msra.mxu0 0.0
    %2444 = vmatprep.subr.mxu0 0.0
    %2445 = vmatpush1.msra.mxu0 0.0
    %2446 = vmatprep.subr.mxu0 0.0
    %2447 = vmatpush1.msra.mxu0 0.0
    %2448 = vmatprep.subr.mxu0 0.0
    %2449 = vmatpush1.msra.mxu0 0.0
    %2450 = vmatprep.mubr.f32.mxu0 0.0
    %2451 = vmatmul.mubr.f32.gmra.mrb[0].mxu0 %v2384
    %v2452 = vpop.f32.mrb[0].mxu0
    %v2453 = vadd.f32 %v433, %v2452
    %v2454 = vpop.f32.mrb[0].mxu0
    %2455 = vdwg.mxu0
    %v2456 = vmul.f32 %v2453, 0.909
    %v2457 = vxor.u32 %v2453, 2147483648
    %v2458 = vmul.f32 %v2457, 1.442695
    %v2459 = vpow.pop %v2458
    %v2460 = vadd.f32 %v2459, 1.0
    %v2461 = vrcp.pop %v2460
    %v2462 = vmul.f32 1.0, %v2461
    %v2463 = vmul.f32 %v2456, %v2462
    %v2465 = vsel %vm179, %v2463, 0
    %2467 = vmatprep.subr.mxu0 0.0
    %2468 = vmatpush1.msra.mxu0 %v75
    %2469 = vmatprep.subr.mxu0 0.0
    %2470 = vmatpush1.msra.mxu0 %v76
    %2471 = vmatprep.subr.mxu0 0.0
    %2472 = vmatpush1.msra.mxu0 %v77
    %2473 = vmatprep.subr.mxu0 0.0
    %2474 = vmatpush1.msra.mxu0 %v78
    %2475 = vmatprep.subr.mxu0 0.0
    %2476 = vmatpush1.msra.mxu0 0.0
    %2477 = vmatprep.subr.mxu0 0.0
    %2478 = vmatpush1.msra.mxu0 0.0
    %2479 = vmatprep.subr.mxu0 0.0
    %2480 = vmatpush1.msra.mxu0 0.0
    %2481 = vmatprep.subr.mxu0 0.0
    %2482 = vmatpush1.msra.mxu0 0.0
    %2483 = vmatprep.subr.mxu0 0.0
    %2484 = vmatpush1.msra.mxu0 0.0
    %2485 = vmatprep.subr.mxu0 0.0
    %2486 = vmatpush1.msra.mxu0 0.0
    %2487 = vmatprep.subr.mxu0 0.0
    %2488 = vmatpush1.msra.mxu0 0.0
    %2489 = vmatprep.subr.mxu0 0.0
    %2490 = vmatpush1.msra.mxu0 0.0
    %2491 = vmatprep.subr.mxu0 0.0
    %2492 = vmatpush1.msra.mxu0 0.0
    %2493 = vmatprep.subr.mxu0 0.0
    %2494 = vmatpush1.msra.mxu0 0.0
    %2495 = vmatprep.subr.mxu0 0.0
    %2496 = vmatpush1.msra.mxu0 0.0
    %2497 = vmatprep.subr.mxu0 0.0
    %2498 = vmatpush1.msra.mxu0 0.0
    %2499 = vmatprep.subr.mxu0 0.0
    %2500 = vmatpush1.msra.mxu0 0.0
    %2501 = vmatprep.subr.mxu0 0.0
    %2502 = vmatpush1.msra.mxu0 0.0
    %2503 = vmatprep.subr.mxu0 0.0
    %2504 = vmatpush1.msra.mxu0 0.0
    %2505 = vmatprep.subr.mxu0 0.0
    %2506 = vmatpush1.msra.mxu0 0.0
    %2507 = vmatprep.subr.mxu0 0.0
    %2508 = vmatpush1.msra.mxu0 0.0
    %2509 = vmatprep.subr.mxu0 0.0
    %2510 = vmatpush1.msra.mxu0 0.0
    %2511 = vmatprep.subr.mxu0 0.0
    %2512 = vmatpush1.msra.mxu0 0.0
    %2513 = vmatprep.subr.mxu0 0.0
    %2514 = vmatpush1.msra.mxu0 0.0
    %2515 = vmatprep.subr.mxu0 0.0
    %2516 = vmatpush1.msra.mxu0 0.0
    %2517 = vmatprep.subr.mxu0 0.0
    %2518 = vmatpush1.msra.mxu0 0.0
    %2519 = vmatprep.subr.mxu0 0.0
    %2520 = vmatpush1.msra.mxu0 0.0
    %2521 = vmatprep.subr.mxu0 0.0
    %2522 = vmatpush1.msra.mxu0 0.0
    %2523 = vmatprep.subr.mxu0 0.0
    %2524 = vmatpush1.msra.mxu0 0.0
    %2525 = vmatprep.subr.mxu0 0.0
    %2526 = vmatpush1.msra.mxu0 0.0
    %2527 = vmatprep.subr.mxu0 0.0
    %2528 = vmatpush1.msra.mxu0 0.0
    %2529 = vmatprep.subr.mxu0 0.0
    %2530 = vmatpush1.msra.mxu0 0.0
    %2531 = vmatprep.mubr.f32.mxu0 0.0
    %2532 = vmatmul.mubr.f32.gmra.mrb[0].mxu0 %v2465
    %v2533 = vpop.f32.mrb[0].mxu0
    %v2534 = vadd.f32 %v520, %v2533
    %v2535 = vpop.f32.mrb[0].mxu0
    %2536 = vdwg.mxu0
    %v2537 = vtanh.pop %v2534
    %v2538 = vmul.f32 %v2537, %v2276
    %2540 = vrot.lane.b32.xlu0 %v2538, 112
    %v2541 = vpop.permute.xlu0 %2540
    %v2543 = vadd.f32 %v2538, %v2541
    %2544 = vrot.lane.b32.xlu0 %v2538, 96
    %v2545 = vpop.permute.xlu0 %2544
    %v2547 = vadd.f32 %v2543, %v2545
    %2548 = vrot.lane.b32.xlu0 %v2538, 80
    %v2549 = vpop.permute.xlu0 %2548
    %v2551 = vadd.f32 %v2547, %v2549
    %v2552 = vadd.f32 %v2290, %v2551
    %v2553 = vmul.f32 %v2552, 0.5
    %v2554 = vadd.f32 %v2274, %v2553
    %s2555 = scalar_lea.vmem %s1, 56
    %v2556 = vld [vmem:[%s2555] sm:$0xff]
    %v2557 = vmul.f32 %v2537, %v2556
    %2559 = vrot.lane.b32.xlu0 %v2557, 112
    %v2560 = vpop.permute.xlu0 %2559
    %v2562 = vadd.f32 %v2557, %v2560
    %2563 = vrot.lane.b32.xlu0 %v2557, 96
    %v2564 = vpop.permute.xlu0 %2563
    %v2566 = vadd.f32 %v2562, %v2564
    %2567 = vrot.lane.b32.xlu0 %v2557, 80
    %v2568 = vpop.permute.xlu0 %2567
    %v2570 = vadd.f32 %v2566, %v2568
    %v2571 = vmul.f32 %v2554, 2.0
    %v2572 = vsub.f32 %v2571, %v2293
    %v2573 = vadd.f32 %v2572, %v2570
    %s2574 = scalar_lea.vmem %s2, 8
    %v2575 = vld [vmem:[%s2574] sm:$0x1]
    %v2577 = vlaneseq
    %v2578 = vshrl.u32 %v2577, 7
    %v2579 = vsub.s32 0, %v2578
    %v2580 = vrot.slane %v2575, %v2579
    %v2583 = vsel %vm347, %v2573, 0
    %2585 = vmatprep.subr.mxu0 0.0
    %2586 = vmatpush1.msra.mxu0 %v68
    %2587 = vmatprep.subr.mxu0 0.0
    %2588 = vmatpush1.msra.mxu0 %v69
    %2589 = vmatprep.subr.mxu0 0.0
    %2590 = vmatpush1.msra.mxu0 0.0
    %2591 = vmatprep.subr.mxu0 0.0
    %2592 = vmatpush1.msra.mxu0 0.0
    %2593 = vmatprep.subr.mxu0 0.0
    %2594 = vmatpush1.msra.mxu0 0.0
    %2595 = vmatprep.subr.mxu0 0.0
    %2596 = vmatpush1.msra.mxu0 0.0
    %2597 = vmatprep.subr.mxu0 0.0
    %2598 = vmatpush1.msra.mxu0 0.0
    %2599 = vmatprep.subr.mxu0 0.0
    %2600 = vmatpush1.msra.mxu0 0.0
    %2601 = vmatprep.subr.mxu0 0.0
    %2602 = vmatpush1.msra.mxu0 0.0
    %2603 = vmatprep.subr.mxu0 0.0
    %2604 = vmatpush1.msra.mxu0 0.0
    %2605 = vmatprep.subr.mxu0 0.0
    %2606 = vmatpush1.msra.mxu0 0.0
    %2607 = vmatprep.subr.mxu0 0.0
    %2608 = vmatpush1.msra.mxu0 0.0
    %2609 = vmatprep.subr.mxu0 0.0
    %2610 = vmatpush1.msra.mxu0 0.0
    %2611 = vmatprep.subr.mxu0 0.0
    %2612 = vmatpush1.msra.mxu0 0.0
    %2613 = vmatprep.subr.mxu0 0.0
    %2614 = vmatpush1.msra.mxu0 0.0
    %2615 = vmatprep.subr.mxu0 0.0
    %2616 = vmatpush1.msra.mxu0 0.0
    %2617 = vmatprep.subr.mxu0 0.0
    %2618 = vmatpush1.msra.mxu0 0.0
    %2619 = vmatprep.subr.mxu0 0.0
    %2620 = vmatpush1.msra.mxu0 0.0
    %2621 = vmatprep.subr.mxu0 0.0
    %2622 = vmatpush1.msra.mxu0 0.0
    %2623 = vmatprep.subr.mxu0 0.0
    %2624 = vmatpush1.msra.mxu0 0.0
    %2625 = vmatprep.subr.mxu0 0.0
    %2626 = vmatpush1.msra.mxu0 0.0
    %2627 = vmatprep.subr.mxu0 0.0
    %2628 = vmatpush1.msra.mxu0 0.0
    %2629 = vmatprep.subr.mxu0 0.0
    %2630 = vmatpush1.msra.mxu0 0.0
    %2631 = vmatprep.subr.mxu0 0.0
    %2632 = vmatpush1.msra.mxu0 0.0
    %2633 = vmatprep.subr.mxu0 0.0
    %2634 = vmatpush1.msra.mxu0 0.0
    %2635 = vmatprep.subr.mxu0 0.0
    %2636 = vmatpush1.msra.mxu0 0.0
    %2637 = vmatprep.subr.mxu0 0.0
    %2638 = vmatpush1.msra.mxu0 0.0
    %2639 = vmatprep.subr.mxu0 0.0
    %2640 = vmatpush1.msra.mxu0 0.0
    %2641 = vmatprep.subr.mxu0 0.0
    %2642 = vmatpush1.msra.mxu0 0.0
    %2643 = vmatprep.subr.mxu0 0.0
    %2644 = vmatpush1.msra.mxu0 0.0
    %2645 = vmatprep.subr.mxu0 0.0
    %2646 = vmatpush1.msra.mxu0 0.0
    %2647 = vmatprep.subr.mxu0 0.0
    %2648 = vmatpush1.msra.mxu0 0.0
    %2649 = vmatprep.mubr.f32.mxu0 0.0
    %2650 = vmatmul.mubr.f32.gmra.mrb[0].mxu0 %v2583
    %v2651 = vpop.f32.mrb[0].mxu0
    %v2652 = vadd.f32 %v2580, %v2651
    %v2653 = vpop.f32.mrb[0].mxu0
    %2654 = vdwg.mxu0
    %v2655 = vmul.f32 %v2652, 0.909
    %v2656 = vxor.u32 %v2652, 2147483648
    %v2657 = vmul.f32 %v2656, 1.442695
    %v2658 = vpow.pop %v2657
    %v2659 = vadd.f32 %v2658, 1.0
    %v2660 = vrcp.pop %v2659
    %v2661 = vmul.f32 1.0, %v2660
    %v2662 = vmul.f32 %v2655, %v2661
    %v2664 = vsel %vm179, %v2662, 0
    %2666 = vmatprep.subr.mxu0 0.0
    %2667 = vmatpush1.msra.mxu0 %v70
    %2668 = vmatprep.subr.mxu0 0.0
    %2669 = vmatpush1.msra.mxu0 %v71
    %2670 = vmatprep.subr.mxu0 0.0
    %2671 = vmatpush1.msra.mxu0 %v72
    %2672 = vmatprep.subr.mxu0 0.0
    %2673 = vmatpush1.msra.mxu0 %v73
    %2674 = vmatprep.subr.mxu0 0.0
    %2675 = vmatpush1.msra.mxu0 0.0
    %2676 = vmatprep.subr.mxu0 0.0
    %2677 = vmatpush1.msra.mxu0 0.0
    %2678 = vmatprep.subr.mxu0 0.0
    %2679 = vmatpush1.msra.mxu0 0.0
    %2680 = vmatprep.subr.mxu0 0.0
    %2681 = vmatpush1.msra.mxu0 0.0
    %2682 = vmatprep.subr.mxu0 0.0
    %2683 = vmatpush1.msra.mxu0 0.0
    %2684 = vmatprep.subr.mxu0 0.0
    %2685 = vmatpush1.msra.mxu0 0.0
    %2686 = vmatprep.subr.mxu0 0.0
    %2687 = vmatpush1.msra.mxu0 0.0
    %2688 = vmatprep.subr.mxu0 0.0
    %2689 = vmatpush1.msra.mxu0 0.0
    %2690 = vmatprep.subr.mxu0 0.0
    %2691 = vmatpush1.msra.mxu0 0.0
    %2692 = vmatprep.subr.mxu0 0.0
    %2693 = vmatpush1.msra.mxu0 0.0
    %2694 = vmatprep.subr.mxu0 0.0
    %2695 = vmatpush1.msra.mxu0 0.0
    %2696 = vmatprep.subr.mxu0 0.0
    %2697 = vmatpush1.msra.mxu0 0.0
    %2698 = vmatprep.subr.mxu0 0.0
    %2699 = vmatpush1.msra.mxu0 0.0
    %2700 = vmatprep.subr.mxu0 0.0
    %2701 = vmatpush1.msra.mxu0 0.0
    %2702 = vmatprep.subr.mxu0 0.0
    %2703 = vmatpush1.msra.mxu0 0.0
    %2704 = vmatprep.subr.mxu0 0.0
    %2705 = vmatpush1.msra.mxu0 0.0
    %2706 = vmatprep.subr.mxu0 0.0
    %2707 = vmatpush1.msra.mxu0 0.0
    %2708 = vmatprep.subr.mxu0 0.0
    %2709 = vmatpush1.msra.mxu0 0.0
    %2710 = vmatprep.subr.mxu0 0.0
    %2711 = vmatpush1.msra.mxu0 0.0
    %2712 = vmatprep.subr.mxu0 0.0
    %2713 = vmatpush1.msra.mxu0 0.0
    %2714 = vmatprep.subr.mxu0 0.0
    %2715 = vmatpush1.msra.mxu0 0.0
    %2716 = vmatprep.subr.mxu0 0.0
    %2717 = vmatpush1.msra.mxu0 0.0
    %2718 = vmatprep.subr.mxu0 0.0
    %2719 = vmatpush1.msra.mxu0 0.0
    %2720 = vmatprep.subr.mxu0 0.0
    %2721 = vmatpush1.msra.mxu0 0.0
    %2722 = vmatprep.subr.mxu0 0.0
    %2723 = vmatpush1.msra.mxu0 0.0
    %2724 = vmatprep.subr.mxu0 0.0
    %2725 = vmatpush1.msra.mxu0 0.0
    %2726 = vmatprep.subr.mxu0 0.0
    %2727 = vmatpush1.msra.mxu0 0.0
    %2728 = vmatprep.subr.mxu0 0.0
    %2729 = vmatpush1.msra.mxu0 0.0
    %2730 = vmatprep.mubr.f32.mxu0 0.0
    %2731 = vmatmul.mubr.f32.gmra.mrb[0].mxu0 %v2664
    %v2732 = vpop.f32.mrb[0].mxu0
    %v2733 = vadd.f32 %v433, %v2732
    %v2734 = vpop.f32.mrb[0].mxu0
    %2735 = vdwg.mxu0
    %v2736 = vmul.f32 %v2733, 0.909
    %v2737 = vxor.u32 %v2733, 2147483648
    %v2738 = vmul.f32 %v2737, 1.442695
    %v2739 = vpow.pop %v2738
    %v2740 = vadd.f32 %v2739, 1.0
    %v2741 = vrcp.pop %v2740
    %v2742 = vmul.f32 1.0, %v2741
    %v2743 = vmul.f32 %v2736, %v2742
    %v2745 = vsel %vm179, %v2743, 0
    %2747 = vmatprep.subr.mxu0 0.0
    %2748 = vmatpush1.msra.mxu0 %v75
    %2749 = vmatprep.subr.mxu0 0.0
    %2750 = vmatpush1.msra.mxu0 %v76
    %2751 = vmatprep.subr.mxu0 0.0
    %2752 = vmatpush1.msra.mxu0 %v77
    %2753 = vmatprep.subr.mxu0 0.0
    %2754 = vmatpush1.msra.mxu0 %v78
    %2755 = vmatprep.subr.mxu0 0.0
    %2756 = vmatpush1.msra.mxu0 0.0
    %2757 = vmatprep.subr.mxu0 0.0
    %2758 = vmatpush1.msra.mxu0 0.0
    %2759 = vmatprep.subr.mxu0 0.0
    %2760 = vmatpush1.msra.mxu0 0.0
    %2761 = vmatprep.subr.mxu0 0.0
    %2762 = vmatpush1.msra.mxu0 0.0
    %2763 = vmatprep.subr.mxu0 0.0
    %2764 = vmatpush1.msra.mxu0 0.0
    %2765 = vmatprep.subr.mxu0 0.0
    %2766 = vmatpush1.msra.mxu0 0.0
    %2767 = vmatprep.subr.mxu0 0.0
    %2768 = vmatpush1.msra.mxu0 0.0
    %2769 = vmatprep.subr.mxu0 0.0
    %2770 = vmatpush1.msra.mxu0 0.0
    %2771 = vmatprep.subr.mxu0 0.0
    %2772 = vmatpush1.msra.mxu0 0.0
    %2773 = vmatprep.subr.mxu0 0.0
    %2774 = vmatpush1.msra.mxu0 0.0
    %2775 = vmatprep.subr.mxu0 0.0
    %2776 = vmatpush1.msra.mxu0 0.0
    %2777 = vmatprep.subr.mxu0 0.0
    %2778 = vmatpush1.msra.mxu0 0.0
    %2779 = vmatprep.subr.mxu0 0.0
    %2780 = vmatpush1.msra.mxu0 0.0
    %2781 = vmatprep.subr.mxu0 0.0
    %2782 = vmatpush1.msra.mxu0 0.0
    %2783 = vmatprep.subr.mxu0 0.0
    %2784 = vmatpush1.msra.mxu0 0.0
    %2785 = vmatprep.subr.mxu0 0.0
    %2786 = vmatpush1.msra.mxu0 0.0
    %2787 = vmatprep.subr.mxu0 0.0
    %2788 = vmatpush1.msra.mxu0 0.0
    %2789 = vmatprep.subr.mxu0 0.0
    %2790 = vmatpush1.msra.mxu0 0.0
    %2791 = vmatprep.subr.mxu0 0.0
    %2792 = vmatpush1.msra.mxu0 0.0
    %2793 = vmatprep.subr.mxu0 0.0
    %2794 = vmatpush1.msra.mxu0 0.0
    %2795 = vmatprep.subr.mxu0 0.0
    %2796 = vmatpush1.msra.mxu0 0.0
    %2797 = vmatprep.subr.mxu0 0.0
    %2798 = vmatpush1.msra.mxu0 0.0
    %2799 = vmatprep.subr.mxu0 0.0
    %2800 = vmatpush1.msra.mxu0 0.0
    %2801 = vmatprep.subr.mxu0 0.0
    %2802 = vmatpush1.msra.mxu0 0.0
    %2803 = vmatprep.subr.mxu0 0.0
    %2804 = vmatpush1.msra.mxu0 0.0
    %2805 = vmatprep.subr.mxu0 0.0
    %2806 = vmatpush1.msra.mxu0 0.0
    %2807 = vmatprep.subr.mxu0 0.0
    %2808 = vmatpush1.msra.mxu0 0.0
    %2809 = vmatprep.subr.mxu0 0.0
    %2810 = vmatpush1.msra.mxu0 0.0
    %2811 = vmatprep.mubr.f32.mxu0 0.0
    %2812 = vmatmul.mubr.f32.gmra.mrb[0].mxu0 %v2745
    %v2813 = vpop.f32.mrb[0].mxu0
    %v2814 = vadd.f32 %v520, %v2813
    %v2815 = vpop.f32.mrb[0].mxu0
    %2816 = vdwg.mxu0
    %v2817 = vtanh.pop %v2814
    %v2818 = vmul.f32 %v2817, %v2556
    %2820 = vrot.lane.b32.xlu0 %v2818, 112
    %v2821 = vpop.permute.xlu0 %2820
    %v2823 = vadd.f32 %v2818, %v2821
    %2824 = vrot.lane.b32.xlu0 %v2818, 96
    %v2825 = vpop.permute.xlu0 %2824
    %v2827 = vadd.f32 %v2823, %v2825
    %2828 = vrot.lane.b32.xlu0 %v2818, 80
    %v2829 = vpop.permute.xlu0 %2828
    %v2831 = vadd.f32 %v2827, %v2829
    %v2832 = vadd.f32 %v2570, %v2831
    %v2833 = vmul.f32 %v2832, 0.5
    %v2834 = vadd.f32 %v2554, %v2833
    %v2835 = vsel %vm347, %v2834, 0.0
    %v2836 = vrot.slane %v2835, 4
    %v2837 = vadd.f32 %v2835, %v2836
    %v2838 = vrot.slane %v2837, 2
    %v2839 = vadd.f32 %v2837, %v2838
    %v2840 = vrot.slane %v2839, 1
    %v2841 = vadd.f32 %v2839, %v2840
    %v2842 = vld [vmem:[%s14] sm:$0x1]
    %v2843 = vmul.f32 %v2841, %v2842
    %vm2844 = vcmask 122880
    %v2845 = vsel %vm2844, %v2843, 0.0
    %2846 = vadd.xlane.f32.xlu0 %v2845
    %v2847 = vpop.xlane.xlu0 %2846
    %v2848 = vld [vmem:[#allocation2] sm:$0x1]
    %v2849 = vmul.f32 %v2848, 8.0
    %v2850 = vadd.f32 %v2847, %v2849
    %vm2851 = vcmask 0
    %2852 = vst.msk [vmem:[#allocation3] sm:$0x1] %vm2851, %v2850
    // Predicated region
    $region66: #{discriminator_forward.1} parent=1 // pred_check
      _
    $region67: #{discriminator_forward.1} parent=1 // pred_check_branch
      %2854 = sbr.rel (0) target = $region69
    $region68: #{discriminator_forward.1} parent=1 // pred_region
      %s2856 = ssub.s32 16, 16
      %2857 = vsyncadd [#allocation4], %s2856
      %s2859 = sshll.u32 [#allocation3], 4
      %s2860 = int_to_ptr.vmem [resolvable:$true] %s2859
      %2862 = dma.vmem_to_hbm [thread:$0]  %s2860, 16, %s16, [#allocation4]
    $region69: #{discriminator_forward.1} parent=1 // pred_fallthru
      _
    // Predicated region
    $region70: #{discriminator_forward.1} parent=1 // pred_check
      _
    $region71: #{discriminator_forward.1} parent=1 // pred_check_branch
      %2864 = sbr.rel (0) target = $region73
    $region72: #{discriminator_forward.1} parent=1 // pred_region
      %2865 = dma.done [#allocation4], 16
    $region73: #{discriminator_forward.1} parent=1 // pred_fallthru
      _
    %2866 = vsyncpa [#allocation4], 1

</llo_original>
